<compile_context>
chip_gen: v7x
topology: tpu7x:2x2x1
jax: 0.10.0
libtpu: 0.0.40
codegen_flags: <defaults>
</compile_context>

<pallas_src>
import math

import jax
import jax.numpy as jnp
from jax import lax
from jax.experimental import pallas as pl
from jax.experimental.pallas import tpu as pltpu

EPS = 1e-5                  # PyTorch BatchNorm default eps
C_IN, C1_OUT, C2_OUT = 2, 4, 6
KW1 = 3                     # conv1 kernel width
H2, W2 = 16, 24             # spatial size after conv2
HW2 = H2 * W2               # 384 = 3 * 128 lanes (lane-dense)
HIDDEN = 128
N_SLABS = 20                # (m in 0..4) x (kh in 0..1) x (c in 0..1)
N_WCHUNK = 2                # fc1 weight DMA chunks, each (3*HW2, HIDDEN) bf16


# --------------------------------------------------------------------------
# Fully fused Pallas kernel
# --------------------------------------------------------------------------
def actor_fused_kernel(xs_ref, w1_ref, s1_ref, w2_ref, s2_ref,
                       wf1_hbm, b1_ref, wf2_ref, b2_ref, o_ref,
                       wbuf, wsem):
    # xs_ref : (20*B, 384) f32 VMEM   row ((m*2+kh)*2+c)*B + b, m = 2*kw + j
    # w1_ref : (24,) f32 SMEM   conv1 weight * bn1 scale, index (c1*2 + c)*3 + j
    # s1_ref : (4,)  f32 SMEM   conv1 bias/BN1 shift per channel
    # w2_ref : (96,) f32 SMEM   conv2 weight * bn2 scale, index ((c2*4+c1)*2+kh)*2+kw
    # s2_ref : (6,)  f32 SMEM   conv2 bias/BN2 shift per channel
    # wf1_hbm: (2, 1152, 128) bf16 HBM (memory_space=ANY)  fc1 weight, 2 DMA chunks
    # b1_ref : (1, 128) f32 ; wf2_ref: (128, A_pad) f32 ; b2_ref: (1, A_pad) f32
    # wbuf   : VMEM (2, 1152, 128) bf16 scratch ; wsem: DMA semaphores (2,)
    B = o_ref.shape[0]

    # Kick off the fc1 weight fetch immediately so the ~576 KiB bf16 DMA overlaps
    # the conv/VPU phase instead of being exposed before any compute starts.
    copies = [pltpu.make_async_copy(wf1_hbm.at[i], wbuf.at[i], wsem.at[i])
              for i in range(N_WCHUNK)]
    for cp in copies:
        cp.start()

    # ---- conv1 + BN1 + ReLU fused with the conv2 accumulation -------------
    # Every intermediate is a lane-dense (B, 384) slab; channels / kernel taps are
    # unrolled Python-side -> scalar*vector FMAs on the VPU.
    out2_acc = [None] * C2_OUT
    for kw in range(2):
        for kh in range(2):
            for c1 in range(C1_OUT):
                acc = None
                for c in range(C_IN):
                    for j in range(KW1):
                        w = w1_ref[(c1 * C_IN + c) * KW1 + j]            # SMEM scalar
                        s = ((2 * kw + j) * 2 + kh) * 2 + c              # static slab id
                        t = w * xs_ref[pl.ds(s * B, B), :]               # (B, 384)
                        acc = t if acc is None else acc + t
                y = jnp.maximum(acc + s1_ref[c1], 0.0)                   # (B, 384)
                for c2 in range(C2_OUT):
                    w2 = w2_ref[((c2 * C1_OUT + c1) * 2 + kh) * 2 + kw]
                    t2 = w2 * y
                    out2_acc[c2] = t2 if out2_acc[c2] is None else out2_acc[c2] + t2

    # ---- BN2 + ReLU; cast to bf16 only at the MXU boundary ------------------
    feats = [jnp.maximum(out2_acc[c2] + s2_ref[c2], 0.0).astype(jnp.bfloat16)
             for c2 in range(C2_OUT)]                                    # 6 x (B, 384)

    # ---- fc1: two fused K=1152 bf16 dots (f32 acc), weights waited just-in-time
    hacc = None
    per = C2_OUT // N_WCHUNK
    for i in range(N_WCHUNK):
        f = jnp.concatenate(feats[i * per:(i + 1) * per], axis=1)        # (B, 1152)
        copies[i].wait()
        d = jnp.dot(f, wbuf[i], preferred_element_type=jnp.float32)      # (B, 128)
        hacc = d if hacc is None else hacc + d
    h = jnp.maximum(hacc + b1_ref[...], 0.0)                             # (B, 128)

    # ---- fc2 + softmax(dim=1) (A padded to 128 lanes; pad bias=-1e30 -> prob 0)
    logits = jnp.dot(h, wf2_ref[...], preferred_element_type=jnp.float32) + b2_ref[...]
    mx = jnp.max(logits, axis=1, keepdims=True)
    e = jnp.exp(logits - mx)
    o_ref[...] = e / jnp.sum(e, axis=1, keepdims=True)                   # exact normalization


# --------------------------------------------------------------------------
# Parameters (deterministic, mimicking the PyTorch __init__)
# --------------------------------------------------------------------------
def init_params(key, n_actions):
    ks = jax.random.split(key, 6)
    w_conv1 = jax.random.normal(ks[0], (4, 2, 1, 3), jnp.float32) * math.sqrt(2.0 / (4 * 1 * 3))
    b_conv1 = jax.random.uniform(ks[1], (4,), jnp.float32, -1.0, 1.0) / math.sqrt(2 * 1 * 3)
    w_conv2 = jax.random.normal(ks[2], (6, 4, 2, 2), jnp.float32) * math.sqrt(2.0 / (6 * 2 * 2))
    b_conv2 = jax.random.uniform(ks[3], (6,), jnp.float32, -1.0, 1.0) / math.sqrt(4 * 2 * 2)
    w_fc1 = jax.random.normal(ks[4], (HIDDEN, C2_OUT * HW2), jnp.float32) * 0.01
    b_fc1 = jnp.zeros((HIDDEN,), jnp.float32)
    w_fc2 = jax.random.normal(ks[5], (n_actions, HIDDEN), jnp.float32) * 0.01
    b_fc2 = jnp.zeros((n_actions,), jnp.float32)
    bn1 = dict(gamma=jnp.ones(4, jnp.float32), beta=jnp.zeros(4, jnp.float32),
               mean=jnp.zeros(4, jnp.float32), var=jnp.ones(4, jnp.float32))
    bn2 = dict(gamma=jnp.ones(6, jnp.float32), beta=jnp.zeros(6, jnp.float32),
               mean=jnp.zeros(6, jnp.float32), var=jnp.ones(6, jnp.float32))
    return dict(w_conv1=w_conv1, b_conv1=b_conv1, w_conv2=w_conv2, b_conv2=b_conv2,
                w_fc1=w_fc1, b_fc1=b_fc1, w_fc2=w_fc2, b_fc2=b_fc2, bn1=bn1, bn2=bn2)


def prepare_params(p):
    """One-time folding: BN scale into conv weights, fc1 -> bf16 chunks, fc2 lane-pad."""
    scale1 = p["bn1"]["gamma"] / jnp.sqrt(p["bn1"]["var"] + EPS)
    shift1 = (p["b_conv1"] - p["bn1"]["mean"]) * scale1 + p["bn1"]["beta"]
    scale2 = p["bn2"]["gamma"] / jnp.sqrt(p["bn2"]["var"] + EPS)
    shift2 = (p["b_conv2"] - p["bn2"]["mean"]) * scale2 + p["bn2"]["beta"]
    w1s = (p["w_conv1"] * scale1[:, None, None, None]).reshape(-1)        # (24,)
    w2s = (p["w_conv2"] * scale2[:, None, None, None]).reshape(-1)        # (96,)
    # torch flatten order of (6,16,24) is c2*384 + h2*24 + w2: keep rows contiguous,
    # split into N_WCHUNK DMA chunks of (1152, 128) bf16.
    wf1 = p["w_fc1"].T.astype(jnp.bfloat16).reshape(
        N_WCHUNK, (C2_OUT // N_WCHUNK) * HW2, HIDDEN)
    # Pad fc2 / bias to a 128-lane action dimension; padded bias -1e30 -> softmax prob 0.
    A = p["w_fc2"].shape[0]
    A_pad = ((A + 127) // 128) * 128
    wf2 = jnp.zeros((HIDDEN, A_pad), jnp.float32).at[:, :A].set(p["w_fc2"].T)
    b2 = jnp.full((A_pad,), -1e30, jnp.float32).at[:A].set(p["b_fc2"])
    return dict(w1s=w1s, shift1=shift1, w2s=w2s, shift2=shift2,
                wf1=wf1, b1=p["b_fc1"][None, :], wf2=wf2, b2=b2[None, :])


# --------------------------------------------------------------------------
# Forward pass (single fused pallas_call)
# --------------------------------------------------------------------------
def actor_forward(x, kp, n_actions):
    # x: NCHW (B, 2, 32, 97) -> (B, n_actions)
    B = x.shape[0]
    A_pad = kp["wf2"].shape[1]

    # One-shot gather + reshape + transpose into the kernel's lane-dense layout:
    # row (((m*2+kh)*2+c)*B + b), col (h2*24 + w2)  =  x[b, c, 2*h2+kh, 4*w2+m].
    w_idx = jnp.arange(5)[:, None] + 4 * jnp.arange(W2)[None, :]           # (5, 24)
    xg = jnp.take(x, w_idx, axis=3)                                        # (B, 2, 32, 5, 24)
    xg = xg.reshape(B, C_IN, H2, 2, 5, W2)                                 # b, c, h2, kh, m, w2
    xs = jnp.transpose(xg, (4, 3, 1, 0, 2, 5)).reshape(N_SLABS * B, HW2)   # (20*B, 384)

    smem = pl.BlockSpec(memory_space=pltpu.MemorySpace.SMEM)
    grid_spec = pltpu.PrefetchScalarGridSpec(
        num_scalar_prefetch=0,
        grid=(1,),
        in_specs=[
            pl.BlockSpec((N_SLABS * B, HW2), lambda i: (0, 0)),   # xs  (dense (8,128) tiles)
            smem,                                                 # w1s (24,)
            smem,                                                 # shift1 (4,)
            smem,                                                 # w2s (96,)
            smem,                                                 # shift2 (6,)
            pl.BlockSpec(memory_space=pl.ANY),                    # wf1 stays in HBM -> manual DMA
            pl.BlockSpec((1, HIDDEN), lambda i: (0, 0)),          # b1
            pl.BlockSpec((HIDDEN, A_pad), lambda i: (0, 0)),      # wf2 (lane-padded)
            pl.BlockSpec((1, A_pad), lambda i: (0, 0)),           # b2
        ],
        out_specs=pl.BlockSpec((B, A_pad), lambda i: (0, 0)),
        scratch_shapes=[
            pltpu.VMEM((N_WCHUNK, (C2_OUT // N_WCHUNK) * HW2, HIDDEN), jnp.bfloat16),
            pltpu.SemaphoreType.DMA((N_WCHUNK,)),
        ],
    )
    out_pad = pl.pallas_call(
        actor_fused_kernel,
        out_shape=jax.ShapeDtypeStruct((B, A_pad), jnp.float32),
        grid_spec=grid_spec,
        compiler_params=pltpu.CompilerParams(dimension_semantics=("arbitrary",)),
    )(xs, kp["w1s"], kp["shift1"], kp["w2s"], kp["shift2"],
      kp["wf1"], kp["b1"], kp["wf2"], kp["b2"])
    return out_pad[:, :n_actions]


# --------------------------------------------------------------------------
# Pure-JAX reference (verification only)
# --------------------------------------------------------------------------
def reference_forward(x, p):
    def bn_eval(y, bias, bn):
        y = y + bias[None, :, None, None]
        return ((y - bn["mean"][None, :, None, None])
                / jnp.sqrt(bn["var"][None, :, None, None] + EPS)
                * bn["gamma"][None, :, None, None] + bn["beta"][None, :, None, None])

    y = lax.conv_general_dilated(x, p["w_conv1"], (1, 2), "VALID",
                                 dimension_numbers=("NCHW", "OIHW", "NCHW"))
    y = jax.nn.relu(bn_eval(y, p["b_conv1"], p["bn1"]))
    y = lax.conv_general_dilated(y, p["w_conv2"], (2, 2), "VALID",
                                 dimension_numbers=("NCHW", "OIHW", "NCHW"))
    y = jax.nn.relu(bn_eval(y, p["b_conv2"], p["bn2"]))
    f = y.reshape(y.shape[0], -1)
    h = jax.nn.relu(f @ p["w_fc1"].T + p["b_fc1"])
    logits = h @ p["w_fc2"].T + p["b_fc2"]
    return jax.nn.softmax(logits, axis=1)


# --------------------------------------------------------------------------
if __name__ == "__main__":
    key = jax.random.PRNGKey(0)
    kx, kp_key = jax.random.split(key)

    n_actions = 5
    B = 2
    # fc1 expects 6*16*24 flattened features => input spatial (32, 97), channels 2.
    x = jax.random.normal(kx, (B, 2, 32, 97), jnp.float32)
    params = init_params(kp_key, n_actions)
    kparams = prepare_params(params)

    fwd = jax.jit(actor_forward, static_argnames=("n_actions",))
    out = jax.block_until_ready(fwd(x, kparams, n_actions=n_actions))

    ref = reference_forward(x, params)
    assert out.shape == (B, n_actions), out.shape
    assert bool(jnp.all(jnp.isfinite(out)))
    assert bool(jnp.allclose(jnp.sum(out, axis=1), 1.0, atol=1e-3))
    assert bool(jnp.allclose(out, ref, rtol=2e-2, atol=2e-3)), (out, ref)

    print("KERNEL_OK")
</pallas_src>

<mosaic_0001>
module attributes {stable_mosaic.version = 11 : i64} {
  func.func @actor_fused_kernel(%arg0: i32, %arg1: memref<40x384xf32, #tpu.memory_space<vmem>>, %arg2: memref<24xf32, #tpu.memory_space<smem>>, %arg3: memref<4xf32, #tpu.memory_space<smem>>, %arg4: memref<96xf32, #tpu.memory_space<smem>>, %arg5: memref<6xf32, #tpu.memory_space<smem>>, %arg6: memref<2x1152x128xbf16, #tpu.memory_space<any>>, %arg7: memref<1x128xf32, #tpu.memory_space<vmem>>, %arg8: memref<128x128xf32, #tpu.memory_space<vmem>>, %arg9: memref<1x128xf32, #tpu.memory_space<vmem>>, %arg10: memref<2x128xf32, #tpu.memory_space<vmem>>, %arg11: memref<2x1152x128xbf16, #tpu.memory_space<vmem>>, %arg12: memref<2x!tpu.dma_semaphore, #tpu.memory_space<semaphore_mem>>) attributes {dimension_semantics = [#tpu.dimension_semantics<arbitrary>], iteration_bounds = array<i64: 1>, scalar_prefetch = 0 : i64, scratch_operands = 2 : i64, tpu.core_type = #tpu.core_type<tc>, window_params = [{pipeline_mode = #tpu.pipeline_mode<synchronous>, transform_indices = @transform_0, window_bounds = array<i64: 40, 384>}, {transform_indices = @transform_1, window_bounds = array<i64: 24>}, {transform_indices = @transform_2, window_bounds = array<i64: 4>}, {transform_indices = @transform_3, window_bounds = array<i64: 96>}, {transform_indices = @transform_4, window_bounds = array<i64: 6>}, {}, {pipeline_mode = #tpu.pipeline_mode<synchronous>, transform_indices = @transform_6, window_bounds = array<i64: 1, 128>}, {pipeline_mode = #tpu.pipeline_mode<synchronous>, transform_indices = @transform_7, window_bounds = array<i64: 128, 128>}, {pipeline_mode = #tpu.pipeline_mode<synchronous>, transform_indices = @transform_8, window_bounds = array<i64: 1, 128>}, {pipeline_mode = #tpu.pipeline_mode<synchronous>, transform_indices = @transform_9, window_bounds = array<i64: 2, 128>}]} {
    %c0_i32 = arith.constant 0 : i32
    %c0_i32_0 = arith.constant 0 : i32
    %c0_i32_1 = arith.constant 0 : i32
    %c0_i32_2 = arith.constant 0 : i32
    %c0_i32_3 = arith.constant 0 : i32
    %0 = tpu.memref_slice %arg6[%c0_i32, %c0_i32_2, %c0_i32_3] : memref<2x1152x128xbf16, #tpu.memory_space<any>> -> memref<1x1152x128xbf16, #tpu.memory_space<any>>
    %1 = tpu.memref_squeeze %0 : memref<1x1152x128xbf16, #tpu.memory_space<any>> -> memref<1152x128xbf16, #tpu.memory_space<any>>
    %c0_i32_4 = arith.constant 0 : i32
    %c0_i32_5 = arith.constant 0 : i32
    %2 = tpu.memref_slice %arg11[%c0_i32_0, %c0_i32_4, %c0_i32_5] : memref<2x1152x128xbf16, #tpu.memory_space<vmem>> -> memref<1x1152x128xbf16, #tpu.memory_space<vmem>>
    %3 = tpu.memref_squeeze %2 : memref<1x1152x128xbf16, #tpu.memory_space<vmem>> -> memref<1152x128xbf16, #tpu.memory_space<vmem>>
    %4 = tpu.memref_slice %arg12[%c0_i32_1] : memref<2x!tpu.dma_semaphore, #tpu.memory_space<semaphore_mem>> -> memref<1x!tpu.dma_semaphore, #tpu.memory_space<semaphore_mem>>
    %5 = tpu.memref_squeeze %4 : memref<1x!tpu.dma_semaphore, #tpu.memory_space<semaphore_mem>> -> memref<!tpu.dma_semaphore, #tpu.memory_space<semaphore_mem>>
    tpu.enqueue_dma source(%1 : memref<1152x128xbf16, #tpu.memory_space<any>>) target(%3 : memref<1152x128xbf16, #tpu.memory_space<vmem>>) target_semaphore(%5 : memref<!tpu.dma_semaphore, #tpu.memory_space<semaphore_mem>>)
    %c1_i32 = arith.constant 1 : i32
    %c1_i32_6 = arith.constant 1 : i32
    %c1_i32_7 = arith.constant 1 : i32
    %c0_i32_8 = arith.constant 0 : i32
    %c0_i32_9 = arith.constant 0 : i32
    %6 = tpu.memref_slice %arg6[%c1_i32, %c0_i32_8, %c0_i32_9] : memref<2x1152x128xbf16, #tpu.memory_space<any>> -> memref<1x1152x128xbf16, #tpu.memory_space<any>>
    %7 = tpu.memref_squeeze %6 : memref<1x1152x128xbf16, #tpu.memory_space<any>> -> memref<1152x128xbf16, #tpu.memory_space<any>>
    %c0_i32_10 = arith.constant 0 : i32
    %c0_i32_11 = arith.constant 0 : i32
    %8 = tpu.memref_slice %arg11[%c1_i32_6, %c0_i32_10, %c0_i32_11] : memref<2x1152x128xbf16, #tpu.memory_space<vmem>> -> memref<1x1152x128xbf16, #tpu.memory_space<vmem>>
    %9 = tpu.memref_squeeze %8 : memref<1x1152x128xbf16, #tpu.memory_space<vmem>> -> memref<1152x128xbf16, #tpu.memory_space<vmem>>
    %10 = tpu.memref_slice %arg12[%c1_i32_7] : memref<2x!tpu.dma_semaphore, #tpu.memory_space<semaphore_mem>> -> memref<1x!tpu.dma_semaphore, #tpu.memory_space<semaphore_mem>>
    %11 = tpu.memref_squeeze %10 : memref<1x!tpu.dma_semaphore, #tpu.memory_space<semaphore_mem>> -> memref<!tpu.dma_semaphore, #tpu.memory_space<semaphore_mem>>
    tpu.enqueue_dma source(%7 : memref<1152x128xbf16, #tpu.memory_space<any>>) target(%9 : memref<1152x128xbf16, #tpu.memory_space<vmem>>) target_semaphore(%11 : memref<!tpu.dma_semaphore, #tpu.memory_space<semaphore_mem>>)
    %c0 = arith.constant 0 : index
    %12 = memref.load %arg2[%c0] : memref<24xf32, #tpu.memory_space<smem>>
    %c0_12 = arith.constant 0 : index
    %c0_13 = arith.constant 0 : index
    %13 = vector.load %arg1[%c0_12, %c0_13] : memref<40x384xf32, #tpu.memory_space<vmem>>, vector<2x384xf32>
    %14 = vector.broadcast %12 : f32 to vector<2x384xf32>
    %15 = arith.mulf %14, %13 : vector<2x384xf32>
    %c1 = arith.constant 1 : index
    %16 = memref.load %arg2[%c1] : memref<24xf32, #tpu.memory_space<smem>>
    %c8 = arith.constant 8 : index
    %c0_14 = arith.constant 0 : index
    %17 = vector.load %arg1[%c8, %c0_14] : memref<40x384xf32, #tpu.memory_space<vmem>>, vector<2x384xf32>
    %18 = vector.broadcast %16 : f32 to vector<2x384xf32>
    %19 = arith.mulf %18, %17 : vector<2x384xf32>
    %20 = arith.addf %15, %19 : vector<2x384xf32>
    %c2 = arith.constant 2 : index
    %21 = memref.load %arg2[%c2] : memref<24xf32, #tpu.memory_space<smem>>
    %c16 = arith.constant 16 : index
    %c0_15 = arith.constant 0 : index
    %22 = vector.load %arg1[%c16, %c0_15] : memref<40x384xf32, #tpu.memory_space<vmem>>, vector<2x384xf32>
    %23 = vector.broadcast %21 : f32 to vector<2x384xf32>
    %24 = arith.mulf %23, %22 : vector<2x384xf32>
    %25 = arith.addf %20, %24 : vector<2x384xf32>
    %c3 = arith.constant 3 : index
    %26 = memref.load %arg2[%c3] : memref<24xf32, #tpu.memory_space<smem>>
    %c2_16 = arith.constant 2 : index
    %c0_17 = arith.constant 0 : index
    %27 = vector.load %arg1[%c2_16, %c0_17] : memref<40x384xf32, #tpu.memory_space<vmem>>, vector<2x384xf32>
    %28 = vector.broadcast %26 : f32 to vector<2x384xf32>
    %29 = arith.mulf %28, %27 : vector<2x384xf32>
    %30 = arith.addf %25, %29 : vector<2x384xf32>
    %c4 = arith.constant 4 : index
    %31 = memref.load %arg2[%c4] : memref<24xf32, #tpu.memory_space<smem>>
    %c10 = arith.constant 10 : index
    %c0_18 = arith.constant 0 : index
    %32 = vector.load %arg1[%c10, %c0_18] : memref<40x384xf32, #tpu.memory_space<vmem>>, vector<2x384xf32>
    %33 = vector.broadcast %31 : f32 to vector<2x384xf32>
    %34 = arith.mulf %33, %32 : vector<2x384xf32>
    %35 = arith.addf %30, %34 : vector<2x384xf32>
    %c5 = arith.constant 5 : index
    %36 = memref.load %arg2[%c5] : memref<24xf32, #tpu.memory_space<smem>>
    %c18 = arith.constant 18 : index
    %c0_19 = arith.constant 0 : index
    %37 = vector.load %arg1[%c18, %c0_19] : memref<40x384xf32, #tpu.memory_space<vmem>>, vector<2x384xf32>
    %38 = vector.broadcast %36 : f32 to vector<2x384xf32>
    %39 = arith.mulf %38, %37 : vector<2x384xf32>
    %40 = arith.addf %35, %39 : vector<2x384xf32>
    %c0_20 = arith.constant 0 : index
    %41 = memref.load %arg3[%c0_20] : memref<4xf32, #tpu.memory_space<smem>>
    %42 = vector.broadcast %41 : f32 to vector<2x384xf32>
    %43 = arith.addf %40, %42 : vector<2x384xf32>
    %cst = arith.constant 0.000000e+00 : f32
    %44 = vector.broadcast %cst : f32 to vector<2x384xf32>
    %45 = arith.maximumf %43, %44 : vector<2x384xf32>
    %c0_21 = arith.constant 0 : index
    %46 = memref.load %arg4[%c0_21] : memref<96xf32, #tpu.memory_space<smem>>
    %47 = vector.broadcast %46 : f32 to vector<2x384xf32>
    %48 = arith.mulf %47, %45 : vector<2x384xf32>
    %c16_22 = arith.constant 16 : index
    %49 = memref.load %arg4[%c16_22] : memref<96xf32, #tpu.memory_space<smem>>
    %50 = vector.broadcast %49 : f32 to vector<2x384xf32>
    %51 = arith.mulf %50, %45 : vector<2x384xf32>
    %c32 = arith.constant 32 : index
    %52 = memref.load %arg4[%c32] : memref<96xf32, #tpu.memory_space<smem>>
    %53 = vector.broadcast %52 : f32 to vector<2x384xf32>
    %54 = arith.mulf %53, %45 : vector<2x384xf32>
    %c48 = arith.constant 48 : index
    %55 = memref.load %arg4[%c48] : memref<96xf32, #tpu.memory_space<smem>>
    %56 = vector.broadcast %55 : f32 to vector<2x384xf32>
    %57 = arith.mulf %56, %45 : vector<2x384xf32>
    %c64 = arith.constant 64 : index
    %58 = memref.load %arg4[%c64] : memref<96xf32, #tpu.memory_space<smem>>
    %59 = vector.broadcast %58 : f32 to vector<2x384xf32>
    %60 = arith.mulf %59, %45 : vector<2x384xf32>
    %c80 = arith.constant 80 : index
    %61 = memref.load %arg4[%c80] : memref<96xf32, #tpu.memory_space<smem>>
    %62 = vector.broadcast %61 : f32 to vector<2x384xf32>
    %63 = arith.mulf %62, %45 : vector<2x384xf32>
    %c6 = arith.constant 6 : index
    %64 = memref.load %arg2[%c6] : memref<24xf32, #tpu.memory_space<smem>>
    %c0_23 = arith.constant 0 : index
    %c0_24 = arith.constant 0 : index
    %65 = vector.load %arg1[%c0_23, %c0_24] : memref<40x384xf32, #tpu.memory_space<vmem>>, vector<2x384xf32>
    %66 = vector.broadcast %64 : f32 to vector<2x384xf32>
    %67 = arith.mulf %66, %65 : vector<2x384xf32>
    %c7 = arith.constant 7 : index
    %68 = memref.load %arg2[%c7] : memref<24xf32, #tpu.memory_space<smem>>
    %c8_25 = arith.constant 8 : index
    %c0_26 = arith.constant 0 : index
    %69 = vector.load %arg1[%c8_25, %c0_26] : memref<40x384xf32, #tpu.memory_space<vmem>>, vector<2x384xf32>
    %70 = vector.broadcast %68 : f32 to vector<2x384xf32>
    %71 = arith.mulf %70, %69 : vector<2x384xf32>
    %72 = arith.addf %67, %71 : vector<2x384xf32>
    %c8_27 = arith.constant 8 : index
    %73 = memref.load %arg2[%c8_27] : memref<24xf32, #tpu.memory_space<smem>>
    %c16_28 = arith.constant 16 : index
    %c0_29 = arith.constant 0 : index
    %74 = vector.load %arg1[%c16_28, %c0_29] : memref<40x384xf32, #tpu.memory_space<vmem>>, vector<2x384xf32>
    %75 = vector.broadcast %73 : f32 to vector<2x384xf32>
    %76 = arith.mulf %75, %74 : vector<2x384xf32>
    %77 = arith.addf %72, %76 : vector<2x384xf32>
    %c9 = arith.constant 9 : index
    %78 = memref.load %arg2[%c9] : memref<24xf32, #tpu.memory_space<smem>>
    %c2_30 = arith.constant 2 : index
    %c0_31 = arith.constant 0 : index
    %79 = vector.load %arg1[%c2_30, %c0_31] : memref<40x384xf32, #tpu.memory_space<vmem>>, vector<2x384xf32>
    %80 = vector.broadcast %78 : f32 to vector<2x384xf32>
    %81 = arith.mulf %80, %79 : vector<2x384xf32>
    %82 = arith.addf %77, %81 : vector<2x384xf32>
    %c10_32 = arith.constant 10 : index
    %83 = memref.load %arg2[%c10_32] : memref<24xf32, #tpu.memory_space<smem>>
    %c10_33 = arith.constant 10 : index
    %c0_34 = arith.constant 0 : index
    %84 = vector.load %arg1[%c10_33, %c0_34] : memref<40x384xf32, #tpu.memory_space<vmem>>, vector<2x384xf32>
    %85 = vector.broadcast %83 : f32 to vector<2x384xf32>
    %86 = arith.mulf %85, %84 : vector<2x384xf32>
    %87 = arith.addf %82, %86 : vector<2x384xf32>
    %c11 = arith.constant 11 : index
    %88 = memref.load %arg2[%c11] : memref<24xf32, #tpu.memory_space<smem>>
    %c18_35 = arith.constant 18 : index
    %c0_36 = arith.constant 0 : index
    %89 = vector.load %arg1[%c18_35, %c0_36] : memref<40x384xf32, #tpu.memory_space<vmem>>, vector<2x384xf32>
    %90 = vector.broadcast %88 : f32 to vector<2x384xf32>
    %91 = arith.mulf %90, %89 : vector<2x384xf32>
    %92 = arith.addf %87, %91 : vector<2x384xf32>
    %c1_37 = arith.constant 1 : index
    %93 = memref.load %arg3[%c1_37] : memref<4xf32, #tpu.memory_space<smem>>
    %94 = vector.broadcast %93 : f32 to vector<2x384xf32>
    %95 = arith.addf %92, %94 : vector<2x384xf32>
    %cst_38 = arith.constant 0.000000e+00 : f32
    %96 = vector.broadcast %cst_38 : f32 to vector<2x384xf32>
    %97 = arith.maximumf %95, %96 : vector<2x384xf32>
    %c4_39 = arith.constant 4 : index
    %98 = memref.load %arg4[%c4_39] : memref<96xf32, #tpu.memory_space<smem>>
    %99 = vector.broadcast %98 : f32 to vector<2x384xf32>
    %100 = arith.mulf %99, %97 : vector<2x384xf32>
    %101 = arith.addf %48, %100 : vector<2x384xf32>
    %c20 = arith.constant 20 : index
    %102 = memref.load %arg4[%c20] : memref<96xf32, #tpu.memory_space<smem>>
    %103 = vector.broadcast %102 : f32 to vector<2x384xf32>
    %104 = arith.mulf %103, %97 : vector<2x384xf32>
    %105 = arith.addf %51, %104 : vector<2x384xf32>
    %c36 = arith.constant 36 : index
    %106 = memref.load %arg4[%c36] : memref<96xf32, #tpu.memory_space<smem>>
    %107 = vector.broadcast %106 : f32 to vector<2x384xf32>
    %108 = arith.mulf %107, %97 : vector<2x384xf32>
    %109 = arith.addf %54, %108 : vector<2x384xf32>
    %c52 = arith.constant 52 : index
    %110 = memref.load %arg4[%c52] : memref<96xf32, #tpu.memory_space<smem>>
    %111 = vector.broadcast %110 : f32 to vector<2x384xf32>
    %112 = arith.mulf %111, %97 : vector<2x384xf32>
    %113 = arith.addf %57, %112 : vector<2x384xf32>
    %c68 = arith.constant 68 : index
    %114 = memref.load %arg4[%c68] : memref<96xf32, #tpu.memory_space<smem>>
    %115 = vector.broadcast %114 : f32 to vector<2x384xf32>
    %116 = arith.mulf %115, %97 : vector<2x384xf32>
    %117 = arith.addf %60, %116 : vector<2x384xf32>
    %c84 = arith.constant 84 : index
    %118 = memref.load %arg4[%c84] : memref<96xf32, #tpu.memory_space<smem>>
    %119 = vector.broadcast %118 : f32 to vector<2x384xf32>
    %120 = arith.mulf %119, %97 : vector<2x384xf32>
    %121 = arith.addf %63, %120 : vector<2x384xf32>
    %c12 = arith.constant 12 : index
    %122 = memref.load %arg2[%c12] : memref<24xf32, #tpu.memory_space<smem>>
    %c0_40 = arith.constant 0 : index
    %c0_41 = arith.constant 0 : index
    %123 = vector.load %arg1[%c0_40, %c0_41] : memref<40x384xf32, #tpu.memory_space<vmem>>, vector<2x384xf32>
    %124 = vector.broadcast %122 : f32 to vector<2x384xf32>
    %125 = arith.mulf %124, %123 : vector<2x384xf32>
    %c13 = arith.constant 13 : index
    %126 = memref.load %arg2[%c13] : memref<24xf32, #tpu.memory_space<smem>>
    %c8_42 = arith.constant 8 : index
    %c0_43 = arith.constant 0 : index
    %127 = vector.load %arg1[%c8_42, %c0_43] : memref<40x384xf32, #tpu.memory_space<vmem>>, vector<2x384xf32>
    %128 = vector.broadcast %126 : f32 to vector<2x384xf32>
    %129 = arith.mulf %128, %127 : vector<2x384xf32>
    %130 = arith.addf %125, %129 : vector<2x384xf32>
    %c14 = arith.constant 14 : index
    %131 = memref.load %arg2[%c14] : memref<24xf32, #tpu.memory_space<smem>>
    %c16_44 = arith.constant 16 : index
    %c0_45 = arith.constant 0 : index
    %132 = vector.load %arg1[%c16_44, %c0_45] : memref<40x384xf32, #tpu.memory_space<vmem>>, vector<2x384xf32>
    %133 = vector.broadcast %131 : f32 to vector<2x384xf32>
    %134 = arith.mulf %133, %132 : vector<2x384xf32>
    %135 = arith.addf %130, %134 : vector<2x384xf32>
    %c15 = arith.constant 15 : index
    %136 = memref.load %arg2[%c15] : memref<24xf32, #tpu.memory_space<smem>>
    %c2_46 = arith.constant 2 : index
    %c0_47 = arith.constant 0 : index
    %137 = vector.load %arg1[%c2_46, %c0_47] : memref<40x384xf32, #tpu.memory_space<vmem>>, vector<2x384xf32>
    %138 = vector.broadcast %136 : f32 to vector<2x384xf32>
    %139 = arith.mulf %138, %137 : vector<2x384xf32>
    %140 = arith.addf %135, %139 : vector<2x384xf32>
    %c16_48 = arith.constant 16 : index
    %141 = memref.load %arg2[%c16_48] : memref<24xf32, #tpu.memory_space<smem>>
    %c10_49 = arith.constant 10 : index
    %c0_50 = arith.constant 0 : index
    %142 = vector.load %arg1[%c10_49, %c0_50] : memref<40x384xf32, #tpu.memory_space<vmem>>, vector<2x384xf32>
    %143 = vector.broadcast %141 : f32 to vector<2x384xf32>
    %144 = arith.mulf %143, %142 : vector<2x384xf32>
    %145 = arith.addf %140, %144 : vector<2x384xf32>
    %c17 = arith.constant 17 : index
    %146 = memref.load %arg2[%c17] : memref<24xf32, #tpu.memory_space<smem>>
    %c18_51 = arith.constant 18 : index
    %c0_52 = arith.constant 0 : index
    %147 = vector.load %arg1[%c18_51, %c0_52] : memref<40x384xf32, #tpu.memory_space<vmem>>, vector<2x384xf32>
    %148 = vector.broadcast %146 : f32 to vector<2x384xf32>
    %149 = arith.mulf %148, %147 : vector<2x384xf32>
    %150 = arith.addf %145, %149 : vector<2x384xf32>
    %c2_53 = arith.constant 2 : index
    %151 = memref.load %arg3[%c2_53] : memref<4xf32, #tpu.memory_space<smem>>
    %152 = vector.broadcast %151 : f32 to vector<2x384xf32>
    %153 = arith.addf %150, %152 : vector<2x384xf32>
    %cst_54 = arith.constant 0.000000e+00 : f32
    %154 = vector.broadcast %cst_54 : f32 to vector<2x384xf32>
    %155 = arith.maximumf %153, %154 : vector<2x384xf32>
    %c8_55 = arith.constant 8 : index
    %156 = memref.load %arg4[%c8_55] : memref<96xf32, #tpu.memory_space<smem>>
    %157 = vector.broadcast %156 : f32 to vector<2x384xf32>
    %158 = arith.mulf %157, %155 : vector<2x384xf32>
    %159 = arith.addf %101, %158 : vector<2x384xf32>
    %c24 = arith.constant 24 : index
    %160 = memref.load %arg4[%c24] : memref<96xf32, #tpu.memory_space<smem>>
    %161 = vector.broadcast %160 : f32 to vector<2x384xf32>
    %162 = arith.mulf %161, %155 : vector<2x384xf32>
    %163 = arith.addf %105, %162 : vector<2x384xf32>
    %c40 = arith.constant 40 : index
    %164 = memref.load %arg4[%c40] : memref<96xf32, #tpu.memory_space<smem>>
    %165 = vector.broadcast %164 : f32 to vector<2x384xf32>
    %166 = arith.mulf %165, %155 : vector<2x384xf32>
    %167 = arith.addf %109, %166 : vector<2x384xf32>
    %c56 = arith.constant 56 : index
    %168 = memref.load %arg4[%c56] : memref<96xf32, #tpu.memory_space<smem>>
    %169 = vector.broadcast %168 : f32 to vector<2x384xf32>
    %170 = arith.mulf %169, %155 : vector<2x384xf32>
    %171 = arith.addf %113, %170 : vector<2x384xf32>
    %c72 = arith.constant 72 : index
    %172 = memref.load %arg4[%c72] : memref<96xf32, #tpu.memory_space<smem>>
    %173 = vector.broadcast %172 : f32 to vector<2x384xf32>
    %174 = arith.mulf %173, %155 : vector<2x384xf32>
    %175 = arith.addf %117, %174 : vector<2x384xf32>
    %c88 = arith.constant 88 : index
    %176 = memref.load %arg4[%c88] : memref<96xf32, #tpu.memory_space<smem>>
    %177 = vector.broadcast %176 : f32 to vector<2x384xf32>
    %178 = arith.mulf %177, %155 : vector<2x384xf32>
    %179 = arith.addf %121, %178 : vector<2x384xf32>
    %c18_56 = arith.constant 18 : index
    %180 = memref.load %arg2[%c18_56] : memref<24xf32, #tpu.memory_space<smem>>
    %c0_57 = arith.constant 0 : index
    %c0_58 = arith.constant 0 : index
    %181 = vector.load %arg1[%c0_57, %c0_58] : memref<40x384xf32, #tpu.memory_space<vmem>>, vector<2x384xf32>
    %182 = vector.broadcast %180 : f32 to vector<2x384xf32>
    %183 = arith.mulf %182, %181 : vector<2x384xf32>
    %c19 = arith.constant 19 : index
    %184 = memref.load %arg2[%c19] : memref<24xf32, #tpu.memory_space<smem>>
    %c8_59 = arith.constant 8 : index
    %c0_60 = arith.constant 0 : index
    %185 = vector.load %arg1[%c8_59, %c0_60] : memref<40x384xf32, #tpu.memory_space<vmem>>, vector<2x384xf32>
    %186 = vector.broadcast %184 : f32 to vector<2x384xf32>
    %187 = arith.mulf %186, %185 : vector<2x384xf32>
    %188 = arith.addf %183, %187 : vector<2x384xf32>
    %c20_61 = arith.constant 20 : index
    %189 = memref.load %arg2[%c20_61] : memref<24xf32, #tpu.memory_space<smem>>
    %c16_62 = arith.constant 16 : index
    %c0_63 = arith.constant 0 : index
    %190 = vector.load %arg1[%c16_62, %c0_63] : memref<40x384xf32, #tpu.memory_space<vmem>>, vector<2x384xf32>
    %191 = vector.broadcast %189 : f32 to vector<2x384xf32>
    %192 = arith.mulf %191, %190 : vector<2x384xf32>
    %193 = arith.addf %188, %192 : vector<2x384xf32>
    %c21 = arith.constant 21 : index
    %194 = memref.load %arg2[%c21] : memref<24xf32, #tpu.memory_space<smem>>
    %c2_64 = arith.constant 2 : index
    %c0_65 = arith.constant 0 : index
    %195 = vector.load %arg1[%c2_64, %c0_65] : memref<40x384xf32, #tpu.memory_space<vmem>>, vector<2x384xf32>
    %196 = vector.broadcast %194 : f32 to vector<2x384xf32>
    %197 = arith.mulf %196, %195 : vector<2x384xf32>
    %198 = arith.addf %193, %197 : vector<2x384xf32>
    %c22 = arith.constant 22 : index
    %199 = memref.load %arg2[%c22] : memref<24xf32, #tpu.memory_space<smem>>
    %c10_66 = arith.constant 10 : index
    %c0_67 = arith.constant 0 : index
    %200 = vector.load %arg1[%c10_66, %c0_67] : memref<40x384xf32, #tpu.memory_space<vmem>>, vector<2x384xf32>
    %201 = vector.broadcast %199 : f32 to vector<2x384xf32>
    %202 = arith.mulf %201, %200 : vector<2x384xf32>
    %203 = arith.addf %198, %202 : vector<2x384xf32>
    %c23 = arith.constant 23 : index
    %204 = memref.load %arg2[%c23] : memref<24xf32, #tpu.memory_space<smem>>
    %c18_68 = arith.constant 18 : index
    %c0_69 = arith.constant 0 : index
    %205 = vector.load %arg1[%c18_68, %c0_69] : memref<40x384xf32, #tpu.memory_space<vmem>>, vector<2x384xf32>
    %206 = vector.broadcast %204 : f32 to vector<2x384xf32>
    %207 = arith.mulf %206, %205 : vector<2x384xf32>
    %208 = arith.addf %203, %207 : vector<2x384xf32>
    %c3_70 = arith.constant 3 : index
    %209 = memref.load %arg3[%c3_70] : memref<4xf32, #tpu.memory_space<smem>>
    %210 = vector.broadcast %209 : f32 to vector<2x384xf32>
    %211 = arith.addf %208, %210 : vector<2x384xf32>
    %cst_71 = arith.constant 0.000000e+00 : f32
    %212 = vector.broadcast %cst_71 : f32 to vector<2x384xf32>
    %213 = arith.maximumf %211, %212 : vector<2x384xf32>
    %c12_72 = arith.constant 12 : index
    %214 = memref.load %arg4[%c12_72] : memref<96xf32, #tpu.memory_space<smem>>
    %215 = vector.broadcast %214 : f32 to vector<2x384xf32>
    %216 = arith.mulf %215, %213 : vector<2x384xf32>
    %217 = arith.addf %159, %216 : vector<2x384xf32>
    %c28 = arith.constant 28 : index
    %218 = memref.load %arg4[%c28] : memref<96xf32, #tpu.memory_space<smem>>
    %219 = vector.broadcast %218 : f32 to vector<2x384xf32>
    %220 = arith.mulf %219, %213 : vector<2x384xf32>
    %221 = arith.addf %163, %220 : vector<2x384xf32>
    %c44 = arith.constant 44 : index
    %222 = memref.load %arg4[%c44] : memref<96xf32, #tpu.memory_space<smem>>
    %223 = vector.broadcast %222 : f32 to vector<2x384xf32>
    %224 = arith.mulf %223, %213 : vector<2x384xf32>
    %225 = arith.addf %167, %224 : vector<2x384xf32>
    %c60 = arith.constant 60 : index
    %226 = memref.load %arg4[%c60] : memref<96xf32, #tpu.memory_space<smem>>
    %227 = vector.broadcast %226 : f32 to vector<2x384xf32>
    %228 = arith.mulf %227, %213 : vector<2x384xf32>
    %229 = arith.addf %171, %228 : vector<2x384xf32>
    %c76 = arith.constant 76 : index
    %230 = memref.load %arg4[%c76] : memref<96xf32, #tpu.memory_space<smem>>
    %231 = vector.broadcast %230 : f32 to vector<2x384xf32>
    %232 = arith.mulf %231, %213 : vector<2x384xf32>
    %233 = arith.addf %175, %232 : vector<2x384xf32>
    %c92 = arith.constant 92 : index
    %234 = memref.load %arg4[%c92] : memref<96xf32, #tpu.memory_space<smem>>
    %235 = vector.broadcast %234 : f32 to vector<2x384xf32>
    %236 = arith.mulf %235, %213 : vector<2x384xf32>
    %237 = arith.addf %179, %236 : vector<2x384xf32>
    %c0_73 = arith.constant 0 : index
    %238 = memref.load %arg2[%c0_73] : memref<24xf32, #tpu.memory_space<smem>>
    %c4_74 = arith.constant 4 : index
    %c0_75 = arith.constant 0 : index
    %239 = vector.load %arg1[%c4_74, %c0_75] : memref<40x384xf32, #tpu.memory_space<vmem>>, vector<2x384xf32>
    %240 = vector.broadcast %238 : f32 to vector<2x384xf32>
    %241 = arith.mulf %240, %239 : vector<2x384xf32>
    %c1_76 = arith.constant 1 : index
    %242 = memref.load %arg2[%c1_76] : memref<24xf32, #tpu.memory_space<smem>>
    %c12_77 = arith.constant 12 : index
    %c0_78 = arith.constant 0 : index
    %243 = vector.load %arg1[%c12_77, %c0_78] : memref<40x384xf32, #tpu.memory_space<vmem>>, vector<2x384xf32>
    %244 = vector.broadcast %242 : f32 to vector<2x384xf32>
    %245 = arith.mulf %244, %243 : vector<2x384xf32>
    %246 = arith.addf %241, %245 : vector<2x384xf32>
    %c2_79 = arith.constant 2 : index
    %247 = memref.load %arg2[%c2_79] : memref<24xf32, #tpu.memory_space<smem>>
    %c20_80 = arith.constant 20 : index
    %c0_81 = arith.constant 0 : index
    %248 = vector.load %arg1[%c20_80, %c0_81] : memref<40x384xf32, #tpu.memory_space<vmem>>, vector<2x384xf32>
    %249 = vector.broadcast %247 : f32 to vector<2x384xf32>
    %250 = arith.mulf %249, %248 : vector<2x384xf32>
    %251 = arith.addf %246, %250 : vector<2x384xf32>
    %c3_82 = arith.constant 3 : index
    %252 = memref.load %arg2[%c3_82] : memref<24xf32, #tpu.memory_space<smem>>
    %c6_83 = arith.constant 6 : index
    %c0_84 = arith.constant 0 : index
    %253 = vector.load %arg1[%c6_83, %c0_84] : memref<40x384xf32, #tpu.memory_space<vmem>>, vector<2x384xf32>
    %254 = vector.broadcast %252 : f32 to vector<2x384xf32>
    %255 = arith.mulf %254, %253 : vector<2x384xf32>
    %256 = arith.addf %251, %255 : vector<2x384xf32>
    %c4_85 = arith.constant 4 : index
    %257 = memref.load %arg2[%c4_85] : memref<24xf32, #tpu.memory_space<smem>>
    %c14_86 = arith.constant 14 : index
    %c0_87 = arith.constant 0 : index
    %258 = vector.load %arg1[%c14_86, %c0_87] : memref<40x384xf32, #tpu.memory_space<vmem>>, vector<2x384xf32>
    %259 = vector.broadcast %257 : f32 to vector<2x384xf32>
    %260 = arith.mulf %259, %258 : vector<2x384xf32>
    %261 = arith.addf %256, %260 : vector<2x384xf32>
    %c5_88 = arith.constant 5 : index
    %262 = memref.load %arg2[%c5_88] : memref<24xf32, #tpu.memory_space<smem>>
    %c22_89 = arith.constant 22 : index
    %c0_90 = arith.constant 0 : index
    %263 = vector.load %arg1[%c22_89, %c0_90] : memref<40x384xf32, #tpu.memory_space<vmem>>, vector<2x384xf32>
    %264 = vector.broadcast %262 : f32 to vector<2x384xf32>
    %265 = arith.mulf %264, %263 : vector<2x384xf32>
    %266 = arith.addf %261, %265 : vector<2x384xf32>
    %c0_91 = arith.constant 0 : index
    %267 = memref.load %arg3[%c0_91] : memref<4xf32, #tpu.memory_space<smem>>
    %268 = vector.broadcast %267 : f32 to vector<2x384xf32>
    %269 = arith.addf %266, %268 : vector<2x384xf32>
    %cst_92 = arith.constant 0.000000e+00 : f32
    %270 = vector.broadcast %cst_92 : f32 to vector<2x384xf32>
    %271 = arith.maximumf %269, %270 : vector<2x384xf32>
    %c2_93 = arith.constant 2 : index
    %272 = memref.load %arg4[%c2_93] : memref<96xf32, #tpu.memory_space<smem>>
    %273 = vector.broadcast %272 : f32 to vector<2x384xf32>
    %274 = arith.mulf %273, %271 : vector<2x384xf32>
    %275 = arith.addf %217, %274 : vector<2x384xf32>
    %c18_94 = arith.constant 18 : index
    %276 = memref.load %arg4[%c18_94] : memref<96xf32, #tpu.memory_space<smem>>
    %277 = vector.broadcast %276 : f32 to vector<2x384xf32>
    %278 = arith.mulf %277, %271 : vector<2x384xf32>
    %279 = arith.addf %221, %278 : vector<2x384xf32>
    %c34 = arith.constant 34 : index
    %280 = memref.load %arg4[%c34] : memref<96xf32, #tpu.memory_space<smem>>
    %281 = vector.broadcast %280 : f32 to vector<2x384xf32>
    %282 = arith.mulf %281, %271 : vector<2x384xf32>
    %283 = arith.addf %225, %282 : vector<2x384xf32>
    %c50 = arith.constant 50 : index
    %284 = memref.load %arg4[%c50] : memref<96xf32, #tpu.memory_space<smem>>
    %285 = vector.broadcast %284 : f32 to vector<2x384xf32>
    %286 = arith.mulf %285, %271 : vector<2x384xf32>
    %287 = arith.addf %229, %286 : vector<2x384xf32>
    %c66 = arith.constant 66 : index
    %288 = memref.load %arg4[%c66] : memref<96xf32, #tpu.memory_space<smem>>
    %289 = vector.broadcast %288 : f32 to vector<2x384xf32>
    %290 = arith.mulf %289, %271 : vector<2x384xf32>
    %291 = arith.addf %233, %290 : vector<2x384xf32>
    %c82 = arith.constant 82 : index
    %292 = memref.load %arg4[%c82] : memref<96xf32, #tpu.memory_space<smem>>
    %293 = vector.broadcast %292 : f32 to vector<2x384xf32>
    %294 = arith.mulf %293, %271 : vector<2x384xf32>
    %295 = arith.addf %237, %294 : vector<2x384xf32>
    %c6_95 = arith.constant 6 : index
    %296 = memref.load %arg2[%c6_95] : memref<24xf32, #tpu.memory_space<smem>>
    %c4_96 = arith.constant 4 : index
    %c0_97 = arith.constant 0 : index
    %297 = vector.load %arg1[%c4_96, %c0_97] : memref<40x384xf32, #tpu.memory_space<vmem>>, vector<2x384xf32>
    %298 = vector.broadcast %296 : f32 to vector<2x384xf32>
    %299 = arith.mulf %298, %297 : vector<2x384xf32>
    %c7_98 = arith.constant 7 : index
    %300 = memref.load %arg2[%c7_98] : memref<24xf32, #tpu.memory_space<smem>>
    %c12_99 = arith.constant 12 : index
    %c0_100 = arith.constant 0 : index
    %301 = vector.load %arg1[%c12_99, %c0_100] : memref<40x384xf32, #tpu.memory_space<vmem>>, vector<2x384xf32>
    %302 = vector.broadcast %300 : f32 to vector<2x384xf32>
    %303 = arith.mulf %302, %301 : vector<2x384xf32>
    %304 = arith.addf %299, %303 : vector<2x384xf32>
    %c8_101 = arith.constant 8 : index
    %305 = memref.load %arg2[%c8_101] : memref<24xf32, #tpu.memory_space<smem>>
    %c20_102 = arith.constant 20 : index
    %c0_103 = arith.constant 0 : index
    %306 = vector.load %arg1[%c20_102, %c0_103] : memref<40x384xf32, #tpu.memory_space<vmem>>, vector<2x384xf32>
    %307 = vector.broadcast %305 : f32 to vector<2x384xf32>
    %308 = arith.mulf %307, %306 : vector<2x384xf32>
    %309 = arith.addf %304, %308 : vector<2x384xf32>
    %c9_104 = arith.constant 9 : index
    %310 = memref.load %arg2[%c9_104] : memref<24xf32, #tpu.memory_space<smem>>
    %c6_105 = arith.constant 6 : index
    %c0_106 = arith.constant 0 : index
    %311 = vector.load %arg1[%c6_105, %c0_106] : memref<40x384xf32, #tpu.memory_space<vmem>>, vector<2x384xf32>
    %312 = vector.broadcast %310 : f32 to vector<2x384xf32>
    %313 = arith.mulf %312, %311 : vector<2x384xf32>
    %314 = arith.addf %309, %313 : vector<2x384xf32>
    %c10_107 = arith.constant 10 : index
    %315 = memref.load %arg2[%c10_107] : memref<24xf32, #tpu.memory_space<smem>>
    %c14_108 = arith.constant 14 : index
    %c0_109 = arith.constant 0 : index
    %316 = vector.load %arg1[%c14_108, %c0_109] : memref<40x384xf32, #tpu.memory_space<vmem>>, vector<2x384xf32>
    %317 = vector.broadcast %315 : f32 to vector<2x384xf32>
    %318 = arith.mulf %317, %316 : vector<2x384xf32>
    %319 = arith.addf %314, %318 : vector<2x384xf32>
    %c11_110 = arith.constant 11 : index
    %320 = memref.load %arg2[%c11_110] : memref<24xf32, #tpu.memory_space<smem>>
    %c22_111 = arith.constant 22 : index
    %c0_112 = arith.constant 0 : index
    %321 = vector.load %arg1[%c22_111, %c0_112] : memref<40x384xf32, #tpu.memory_space<vmem>>, vector<2x384xf32>
    %322 = vector.broadcast %320 : f32 to vector<2x384xf32>
    %323 = arith.mulf %322, %321 : vector<2x384xf32>
    %324 = arith.addf %319, %323 : vector<2x384xf32>
    %c1_113 = arith.constant 1 : index
    %325 = memref.load %arg3[%c1_113] : memref<4xf32, #tpu.memory_space<smem>>
    %326 = vector.broadcast %325 : f32 to vector<2x384xf32>
    %327 = arith.addf %324, %326 : vector<2x384xf32>
    %cst_114 = arith.constant 0.000000e+00 : f32
    %328 = vector.broadcast %cst_114 : f32 to vector<2x384xf32>
    %329 = arith.maximumf %327, %328 : vector<2x384xf32>
    %c6_115 = arith.constant 6 : index
    %330 = memref.load %arg4[%c6_115] : memref<96xf32, #tpu.memory_space<smem>>
    %331 = vector.broadcast %330 : f32 to vector<2x384xf32>
    %332 = arith.mulf %331, %329 : vector<2x384xf32>
    %333 = arith.addf %275, %332 : vector<2x384xf32>
    %c22_116 = arith.constant 22 : index
    %334 = memref.load %arg4[%c22_116] : memref<96xf32, #tpu.memory_space<smem>>
    %335 = vector.broadcast %334 : f32 to vector<2x384xf32>
    %336 = arith.mulf %335, %329 : vector<2x384xf32>
    %337 = arith.addf %279, %336 : vector<2x384xf32>
    %c38 = arith.constant 38 : index
    %338 = memref.load %arg4[%c38] : memref<96xf32, #tpu.memory_space<smem>>
    %339 = vector.broadcast %338 : f32 to vector<2x384xf32>
    %340 = arith.mulf %339, %329 : vector<2x384xf32>
    %341 = arith.addf %283, %340 : vector<2x384xf32>
    %c54 = arith.constant 54 : index
    %342 = memref.load %arg4[%c54] : memref<96xf32, #tpu.memory_space<smem>>
    %343 = vector.broadcast %342 : f32 to vector<2x384xf32>
    %344 = arith.mulf %343, %329 : vector<2x384xf32>
    %345 = arith.addf %287, %344 : vector<2x384xf32>
    %c70 = arith.constant 70 : index
    %346 = memref.load %arg4[%c70] : memref<96xf32, #tpu.memory_space<smem>>
    %347 = vector.broadcast %346 : f32 to vector<2x384xf32>
    %348 = arith.mulf %347, %329 : vector<2x384xf32>
    %349 = arith.addf %291, %348 : vector<2x384xf32>
    %c86 = arith.constant 86 : index
    %350 = memref.load %arg4[%c86] : memref<96xf32, #tpu.memory_space<smem>>
    %351 = vector.broadcast %350 : f32 to vector<2x384xf32>
    %352 = arith.mulf %351, %329 : vector<2x384xf32>
    %353 = arith.addf %295, %352 : vector<2x384xf32>
    %c12_117 = arith.constant 12 : index
    %354 = memref.load %arg2[%c12_117] : memref<24xf32, #tpu.memory_space<smem>>
    %c4_118 = arith.constant 4 : index
    %c0_119 = arith.constant 0 : index
    %355 = vector.load %arg1[%c4_118, %c0_119] : memref<40x384xf32, #tpu.memory_space<vmem>>, vector<2x384xf32>
    %356 = vector.broadcast %354 : f32 to vector<2x384xf32>
    %357 = arith.mulf %356, %355 : vector<2x384xf32>
    %c13_120 = arith.constant 13 : index
    %358 = memref.load %arg2[%c13_120] : memref<24xf32, #tpu.memory_space<smem>>
    %c12_121 = arith.constant 12 : index
    %c0_122 = arith.constant 0 : index
    %359 = vector.load %arg1[%c12_121, %c0_122] : memref<40x384xf32, #tpu.memory_space<vmem>>, vector<2x384xf32>
    %360 = vector.broadcast %358 : f32 to vector<2x384xf32>
    %361 = arith.mulf %360, %359 : vector<2x384xf32>
    %362 = arith.addf %357, %361 : vector<2x384xf32>
    %c14_123 = arith.constant 14 : index
    %363 = memref.load %arg2[%c14_123] : memref<24xf32, #tpu.memory_space<smem>>
    %c20_124 = arith.constant 20 : index
    %c0_125 = arith.constant 0 : index
    %364 = vector.load %arg1[%c20_124, %c0_125] : memref<40x384xf32, #tpu.memory_space<vmem>>, vector<2x384xf32>
    %365 = vector.broadcast %363 : f32 to vector<2x384xf32>
    %366 = arith.mulf %365, %364 : vector<2x384xf32>
    %367 = arith.addf %362, %366 : vector<2x384xf32>
    %c15_126 = arith.constant 15 : index
    %368 = memref.load %arg2[%c15_126] : memref<24xf32, #tpu.memory_space<smem>>
    %c6_127 = arith.constant 6 : index
    %c0_128 = arith.constant 0 : index
    %369 = vector.load %arg1[%c6_127, %c0_128] : memref<40x384xf32, #tpu.memory_space<vmem>>, vector<2x384xf32>
    %370 = vector.broadcast %368 : f32 to vector<2x384xf32>
    %371 = arith.mulf %370, %369 : vector<2x384xf32>
    %372 = arith.addf %367, %371 : vector<2x384xf32>
    %c16_129 = arith.constant 16 : index
    %373 = memref.load %arg2[%c16_129] : memref<24xf32, #tpu.memory_space<smem>>
    %c14_130 = arith.constant 14 : index
    %c0_131 = arith.constant 0 : index
    %374 = vector.load %arg1[%c14_130, %c0_131] : memref<40x384xf32, #tpu.memory_space<vmem>>, vector<2x384xf32>
    %375 = vector.broadcast %373 : f32 to vector<2x384xf32>
    %376 = arith.mulf %375, %374 : vector<2x384xf32>
    %377 = arith.addf %372, %376 : vector<2x384xf32>
    %c17_132 = arith.constant 17 : index
    %378 = memref.load %arg2[%c17_132] : memref<24xf32, #tpu.memory_space<smem>>
    %c22_133 = arith.constant 22 : index
    %c0_134 = arith.constant 0 : index
    %379 = vector.load %arg1[%c22_133, %c0_134] : memref<40x384xf32, #tpu.memory_space<vmem>>, vector<2x384xf32>
    %380 = vector.broadcast %378 : f32 to vector<2x384xf32>
    %381 = arith.mulf %380, %379 : vector<2x384xf32>
    %382 = arith.addf %377, %381 : vector<2x384xf32>
    %c2_135 = arith.constant 2 : index
    %383 = memref.load %arg3[%c2_135] : memref<4xf32, #tpu.memory_space<smem>>
    %384 = vector.broadcast %383 : f32 to vector<2x384xf32>
    %385 = arith.addf %382, %384 : vector<2x384xf32>
    %cst_136 = arith.constant 0.000000e+00 : f32
    %386 = vector.broadcast %cst_136 : f32 to vector<2x384xf32>
    %387 = arith.maximumf %385, %386 : vector<2x384xf32>
    %c10_137 = arith.constant 10 : index
    %388 = memref.load %arg4[%c10_137] : memref<96xf32, #tpu.memory_space<smem>>
    %389 = vector.broadcast %388 : f32 to vector<2x384xf32>
    %390 = arith.mulf %389, %387 : vector<2x384xf32>
    %391 = arith.addf %333, %390 : vector<2x384xf32>
    %c26 = arith.constant 26 : index
    %392 = memref.load %arg4[%c26] : memref<96xf32, #tpu.memory_space<smem>>
    %393 = vector.broadcast %392 : f32 to vector<2x384xf32>
    %394 = arith.mulf %393, %387 : vector<2x384xf32>
    %395 = arith.addf %337, %394 : vector<2x384xf32>
    %c42 = arith.constant 42 : index
    %396 = memref.load %arg4[%c42] : memref<96xf32, #tpu.memory_space<smem>>
    %397 = vector.broadcast %396 : f32 to vector<2x384xf32>
    %398 = arith.mulf %397, %387 : vector<2x384xf32>
    %399 = arith.addf %341, %398 : vector<2x384xf32>
    %c58 = arith.constant 58 : index
    %400 = memref.load %arg4[%c58] : memref<96xf32, #tpu.memory_space<smem>>
    %401 = vector.broadcast %400 : f32 to vector<2x384xf32>
    %402 = arith.mulf %401, %387 : vector<2x384xf32>
    %403 = arith.addf %345, %402 : vector<2x384xf32>
    %c74 = arith.constant 74 : index
    %404 = memref.load %arg4[%c74] : memref<96xf32, #tpu.memory_space<smem>>
    %405 = vector.broadcast %404 : f32 to vector<2x384xf32>
    %406 = arith.mulf %405, %387 : vector<2x384xf32>
    %407 = arith.addf %349, %406 : vector<2x384xf32>
    %c90 = arith.constant 90 : index
    %408 = memref.load %arg4[%c90] : memref<96xf32, #tpu.memory_space<smem>>
    %409 = vector.broadcast %408 : f32 to vector<2x384xf32>
    %410 = arith.mulf %409, %387 : vector<2x384xf32>
    %411 = arith.addf %353, %410 : vector<2x384xf32>
    %c18_138 = arith.constant 18 : index
    %412 = memref.load %arg2[%c18_138] : memref<24xf32, #tpu.memory_space<smem>>
    %c4_139 = arith.constant 4 : index
    %c0_140 = arith.constant 0 : index
    %413 = vector.load %arg1[%c4_139, %c0_140] : memref<40x384xf32, #tpu.memory_space<vmem>>, vector<2x384xf32>
    %414 = vector.broadcast %412 : f32 to vector<2x384xf32>
    %415 = arith.mulf %414, %413 : vector<2x384xf32>
    %c19_141 = arith.constant 19 : index
    %416 = memref.load %arg2[%c19_141] : memref<24xf32, #tpu.memory_space<smem>>
    %c12_142 = arith.constant 12 : index
    %c0_143 = arith.constant 0 : index
    %417 = vector.load %arg1[%c12_142, %c0_143] : memref<40x384xf32, #tpu.memory_space<vmem>>, vector<2x384xf32>
    %418 = vector.broadcast %416 : f32 to vector<2x384xf32>
    %419 = arith.mulf %418, %417 : vector<2x384xf32>
    %420 = arith.addf %415, %419 : vector<2x384xf32>
    %c20_144 = arith.constant 20 : index
    %421 = memref.load %arg2[%c20_144] : memref<24xf32, #tpu.memory_space<smem>>
    %c20_145 = arith.constant 20 : index
    %c0_146 = arith.constant 0 : index
    %422 = vector.load %arg1[%c20_145, %c0_146] : memref<40x384xf32, #tpu.memory_space<vmem>>, vector<2x384xf32>
    %423 = vector.broadcast %421 : f32 to vector<2x384xf32>
    %424 = arith.mulf %423, %422 : vector<2x384xf32>
    %425 = arith.addf %420, %424 : vector<2x384xf32>
    %c21_147 = arith.constant 21 : index
    %426 = memref.load %arg2[%c21_147] : memref<24xf32, #tpu.memory_space<smem>>
    %c6_148 = arith.constant 6 : index
    %c0_149 = arith.constant 0 : index
    %427 = vector.load %arg1[%c6_148, %c0_149] : memref<40x384xf32, #tpu.memory_space<vmem>>, vector<2x384xf32>
    %428 = vector.broadcast %426 : f32 to vector<2x384xf32>
    %429 = arith.mulf %428, %427 : vector<2x384xf32>
    %430 = arith.addf %425, %429 : vector<2x384xf32>
    %c22_150 = arith.constant 22 : index
    %431 = memref.load %arg2[%c22_150] : memref<24xf32, #tpu.memory_space<smem>>
    %c14_151 = arith.constant 14 : index
    %c0_152 = arith.constant 0 : index
    %432 = vector.load %arg1[%c14_151, %c0_152] : memref<40x384xf32, #tpu.memory_space<vmem>>, vector<2x384xf32>
    %433 = vector.broadcast %431 : f32 to vector<2x384xf32>
    %434 = arith.mulf %433, %432 : vector<2x384xf32>
    %435 = arith.addf %430, %434 : vector<2x384xf32>
    %c23_153 = arith.constant 23 : index
    %436 = memref.load %arg2[%c23_153] : memref<24xf32, #tpu.memory_space<smem>>
    %c22_154 = arith.constant 22 : index
    %c0_155 = arith.constant 0 : index
    %437 = vector.load %arg1[%c22_154, %c0_155] : memref<40x384xf32, #tpu.memory_space<vmem>>, vector<2x384xf32>
    %438 = vector.broadcast %436 : f32 to vector<2x384xf32>
    %439 = arith.mulf %438, %437 : vector<2x384xf32>
    %440 = arith.addf %435, %439 : vector<2x384xf32>
    %c3_156 = arith.constant 3 : index
    %441 = memref.load %arg3[%c3_156] : memref<4xf32, #tpu.memory_space<smem>>
    %442 = vector.broadcast %441 : f32 to vector<2x384xf32>
    %443 = arith.addf %440, %442 : vector<2x384xf32>
    %cst_157 = arith.constant 0.000000e+00 : f32
    %444 = vector.broadcast %cst_157 : f32 to vector<2x384xf32>
    %445 = arith.maximumf %443, %444 : vector<2x384xf32>
    %c14_158 = arith.constant 14 : index
    %446 = memref.load %arg4[%c14_158] : memref<96xf32, #tpu.memory_space<smem>>
    %447 = vector.broadcast %446 : f32 to vector<2x384xf32>
    %448 = arith.mulf %447, %445 : vector<2x384xf32>
    %449 = arith.addf %391, %448 : vector<2x384xf32>
    %c30 = arith.constant 30 : index
    %450 = memref.load %arg4[%c30] : memref<96xf32, #tpu.memory_space<smem>>
    %451 = vector.broadcast %450 : f32 to vector<2x384xf32>
    %452 = arith.mulf %451, %445 : vector<2x384xf32>
    %453 = arith.addf %395, %452 : vector<2x384xf32>
    %c46 = arith.constant 46 : index
    %454 = memref.load %arg4[%c46] : memref<96xf32, #tpu.memory_space<smem>>
    %455 = vector.broadcast %454 : f32 to vector<2x384xf32>
    %456 = arith.mulf %455, %445 : vector<2x384xf32>
    %457 = arith.addf %399, %456 : vector<2x384xf32>
    %c62 = arith.constant 62 : index
    %458 = memref.load %arg4[%c62] : memref<96xf32, #tpu.memory_space<smem>>
    %459 = vector.broadcast %458 : f32 to vector<2x384xf32>
    %460 = arith.mulf %459, %445 : vector<2x384xf32>
    %461 = arith.addf %403, %460 : vector<2x384xf32>
    %c78 = arith.constant 78 : index
    %462 = memref.load %arg4[%c78] : memref<96xf32, #tpu.memory_space<smem>>
    %463 = vector.broadcast %462 : f32 to vector<2x384xf32>
    %464 = arith.mulf %463, %445 : vector<2x384xf32>
    %465 = arith.addf %407, %464 : vector<2x384xf32>
    %c94 = arith.constant 94 : index
    %466 = memref.load %arg4[%c94] : memref<96xf32, #tpu.memory_space<smem>>
    %467 = vector.broadcast %466 : f32 to vector<2x384xf32>
    %468 = arith.mulf %467, %445 : vector<2x384xf32>
    %469 = arith.addf %411, %468 : vector<2x384xf32>
    %c0_159 = arith.constant 0 : index
    %470 = memref.load %arg2[%c0_159] : memref<24xf32, #tpu.memory_space<smem>>
    %c16_160 = arith.constant 16 : index
    %c0_161 = arith.constant 0 : index
    %471 = vector.load %arg1[%c16_160, %c0_161] : memref<40x384xf32, #tpu.memory_space<vmem>>, vector<2x384xf32>
    %472 = vector.broadcast %470 : f32 to vector<2x384xf32>
    %473 = arith.mulf %472, %471 : vector<2x384xf32>
    %c1_162 = arith.constant 1 : index
    %474 = memref.load %arg2[%c1_162] : memref<24xf32, #tpu.memory_space<smem>>
    %c24_163 = arith.constant 24 : index
    %c0_164 = arith.constant 0 : index
    %475 = vector.load %arg1[%c24_163, %c0_164] : memref<40x384xf32, #tpu.memory_space<vmem>>, vector<2x384xf32>
    %476 = vector.broadcast %474 : f32 to vector<2x384xf32>
    %477 = arith.mulf %476, %475 : vector<2x384xf32>
    %478 = arith.addf %473, %477 : vector<2x384xf32>
    %c2_165 = arith.constant 2 : index
    %479 = memref.load %arg2[%c2_165] : memref<24xf32, #tpu.memory_space<smem>>
    %c32_166 = arith.constant 32 : index
    %c0_167 = arith.constant 0 : index
    %480 = vector.load %arg1[%c32_166, %c0_167] : memref<40x384xf32, #tpu.memory_space<vmem>>, vector<2x384xf32>
    %481 = vector.broadcast %479 : f32 to vector<2x384xf32>
    %482 = arith.mulf %481, %480 : vector<2x384xf32>
    %483 = arith.addf %478, %482 : vector<2x384xf32>
    %c3_168 = arith.constant 3 : index
    %484 = memref.load %arg2[%c3_168] : memref<24xf32, #tpu.memory_space<smem>>
    %c18_169 = arith.constant 18 : index
    %c0_170 = arith.constant 0 : index
    %485 = vector.load %arg1[%c18_169, %c0_170] : memref<40x384xf32, #tpu.memory_space<vmem>>, vector<2x384xf32>
    %486 = vector.broadcast %484 : f32 to vector<2x384xf32>
    %487 = arith.mulf %486, %485 : vector<2x384xf32>
    %488 = arith.addf %483, %487 : vector<2x384xf32>
    %c4_171 = arith.constant 4 : index
    %489 = memref.load %arg2[%c4_171] : memref<24xf32, #tpu.memory_space<smem>>
    %c26_172 = arith.constant 26 : index
    %c0_173 = arith.constant 0 : index
    %490 = vector.load %arg1[%c26_172, %c0_173] : memref<40x384xf32, #tpu.memory_space<vmem>>, vector<2x384xf32>
    %491 = vector.broadcast %489 : f32 to vector<2x384xf32>
    %492 = arith.mulf %491, %490 : vector<2x384xf32>
    %493 = arith.addf %488, %492 : vector<2x384xf32>
    %c5_174 = arith.constant 5 : index
    %494 = memref.load %arg2[%c5_174] : memref<24xf32, #tpu.memory_space<smem>>
    %c34_175 = arith.constant 34 : index
    %c0_176 = arith.constant 0 : index
    %495 = vector.load %arg1[%c34_175, %c0_176] : memref<40x384xf32, #tpu.memory_space<vmem>>, vector<2x384xf32>
    %496 = vector.broadcast %494 : f32 to vector<2x384xf32>
    %497 = arith.mulf %496, %495 : vector<2x384xf32>
    %498 = arith.addf %493, %497 : vector<2x384xf32>
    %c0_177 = arith.constant 0 : index
    %499 = memref.load %arg3[%c0_177] : memref<4xf32, #tpu.memory_space<smem>>
    %500 = vector.broadcast %499 : f32 to vector<2x384xf32>
    %501 = arith.addf %498, %500 : vector<2x384xf32>
    %cst_178 = arith.constant 0.000000e+00 : f32
    %502 = vector.broadcast %cst_178 : f32 to vector<2x384xf32>
    %503 = arith.maximumf %501, %502 : vector<2x384xf32>
    %c1_179 = arith.constant 1 : index
    %504 = memref.load %arg4[%c1_179] : memref<96xf32, #tpu.memory_space<smem>>
    %505 = vector.broadcast %504 : f32 to vector<2x384xf32>
    %506 = arith.mulf %505, %503 : vector<2x384xf32>
    %507 = arith.addf %449, %506 : vector<2x384xf32>
    %c17_180 = arith.constant 17 : index
    %508 = memref.load %arg4[%c17_180] : memref<96xf32, #tpu.memory_space<smem>>
    %509 = vector.broadcast %508 : f32 to vector<2x384xf32>
    %510 = arith.mulf %509, %503 : vector<2x384xf32>
    %511 = arith.addf %453, %510 : vector<2x384xf32>
    %c33 = arith.constant 33 : index
    %512 = memref.load %arg4[%c33] : memref<96xf32, #tpu.memory_space<smem>>
    %513 = vector.broadcast %512 : f32 to vector<2x384xf32>
    %514 = arith.mulf %513, %503 : vector<2x384xf32>
    %515 = arith.addf %457, %514 : vector<2x384xf32>
    %c49 = arith.constant 49 : index
    %516 = memref.load %arg4[%c49] : memref<96xf32, #tpu.memory_space<smem>>
    %517 = vector.broadcast %516 : f32 to vector<2x384xf32>
    %518 = arith.mulf %517, %503 : vector<2x384xf32>
    %519 = arith.addf %461, %518 : vector<2x384xf32>
    %c65 = arith.constant 65 : index
    %520 = memref.load %arg4[%c65] : memref<96xf32, #tpu.memory_space<smem>>
    %521 = vector.broadcast %520 : f32 to vector<2x384xf32>
    %522 = arith.mulf %521, %503 : vector<2x384xf32>
    %523 = arith.addf %465, %522 : vector<2x384xf32>
    %c81 = arith.constant 81 : index
    %524 = memref.load %arg4[%c81] : memref<96xf32, #tpu.memory_space<smem>>
    %525 = vector.broadcast %524 : f32 to vector<2x384xf32>
    %526 = arith.mulf %525, %503 : vector<2x384xf32>
    %527 = arith.addf %469, %526 : vector<2x384xf32>
    %c6_181 = arith.constant 6 : index
    %528 = memref.load %arg2[%c6_181] : memref<24xf32, #tpu.memory_space<smem>>
    %c16_182 = arith.constant 16 : index
    %c0_183 = arith.constant 0 : index
    %529 = vector.load %arg1[%c16_182, %c0_183] : memref<40x384xf32, #tpu.memory_space<vmem>>, vector<2x384xf32>
    %530 = vector.broadcast %528 : f32 to vector<2x384xf32>
    %531 = arith.mulf %530, %529 : vector<2x384xf32>
    %c7_184 = arith.constant 7 : index
    %532 = memref.load %arg2[%c7_184] : memref<24xf32, #tpu.memory_space<smem>>
    %c24_185 = arith.constant 24 : index
    %c0_186 = arith.constant 0 : index
    %533 = vector.load %arg1[%c24_185, %c0_186] : memref<40x384xf32, #tpu.memory_space<vmem>>, vector<2x384xf32>
    %534 = vector.broadcast %532 : f32 to vector<2x384xf32>
    %535 = arith.mulf %534, %533 : vector<2x384xf32>
    %536 = arith.addf %531, %535 : vector<2x384xf32>
    %c8_187 = arith.constant 8 : index
    %537 = memref.load %arg2[%c8_187] : memref<24xf32, #tpu.memory_space<smem>>
    %c32_188 = arith.constant 32 : index
    %c0_189 = arith.constant 0 : index
    %538 = vector.load %arg1[%c32_188, %c0_189] : memref<40x384xf32, #tpu.memory_space<vmem>>, vector<2x384xf32>
    %539 = vector.broadcast %537 : f32 to vector<2x384xf32>
    %540 = arith.mulf %539, %538 : vector<2x384xf32>
    %541 = arith.addf %536, %540 : vector<2x384xf32>
    %c9_190 = arith.constant 9 : index
    %542 = memref.load %arg2[%c9_190] : memref<24xf32, #tpu.memory_space<smem>>
    %c18_191 = arith.constant 18 : index
    %c0_192 = arith.constant 0 : index
    %543 = vector.load %arg1[%c18_191, %c0_192] : memref<40x384xf32, #tpu.memory_space<vmem>>, vector<2x384xf32>
    %544 = vector.broadcast %542 : f32 to vector<2x384xf32>
    %545 = arith.mulf %544, %543 : vector<2x384xf32>
    %546 = arith.addf %541, %545 : vector<2x384xf32>
    %c10_193 = arith.constant 10 : index
    %547 = memref.load %arg2[%c10_193] : memref<24xf32, #tpu.memory_space<smem>>
    %c26_194 = arith.constant 26 : index
    %c0_195 = arith.constant 0 : index
    %548 = vector.load %arg1[%c26_194, %c0_195] : memref<40x384xf32, #tpu.memory_space<vmem>>, vector<2x384xf32>
    %549 = vector.broadcast %547 : f32 to vector<2x384xf32>
    %550 = arith.mulf %549, %548 : vector<2x384xf32>
    %551 = arith.addf %546, %550 : vector<2x384xf32>
    %c11_196 = arith.constant 11 : index
    %552 = memref.load %arg2[%c11_196] : memref<24xf32, #tpu.memory_space<smem>>
    %c34_197 = arith.constant 34 : index
    %c0_198 = arith.constant 0 : index
    %553 = vector.load %arg1[%c34_197, %c0_198] : memref<40x384xf32, #tpu.memory_space<vmem>>, vector<2x384xf32>
    %554 = vector.broadcast %552 : f32 to vector<2x384xf32>
    %555 = arith.mulf %554, %553 : vector<2x384xf32>
    %556 = arith.addf %551, %555 : vector<2x384xf32>
    %c1_199 = arith.constant 1 : index
    %557 = memref.load %arg3[%c1_199] : memref<4xf32, #tpu.memory_space<smem>>
    %558 = vector.broadcast %557 : f32 to vector<2x384xf32>
    %559 = arith.addf %556, %558 : vector<2x384xf32>
    %cst_200 = arith.constant 0.000000e+00 : f32
    %560 = vector.broadcast %cst_200 : f32 to vector<2x384xf32>
    %561 = arith.maximumf %559, %560 : vector<2x384xf32>
    %c5_201 = arith.constant 5 : index
    %562 = memref.load %arg4[%c5_201] : memref<96xf32, #tpu.memory_space<smem>>
    %563 = vector.broadcast %562 : f32 to vector<2x384xf32>
    %564 = arith.mulf %563, %561 : vector<2x384xf32>
    %565 = arith.addf %507, %564 : vector<2x384xf32>
    %c21_202 = arith.constant 21 : index
    %566 = memref.load %arg4[%c21_202] : memref<96xf32, #tpu.memory_space<smem>>
    %567 = vector.broadcast %566 : f32 to vector<2x384xf32>
    %568 = arith.mulf %567, %561 : vector<2x384xf32>
    %569 = arith.addf %511, %568 : vector<2x384xf32>
    %c37 = arith.constant 37 : index
    %570 = memref.load %arg4[%c37] : memref<96xf32, #tpu.memory_space<smem>>
    %571 = vector.broadcast %570 : f32 to vector<2x384xf32>
    %572 = arith.mulf %571, %561 : vector<2x384xf32>
    %573 = arith.addf %515, %572 : vector<2x384xf32>
    %c53 = arith.constant 53 : index
    %574 = memref.load %arg4[%c53] : memref<96xf32, #tpu.memory_space<smem>>
    %575 = vector.broadcast %574 : f32 to vector<2x384xf32>
    %576 = arith.mulf %575, %561 : vector<2x384xf32>
    %577 = arith.addf %519, %576 : vector<2x384xf32>
    %c69 = arith.constant 69 : index
    %578 = memref.load %arg4[%c69] : memref<96xf32, #tpu.memory_space<smem>>
    %579 = vector.broadcast %578 : f32 to vector<2x384xf32>
    %580 = arith.mulf %579, %561 : vector<2x384xf32>
    %581 = arith.addf %523, %580 : vector<2x384xf32>
    %c85 = arith.constant 85 : index
    %582 = memref.load %arg4[%c85] : memref<96xf32, #tpu.memory_space<smem>>
    %583 = vector.broadcast %582 : f32 to vector<2x384xf32>
    %584 = arith.mulf %583, %561 : vector<2x384xf32>
    %585 = arith.addf %527, %584 : vector<2x384xf32>
    %c12_203 = arith.constant 12 : index
    %586 = memref.load %arg2[%c12_203] : memref<24xf32, #tpu.memory_space<smem>>
    %c16_204 = arith.constant 16 : index
    %c0_205 = arith.constant 0 : index
    %587 = vector.load %arg1[%c16_204, %c0_205] : memref<40x384xf32, #tpu.memory_space<vmem>>, vector<2x384xf32>
    %588 = vector.broadcast %586 : f32 to vector<2x384xf32>
    %589 = arith.mulf %588, %587 : vector<2x384xf32>
    %c13_206 = arith.constant 13 : index
    %590 = memref.load %arg2[%c13_206] : memref<24xf32, #tpu.memory_space<smem>>
    %c24_207 = arith.constant 24 : index
    %c0_208 = arith.constant 0 : index
    %591 = vector.load %arg1[%c24_207, %c0_208] : memref<40x384xf32, #tpu.memory_space<vmem>>, vector<2x384xf32>
    %592 = vector.broadcast %590 : f32 to vector<2x384xf32>
    %593 = arith.mulf %592, %591 : vector<2x384xf32>
    %594 = arith.addf %589, %593 : vector<2x384xf32>
    %c14_209 = arith.constant 14 : index
    %595 = memref.load %arg2[%c14_209] : memref<24xf32, #tpu.memory_space<smem>>
    %c32_210 = arith.constant 32 : index
    %c0_211 = arith.constant 0 : index
    %596 = vector.load %arg1[%c32_210, %c0_211] : memref<40x384xf32, #tpu.memory_space<vmem>>, vector<2x384xf32>
    %597 = vector.broadcast %595 : f32 to vector<2x384xf32>
    %598 = arith.mulf %597, %596 : vector<2x384xf32>
    %599 = arith.addf %594, %598 : vector<2x384xf32>
    %c15_212 = arith.constant 15 : index
    %600 = memref.load %arg2[%c15_212] : memref<24xf32, #tpu.memory_space<smem>>
    %c18_213 = arith.constant 18 : index
    %c0_214 = arith.constant 0 : index
    %601 = vector.load %arg1[%c18_213, %c0_214] : memref<40x384xf32, #tpu.memory_space<vmem>>, vector<2x384xf32>
    %602 = vector.broadcast %600 : f32 to vector<2x384xf32>
    %603 = arith.mulf %602, %601 : vector<2x384xf32>
    %604 = arith.addf %599, %603 : vector<2x384xf32>
    %c16_215 = arith.constant 16 : index
    %605 = memref.load %arg2[%c16_215] : memref<24xf32, #tpu.memory_space<smem>>
    %c26_216 = arith.constant 26 : index
    %c0_217 = arith.constant 0 : index
    %606 = vector.load %arg1[%c26_216, %c0_217] : memref<40x384xf32, #tpu.memory_space<vmem>>, vector<2x384xf32>
    %607 = vector.broadcast %605 : f32 to vector<2x384xf32>
    %608 = arith.mulf %607, %606 : vector<2x384xf32>
    %609 = arith.addf %604, %608 : vector<2x384xf32>
    %c17_218 = arith.constant 17 : index
    %610 = memref.load %arg2[%c17_218] : memref<24xf32, #tpu.memory_space<smem>>
    %c34_219 = arith.constant 34 : index
    %c0_220 = arith.constant 0 : index
    %611 = vector.load %arg1[%c34_219, %c0_220] : memref<40x384xf32, #tpu.memory_space<vmem>>, vector<2x384xf32>
    %612 = vector.broadcast %610 : f32 to vector<2x384xf32>
    %613 = arith.mulf %612, %611 : vector<2x384xf32>
    %614 = arith.addf %609, %613 : vector<2x384xf32>
    %c2_221 = arith.constant 2 : index
    %615 = memref.load %arg3[%c2_221] : memref<4xf32, #tpu.memory_space<smem>>
    %616 = vector.broadcast %615 : f32 to vector<2x384xf32>
    %617 = arith.addf %614, %616 : vector<2x384xf32>
    %cst_222 = arith.constant 0.000000e+00 : f32
    %618 = vector.broadcast %cst_222 : f32 to vector<2x384xf32>
    %619 = arith.maximumf %617, %618 : vector<2x384xf32>
    %c9_223 = arith.constant 9 : index
    %620 = memref.load %arg4[%c9_223] : memref<96xf32, #tpu.memory_space<smem>>
    %621 = vector.broadcast %620 : f32 to vector<2x384xf32>
    %622 = arith.mulf %621, %619 : vector<2x384xf32>
    %623 = arith.addf %565, %622 : vector<2x384xf32>
    %c25 = arith.constant 25 : index
    %624 = memref.load %arg4[%c25] : memref<96xf32, #tpu.memory_space<smem>>
    %625 = vector.broadcast %624 : f32 to vector<2x384xf32>
    %626 = arith.mulf %625, %619 : vector<2x384xf32>
    %627 = arith.addf %569, %626 : vector<2x384xf32>
    %c41 = arith.constant 41 : index
    %628 = memref.load %arg4[%c41] : memref<96xf32, #tpu.memory_space<smem>>
    %629 = vector.broadcast %628 : f32 to vector<2x384xf32>
    %630 = arith.mulf %629, %619 : vector<2x384xf32>
    %631 = arith.addf %573, %630 : vector<2x384xf32>
    %c57 = arith.constant 57 : index
    %632 = memref.load %arg4[%c57] : memref<96xf32, #tpu.memory_space<smem>>
    %633 = vector.broadcast %632 : f32 to vector<2x384xf32>
    %634 = arith.mulf %633, %619 : vector<2x384xf32>
    %635 = arith.addf %577, %634 : vector<2x384xf32>
    %c73 = arith.constant 73 : index
    %636 = memref.load %arg4[%c73] : memref<96xf32, #tpu.memory_space<smem>>
    %637 = vector.broadcast %636 : f32 to vector<2x384xf32>
    %638 = arith.mulf %637, %619 : vector<2x384xf32>
    %639 = arith.addf %581, %638 : vector<2x384xf32>
    %c89 = arith.constant 89 : index
    %640 = memref.load %arg4[%c89] : memref<96xf32, #tpu.memory_space<smem>>
    %641 = vector.broadcast %640 : f32 to vector<2x384xf32>
    %642 = arith.mulf %641, %619 : vector<2x384xf32>
    %643 = arith.addf %585, %642 : vector<2x384xf32>
    %c18_224 = arith.constant 18 : index
    %644 = memref.load %arg2[%c18_224] : memref<24xf32, #tpu.memory_space<smem>>
    %c16_225 = arith.constant 16 : index
    %c0_226 = arith.constant 0 : index
    %645 = vector.load %arg1[%c16_225, %c0_226] : memref<40x384xf32, #tpu.memory_space<vmem>>, vector<2x384xf32>
    %646 = vector.broadcast %644 : f32 to vector<2x384xf32>
    %647 = arith.mulf %646, %645 : vector<2x384xf32>
    %c19_227 = arith.constant 19 : index
    %648 = memref.load %arg2[%c19_227] : memref<24xf32, #tpu.memory_space<smem>>
    %c24_228 = arith.constant 24 : index
    %c0_229 = arith.constant 0 : index
    %649 = vector.load %arg1[%c24_228, %c0_229] : memref<40x384xf32, #tpu.memory_space<vmem>>, vector<2x384xf32>
    %650 = vector.broadcast %648 : f32 to vector<2x384xf32>
    %651 = arith.mulf %650, %649 : vector<2x384xf32>
    %652 = arith.addf %647, %651 : vector<2x384xf32>
    %c20_230 = arith.constant 20 : index
    %653 = memref.load %arg2[%c20_230] : memref<24xf32, #tpu.memory_space<smem>>
    %c32_231 = arith.constant 32 : index
    %c0_232 = arith.constant 0 : index
    %654 = vector.load %arg1[%c32_231, %c0_232] : memref<40x384xf32, #tpu.memory_space<vmem>>, vector<2x384xf32>
    %655 = vector.broadcast %653 : f32 to vector<2x384xf32>
    %656 = arith.mulf %655, %654 : vector<2x384xf32>
    %657 = arith.addf %652, %656 : vector<2x384xf32>
    %c21_233 = arith.constant 21 : index
    %658 = memref.load %arg2[%c21_233] : memref<24xf32, #tpu.memory_space<smem>>
    %c18_234 = arith.constant 18 : index
    %c0_235 = arith.constant 0 : index
    %659 = vector.load %arg1[%c18_234, %c0_235] : memref<40x384xf32, #tpu.memory_space<vmem>>, vector<2x384xf32>
    %660 = vector.broadcast %658 : f32 to vector<2x384xf32>
    %661 = arith.mulf %660, %659 : vector<2x384xf32>
    %662 = arith.addf %657, %661 : vector<2x384xf32>
    %c22_236 = arith.constant 22 : index
    %663 = memref.load %arg2[%c22_236] : memref<24xf32, #tpu.memory_space<smem>>
    %c26_237 = arith.constant 26 : index
    %c0_238 = arith.constant 0 : index
    %664 = vector.load %arg1[%c26_237, %c0_238] : memref<40x384xf32, #tpu.memory_space<vmem>>, vector<2x384xf32>
    %665 = vector.broadcast %663 : f32 to vector<2x384xf32>
    %666 = arith.mulf %665, %664 : vector<2x384xf32>
    %667 = arith.addf %662, %666 : vector<2x384xf32>
    %c23_239 = arith.constant 23 : index
    %668 = memref.load %arg2[%c23_239] : memref<24xf32, #tpu.memory_space<smem>>
    %c34_240 = arith.constant 34 : index
    %c0_241 = arith.constant 0 : index
    %669 = vector.load %arg1[%c34_240, %c0_241] : memref<40x384xf32, #tpu.memory_space<vmem>>, vector<2x384xf32>
    %670 = vector.broadcast %668 : f32 to vector<2x384xf32>
    %671 = arith.mulf %670, %669 : vector<2x384xf32>
    %672 = arith.addf %667, %671 : vector<2x384xf32>
    %c3_242 = arith.constant 3 : index
    %673 = memref.load %arg3[%c3_242] : memref<4xf32, #tpu.memory_space<smem>>
    %674 = vector.broadcast %673 : f32 to vector<2x384xf32>
    %675 = arith.addf %672, %674 : vector<2x384xf32>
    %cst_243 = arith.constant 0.000000e+00 : f32
    %676 = vector.broadcast %cst_243 : f32 to vector<2x384xf32>
    %677 = arith.maximumf %675, %676 : vector<2x384xf32>
    %c13_244 = arith.constant 13 : index
    %678 = memref.load %arg4[%c13_244] : memref<96xf32, #tpu.memory_space<smem>>
    %679 = vector.broadcast %678 : f32 to vector<2x384xf32>
    %680 = arith.mulf %679, %677 : vector<2x384xf32>
    %681 = arith.addf %623, %680 : vector<2x384xf32>
    %c29 = arith.constant 29 : index
    %682 = memref.load %arg4[%c29] : memref<96xf32, #tpu.memory_space<smem>>
    %683 = vector.broadcast %682 : f32 to vector<2x384xf32>
    %684 = arith.mulf %683, %677 : vector<2x384xf32>
    %685 = arith.addf %627, %684 : vector<2x384xf32>
    %c45 = arith.constant 45 : index
    %686 = memref.load %arg4[%c45] : memref<96xf32, #tpu.memory_space<smem>>
    %687 = vector.broadcast %686 : f32 to vector<2x384xf32>
    %688 = arith.mulf %687, %677 : vector<2x384xf32>
    %689 = arith.addf %631, %688 : vector<2x384xf32>
    %c61 = arith.constant 61 : index
    %690 = memref.load %arg4[%c61] : memref<96xf32, #tpu.memory_space<smem>>
    %691 = vector.broadcast %690 : f32 to vector<2x384xf32>
    %692 = arith.mulf %691, %677 : vector<2x384xf32>
    %693 = arith.addf %635, %692 : vector<2x384xf32>
    %c77 = arith.constant 77 : index
    %694 = memref.load %arg4[%c77] : memref<96xf32, #tpu.memory_space<smem>>
    %695 = vector.broadcast %694 : f32 to vector<2x384xf32>
    %696 = arith.mulf %695, %677 : vector<2x384xf32>
    %697 = arith.addf %639, %696 : vector<2x384xf32>
    %c93 = arith.constant 93 : index
    %698 = memref.load %arg4[%c93] : memref<96xf32, #tpu.memory_space<smem>>
    %699 = vector.broadcast %698 : f32 to vector<2x384xf32>
    %700 = arith.mulf %699, %677 : vector<2x384xf32>
    %701 = arith.addf %643, %700 : vector<2x384xf32>
    %c0_245 = arith.constant 0 : index
    %702 = memref.load %arg2[%c0_245] : memref<24xf32, #tpu.memory_space<smem>>
    %c20_246 = arith.constant 20 : index
    %c0_247 = arith.constant 0 : index
    %703 = vector.load %arg1[%c20_246, %c0_247] : memref<40x384xf32, #tpu.memory_space<vmem>>, vector<2x384xf32>
    %704 = vector.broadcast %702 : f32 to vector<2x384xf32>
    %705 = arith.mulf %704, %703 : vector<2x384xf32>
    %c1_248 = arith.constant 1 : index
    %706 = memref.load %arg2[%c1_248] : memref<24xf32, #tpu.memory_space<smem>>
    %c28_249 = arith.constant 28 : index
    %c0_250 = arith.constant 0 : index
    %707 = vector.load %arg1[%c28_249, %c0_250] : memref<40x384xf32, #tpu.memory_space<vmem>>, vector<2x384xf32>
    %708 = vector.broadcast %706 : f32 to vector<2x384xf32>
    %709 = arith.mulf %708, %707 : vector<2x384xf32>
    %710 = arith.addf %705, %709 : vector<2x384xf32>
    %c2_251 = arith.constant 2 : index
    %711 = memref.load %arg2[%c2_251] : memref<24xf32, #tpu.memory_space<smem>>
    %c36_252 = arith.constant 36 : index
    %c0_253 = arith.constant 0 : index
    %712 = vector.load %arg1[%c36_252, %c0_253] : memref<40x384xf32, #tpu.memory_space<vmem>>, vector<2x384xf32>
    %713 = vector.broadcast %711 : f32 to vector<2x384xf32>
    %714 = arith.mulf %713, %712 : vector<2x384xf32>
    %715 = arith.addf %710, %714 : vector<2x384xf32>
    %c3_254 = arith.constant 3 : index
    %716 = memref.load %arg2[%c3_254] : memref<24xf32, #tpu.memory_space<smem>>
    %c22_255 = arith.constant 22 : index
    %c0_256 = arith.constant 0 : index
    %717 = vector.load %arg1[%c22_255, %c0_256] : memref<40x384xf32, #tpu.memory_space<vmem>>, vector<2x384xf32>
    %718 = vector.broadcast %716 : f32 to vector<2x384xf32>
    %719 = arith.mulf %718, %717 : vector<2x384xf32>
    %720 = arith.addf %715, %719 : vector<2x384xf32>
    %c4_257 = arith.constant 4 : index
    %721 = memref.load %arg2[%c4_257] : memref<24xf32, #tpu.memory_space<smem>>
    %c30_258 = arith.constant 30 : index
    %c0_259 = arith.constant 0 : index
    %722 = vector.load %arg1[%c30_258, %c0_259] : memref<40x384xf32, #tpu.memory_space<vmem>>, vector<2x384xf32>
    %723 = vector.broadcast %721 : f32 to vector<2x384xf32>
    %724 = arith.mulf %723, %722 : vector<2x384xf32>
    %725 = arith.addf %720, %724 : vector<2x384xf32>
    %c5_260 = arith.constant 5 : index
    %726 = memref.load %arg2[%c5_260] : memref<24xf32, #tpu.memory_space<smem>>
    %c38_261 = arith.constant 38 : index
    %c0_262 = arith.constant 0 : index
    %727 = vector.load %arg1[%c38_261, %c0_262] : memref<40x384xf32, #tpu.memory_space<vmem>>, vector<2x384xf32>
    %728 = vector.broadcast %726 : f32 to vector<2x384xf32>
    %729 = arith.mulf %728, %727 : vector<2x384xf32>
    %730 = arith.addf %725, %729 : vector<2x384xf32>
    %c0_263 = arith.constant 0 : index
    %731 = memref.load %arg3[%c0_263] : memref<4xf32, #tpu.memory_space<smem>>
    %732 = vector.broadcast %731 : f32 to vector<2x384xf32>
    %733 = arith.addf %730, %732 : vector<2x384xf32>
    %cst_264 = arith.constant 0.000000e+00 : f32
    %734 = vector.broadcast %cst_264 : f32 to vector<2x384xf32>
    %735 = arith.maximumf %733, %734 : vector<2x384xf32>
    %c3_265 = arith.constant 3 : index
    %736 = memref.load %arg4[%c3_265] : memref<96xf32, #tpu.memory_space<smem>>
    %737 = vector.broadcast %736 : f32 to vector<2x384xf32>
    %738 = arith.mulf %737, %735 : vector<2x384xf32>
    %739 = arith.addf %681, %738 : vector<2x384xf32>
    %c19_266 = arith.constant 19 : index
    %740 = memref.load %arg4[%c19_266] : memref<96xf32, #tpu.memory_space<smem>>
    %741 = vector.broadcast %740 : f32 to vector<2x384xf32>
    %742 = arith.mulf %741, %735 : vector<2x384xf32>
    %743 = arith.addf %685, %742 : vector<2x384xf32>
    %c35 = arith.constant 35 : index
    %744 = memref.load %arg4[%c35] : memref<96xf32, #tpu.memory_space<smem>>
    %745 = vector.broadcast %744 : f32 to vector<2x384xf32>
    %746 = arith.mulf %745, %735 : vector<2x384xf32>
    %747 = arith.addf %689, %746 : vector<2x384xf32>
    %c51 = arith.constant 51 : index
    %748 = memref.load %arg4[%c51] : memref<96xf32, #tpu.memory_space<smem>>
    %749 = vector.broadcast %748 : f32 to vector<2x384xf32>
    %750 = arith.mulf %749, %735 : vector<2x384xf32>
    %751 = arith.addf %693, %750 : vector<2x384xf32>
    %c67 = arith.constant 67 : index
    %752 = memref.load %arg4[%c67] : memref<96xf32, #tpu.memory_space<smem>>
    %753 = vector.broadcast %752 : f32 to vector<2x384xf32>
    %754 = arith.mulf %753, %735 : vector<2x384xf32>
    %755 = arith.addf %697, %754 : vector<2x384xf32>
    %c83 = arith.constant 83 : index
    %756 = memref.load %arg4[%c83] : memref<96xf32, #tpu.memory_space<smem>>
    %757 = vector.broadcast %756 : f32 to vector<2x384xf32>
    %758 = arith.mulf %757, %735 : vector<2x384xf32>
    %759 = arith.addf %701, %758 : vector<2x384xf32>
    %c6_267 = arith.constant 6 : index
    %760 = memref.load %arg2[%c6_267] : memref<24xf32, #tpu.memory_space<smem>>
    %c20_268 = arith.constant 20 : index
    %c0_269 = arith.constant 0 : index
    %761 = vector.load %arg1[%c20_268, %c0_269] : memref<40x384xf32, #tpu.memory_space<vmem>>, vector<2x384xf32>
    %762 = vector.broadcast %760 : f32 to vector<2x384xf32>
    %763 = arith.mulf %762, %761 : vector<2x384xf32>
    %c7_270 = arith.constant 7 : index
    %764 = memref.load %arg2[%c7_270] : memref<24xf32, #tpu.memory_space<smem>>
    %c28_271 = arith.constant 28 : index
    %c0_272 = arith.constant 0 : index
    %765 = vector.load %arg1[%c28_271, %c0_272] : memref<40x384xf32, #tpu.memory_space<vmem>>, vector<2x384xf32>
    %766 = vector.broadcast %764 : f32 to vector<2x384xf32>
    %767 = arith.mulf %766, %765 : vector<2x384xf32>
    %768 = arith.addf %763, %767 : vector<2x384xf32>
    %c8_273 = arith.constant 8 : index
    %769 = memref.load %arg2[%c8_273] : memref<24xf32, #tpu.memory_space<smem>>
    %c36_274 = arith.constant 36 : index
    %c0_275 = arith.constant 0 : index
    %770 = vector.load %arg1[%c36_274, %c0_275] : memref<40x384xf32, #tpu.memory_space<vmem>>, vector<2x384xf32>
    %771 = vector.broadcast %769 : f32 to vector<2x384xf32>
    %772 = arith.mulf %771, %770 : vector<2x384xf32>
    %773 = arith.addf %768, %772 : vector<2x384xf32>
    %c9_276 = arith.constant 9 : index
    %774 = memref.load %arg2[%c9_276] : memref<24xf32, #tpu.memory_space<smem>>
    %c22_277 = arith.constant 22 : index
    %c0_278 = arith.constant 0 : index
    %775 = vector.load %arg1[%c22_277, %c0_278] : memref<40x384xf32, #tpu.memory_space<vmem>>, vector<2x384xf32>
    %776 = vector.broadcast %774 : f32 to vector<2x384xf32>
    %777 = arith.mulf %776, %775 : vector<2x384xf32>
    %778 = arith.addf %773, %777 : vector<2x384xf32>
    %c10_279 = arith.constant 10 : index
    %779 = memref.load %arg2[%c10_279] : memref<24xf32, #tpu.memory_space<smem>>
    %c30_280 = arith.constant 30 : index
    %c0_281 = arith.constant 0 : index
    %780 = vector.load %arg1[%c30_280, %c0_281] : memref<40x384xf32, #tpu.memory_space<vmem>>, vector<2x384xf32>
    %781 = vector.broadcast %779 : f32 to vector<2x384xf32>
    %782 = arith.mulf %781, %780 : vector<2x384xf32>
    %783 = arith.addf %778, %782 : vector<2x384xf32>
    %c11_282 = arith.constant 11 : index
    %784 = memref.load %arg2[%c11_282] : memref<24xf32, #tpu.memory_space<smem>>
    %c38_283 = arith.constant 38 : index
    %c0_284 = arith.constant 0 : index
    %785 = vector.load %arg1[%c38_283, %c0_284] : memref<40x384xf32, #tpu.memory_space<vmem>>, vector<2x384xf32>
    %786 = vector.broadcast %784 : f32 to vector<2x384xf32>
    %787 = arith.mulf %786, %785 : vector<2x384xf32>
    %788 = arith.addf %783, %787 : vector<2x384xf32>
    %c1_285 = arith.constant 1 : index
    %789 = memref.load %arg3[%c1_285] : memref<4xf32, #tpu.memory_space<smem>>
    %790 = vector.broadcast %789 : f32 to vector<2x384xf32>
    %791 = arith.addf %788, %790 : vector<2x384xf32>
    %cst_286 = arith.constant 0.000000e+00 : f32
    %792 = vector.broadcast %cst_286 : f32 to vector<2x384xf32>
    %793 = arith.maximumf %791, %792 : vector<2x384xf32>
    %c7_287 = arith.constant 7 : index
    %794 = memref.load %arg4[%c7_287] : memref<96xf32, #tpu.memory_space<smem>>
    %795 = vector.broadcast %794 : f32 to vector<2x384xf32>
    %796 = arith.mulf %795, %793 : vector<2x384xf32>
    %797 = arith.addf %739, %796 : vector<2x384xf32>
    %c23_288 = arith.constant 23 : index
    %798 = memref.load %arg4[%c23_288] : memref<96xf32, #tpu.memory_space<smem>>
    %799 = vector.broadcast %798 : f32 to vector<2x384xf32>
    %800 = arith.mulf %799, %793 : vector<2x384xf32>
    %801 = arith.addf %743, %800 : vector<2x384xf32>
    %c39 = arith.constant 39 : index
    %802 = memref.load %arg4[%c39] : memref<96xf32, #tpu.memory_space<smem>>
    %803 = vector.broadcast %802 : f32 to vector<2x384xf32>
    %804 = arith.mulf %803, %793 : vector<2x384xf32>
    %805 = arith.addf %747, %804 : vector<2x384xf32>
    %c55 = arith.constant 55 : index
    %806 = memref.load %arg4[%c55] : memref<96xf32, #tpu.memory_space<smem>>
    %807 = vector.broadcast %806 : f32 to vector<2x384xf32>
    %808 = arith.mulf %807, %793 : vector<2x384xf32>
    %809 = arith.addf %751, %808 : vector<2x384xf32>
    %c71 = arith.constant 71 : index
    %810 = memref.load %arg4[%c71] : memref<96xf32, #tpu.memory_space<smem>>
    %811 = vector.broadcast %810 : f32 to vector<2x384xf32>
    %812 = arith.mulf %811, %793 : vector<2x384xf32>
    %813 = arith.addf %755, %812 : vector<2x384xf32>
    %c87 = arith.constant 87 : index
    %814 = memref.load %arg4[%c87] : memref<96xf32, #tpu.memory_space<smem>>
    %815 = vector.broadcast %814 : f32 to vector<2x384xf32>
    %816 = arith.mulf %815, %793 : vector<2x384xf32>
    %817 = arith.addf %759, %816 : vector<2x384xf32>
    %c12_289 = arith.constant 12 : index
    %818 = memref.load %arg2[%c12_289] : memref<24xf32, #tpu.memory_space<smem>>
    %c20_290 = arith.constant 20 : index
    %c0_291 = arith.constant 0 : index
    %819 = vector.load %arg1[%c20_290, %c0_291] : memref<40x384xf32, #tpu.memory_space<vmem>>, vector<2x384xf32>
    %820 = vector.broadcast %818 : f32 to vector<2x384xf32>
    %821 = arith.mulf %820, %819 : vector<2x384xf32>
    %c13_292 = arith.constant 13 : index
    %822 = memref.load %arg2[%c13_292] : memref<24xf32, #tpu.memory_space<smem>>
    %c28_293 = arith.constant 28 : index
    %c0_294 = arith.constant 0 : index
    %823 = vector.load %arg1[%c28_293, %c0_294] : memref<40x384xf32, #tpu.memory_space<vmem>>, vector<2x384xf32>
    %824 = vector.broadcast %822 : f32 to vector<2x384xf32>
    %825 = arith.mulf %824, %823 : vector<2x384xf32>
    %826 = arith.addf %821, %825 : vector<2x384xf32>
    %c14_295 = arith.constant 14 : index
    %827 = memref.load %arg2[%c14_295] : memref<24xf32, #tpu.memory_space<smem>>
    %c36_296 = arith.constant 36 : index
    %c0_297 = arith.constant 0 : index
    %828 = vector.load %arg1[%c36_296, %c0_297] : memref<40x384xf32, #tpu.memory_space<vmem>>, vector<2x384xf32>
    %829 = vector.broadcast %827 : f32 to vector<2x384xf32>
    %830 = arith.mulf %829, %828 : vector<2x384xf32>
    %831 = arith.addf %826, %830 : vector<2x384xf32>
    %c15_298 = arith.constant 15 : index
    %832 = memref.load %arg2[%c15_298] : memref<24xf32, #tpu.memory_space<smem>>
    %c22_299 = arith.constant 22 : index
    %c0_300 = arith.constant 0 : index
    %833 = vector.load %arg1[%c22_299, %c0_300] : memref<40x384xf32, #tpu.memory_space<vmem>>, vector<2x384xf32>
    %834 = vector.broadcast %832 : f32 to vector<2x384xf32>
    %835 = arith.mulf %834, %833 : vector<2x384xf32>
    %836 = arith.addf %831, %835 : vector<2x384xf32>
    %c16_301 = arith.constant 16 : index
    %837 = memref.load %arg2[%c16_301] : memref<24xf32, #tpu.memory_space<smem>>
    %c30_302 = arith.constant 30 : index
    %c0_303 = arith.constant 0 : index
    %838 = vector.load %arg1[%c30_302, %c0_303] : memref<40x384xf32, #tpu.memory_space<vmem>>, vector<2x384xf32>
    %839 = vector.broadcast %837 : f32 to vector<2x384xf32>
    %840 = arith.mulf %839, %838 : vector<2x384xf32>
    %841 = arith.addf %836, %840 : vector<2x384xf32>
    %c17_304 = arith.constant 17 : index
    %842 = memref.load %arg2[%c17_304] : memref<24xf32, #tpu.memory_space<smem>>
    %c38_305 = arith.constant 38 : index
    %c0_306 = arith.constant 0 : index
    %843 = vector.load %arg1[%c38_305, %c0_306] : memref<40x384xf32, #tpu.memory_space<vmem>>, vector<2x384xf32>
    %844 = vector.broadcast %842 : f32 to vector<2x384xf32>
    %845 = arith.mulf %844, %843 : vector<2x384xf32>
    %846 = arith.addf %841, %845 : vector<2x384xf32>
    %c2_307 = arith.constant 2 : index
    %847 = memref.load %arg3[%c2_307] : memref<4xf32, #tpu.memory_space<smem>>
    %848 = vector.broadcast %847 : f32 to vector<2x384xf32>
    %849 = arith.addf %846, %848 : vector<2x384xf32>
    %cst_308 = arith.constant 0.000000e+00 : f32
    %850 = vector.broadcast %cst_308 : f32 to vector<2x384xf32>
    %851 = arith.maximumf %849, %850 : vector<2x384xf32>
    %c11_309 = arith.constant 11 : index
    %852 = memref.load %arg4[%c11_309] : memref<96xf32, #tpu.memory_space<smem>>
    %853 = vector.broadcast %852 : f32 to vector<2x384xf32>
    %854 = arith.mulf %853, %851 : vector<2x384xf32>
    %855 = arith.addf %797, %854 : vector<2x384xf32>
    %c27 = arith.constant 27 : index
    %856 = memref.load %arg4[%c27] : memref<96xf32, #tpu.memory_space<smem>>
    %857 = vector.broadcast %856 : f32 to vector<2x384xf32>
    %858 = arith.mulf %857, %851 : vector<2x384xf32>
    %859 = arith.addf %801, %858 : vector<2x384xf32>
    %c43 = arith.constant 43 : index
    %860 = memref.load %arg4[%c43] : memref<96xf32, #tpu.memory_space<smem>>
    %861 = vector.broadcast %860 : f32 to vector<2x384xf32>
    %862 = arith.mulf %861, %851 : vector<2x384xf32>
    %863 = arith.addf %805, %862 : vector<2x384xf32>
    %c59 = arith.constant 59 : index
    %864 = memref.load %arg4[%c59] : memref<96xf32, #tpu.memory_space<smem>>
    %865 = vector.broadcast %864 : f32 to vector<2x384xf32>
    %866 = arith.mulf %865, %851 : vector<2x384xf32>
    %867 = arith.addf %809, %866 : vector<2x384xf32>
    %c75 = arith.constant 75 : index
    %868 = memref.load %arg4[%c75] : memref<96xf32, #tpu.memory_space<smem>>
    %869 = vector.broadcast %868 : f32 to vector<2x384xf32>
    %870 = arith.mulf %869, %851 : vector<2x384xf32>
    %871 = arith.addf %813, %870 : vector<2x384xf32>
    %c91 = arith.constant 91 : index
    %872 = memref.load %arg4[%c91] : memref<96xf32, #tpu.memory_space<smem>>
    %873 = vector.broadcast %872 : f32 to vector<2x384xf32>
    %874 = arith.mulf %873, %851 : vector<2x384xf32>
    %875 = arith.addf %817, %874 : vector<2x384xf32>
    %c18_310 = arith.constant 18 : index
    %876 = memref.load %arg2[%c18_310] : memref<24xf32, #tpu.memory_space<smem>>
    %c20_311 = arith.constant 20 : index
    %c0_312 = arith.constant 0 : index
    %877 = vector.load %arg1[%c20_311, %c0_312] : memref<40x384xf32, #tpu.memory_space<vmem>>, vector<2x384xf32>
    %878 = vector.broadcast %876 : f32 to vector<2x384xf32>
    %879 = arith.mulf %878, %877 : vector<2x384xf32>
    %c19_313 = arith.constant 19 : index
    %880 = memref.load %arg2[%c19_313] : memref<24xf32, #tpu.memory_space<smem>>
    %c28_314 = arith.constant 28 : index
    %c0_315 = arith.constant 0 : index
    %881 = vector.load %arg1[%c28_314, %c0_315] : memref<40x384xf32, #tpu.memory_space<vmem>>, vector<2x384xf32>
    %882 = vector.broadcast %880 : f32 to vector<2x384xf32>
    %883 = arith.mulf %882, %881 : vector<2x384xf32>
    %884 = arith.addf %879, %883 : vector<2x384xf32>
    %c20_316 = arith.constant 20 : index
    %885 = memref.load %arg2[%c20_316] : memref<24xf32, #tpu.memory_space<smem>>
    %c36_317 = arith.constant 36 : index
    %c0_318 = arith.constant 0 : index
    %886 = vector.load %arg1[%c36_317, %c0_318] : memref<40x384xf32, #tpu.memory_space<vmem>>, vector<2x384xf32>
    %887 = vector.broadcast %885 : f32 to vector<2x384xf32>
    %888 = arith.mulf %887, %886 : vector<2x384xf32>
    %889 = arith.addf %884, %888 : vector<2x384xf32>
    %c21_319 = arith.constant 21 : index
    %890 = memref.load %arg2[%c21_319] : memref<24xf32, #tpu.memory_space<smem>>
    %c22_320 = arith.constant 22 : index
    %c0_321 = arith.constant 0 : index
    %891 = vector.load %arg1[%c22_320, %c0_321] : memref<40x384xf32, #tpu.memory_space<vmem>>, vector<2x384xf32>
    %892 = vector.broadcast %890 : f32 to vector<2x384xf32>
    %893 = arith.mulf %892, %891 : vector<2x384xf32>
    %894 = arith.addf %889, %893 : vector<2x384xf32>
    %c22_322 = arith.constant 22 : index
    %895 = memref.load %arg2[%c22_322] : memref<24xf32, #tpu.memory_space<smem>>
    %c30_323 = arith.constant 30 : index
    %c0_324 = arith.constant 0 : index
    %896 = vector.load %arg1[%c30_323, %c0_324] : memref<40x384xf32, #tpu.memory_space<vmem>>, vector<2x384xf32>
    %897 = vector.broadcast %895 : f32 to vector<2x384xf32>
    %898 = arith.mulf %897, %896 : vector<2x384xf32>
    %899 = arith.addf %894, %898 : vector<2x384xf32>
    %c23_325 = arith.constant 23 : index
    %900 = memref.load %arg2[%c23_325] : memref<24xf32, #tpu.memory_space<smem>>
    %c38_326 = arith.constant 38 : index
    %c0_327 = arith.constant 0 : index
    %901 = vector.load %arg1[%c38_326, %c0_327] : memref<40x384xf32, #tpu.memory_space<vmem>>, vector<2x384xf32>
    %902 = vector.broadcast %900 : f32 to vector<2x384xf32>
    %903 = arith.mulf %902, %901 : vector<2x384xf32>
    %904 = arith.addf %899, %903 : vector<2x384xf32>
    %c3_328 = arith.constant 3 : index
    %905 = memref.load %arg3[%c3_328] : memref<4xf32, #tpu.memory_space<smem>>
    %906 = vector.broadcast %905 : f32 to vector<2x384xf32>
    %907 = arith.addf %904, %906 : vector<2x384xf32>
    %cst_329 = arith.constant 0.000000e+00 : f32
    %908 = vector.broadcast %cst_329 : f32 to vector<2x384xf32>
    %909 = arith.maximumf %907, %908 : vector<2x384xf32>
    %c15_330 = arith.constant 15 : index
    %910 = memref.load %arg4[%c15_330] : memref<96xf32, #tpu.memory_space<smem>>
    %911 = vector.broadcast %910 : f32 to vector<2x384xf32>
    %912 = arith.mulf %911, %909 : vector<2x384xf32>
    %913 = arith.addf %855, %912 : vector<2x384xf32>
    %c31 = arith.constant 31 : index
    %914 = memref.load %arg4[%c31] : memref<96xf32, #tpu.memory_space<smem>>
    %915 = vector.broadcast %914 : f32 to vector<2x384xf32>
    %916 = arith.mulf %915, %909 : vector<2x384xf32>
    %917 = arith.addf %859, %916 : vector<2x384xf32>
    %c47 = arith.constant 47 : index
    %918 = memref.load %arg4[%c47] : memref<96xf32, #tpu.memory_space<smem>>
    %919 = vector.broadcast %918 : f32 to vector<2x384xf32>
    %920 = arith.mulf %919, %909 : vector<2x384xf32>
    %921 = arith.addf %863, %920 : vector<2x384xf32>
    %c63 = arith.constant 63 : index
    %922 = memref.load %arg4[%c63] : memref<96xf32, #tpu.memory_space<smem>>
    %923 = vector.broadcast %922 : f32 to vector<2x384xf32>
    %924 = arith.mulf %923, %909 : vector<2x384xf32>
    %925 = arith.addf %867, %924 : vector<2x384xf32>
    %c79 = arith.constant 79 : index
    %926 = memref.load %arg4[%c79] : memref<96xf32, #tpu.memory_space<smem>>
    %927 = vector.broadcast %926 : f32 to vector<2x384xf32>
    %928 = arith.mulf %927, %909 : vector<2x384xf32>
    %929 = arith.addf %871, %928 : vector<2x384xf32>
    %c95 = arith.constant 95 : index
    %930 = memref.load %arg4[%c95] : memref<96xf32, #tpu.memory_space<smem>>
    %931 = vector.broadcast %930 : f32 to vector<2x384xf32>
    %932 = arith.mulf %931, %909 : vector<2x384xf32>
    %933 = arith.addf %875, %932 : vector<2x384xf32>
    %c0_331 = arith.constant 0 : index
    %934 = memref.load %arg5[%c0_331] : memref<6xf32, #tpu.memory_space<smem>>
    %935 = vector.broadcast %934 : f32 to vector<2x384xf32>
    %936 = arith.addf %913, %935 : vector<2x384xf32>
    %cst_332 = arith.constant 0.000000e+00 : f32
    %937 = vector.broadcast %cst_332 : f32 to vector<2x384xf32>
    %938 = arith.maximumf %936, %937 : vector<2x384xf32>
    %939 = arith.truncf %938 : vector<2x384xf32> to vector<2x384xbf16>
    %c1_333 = arith.constant 1 : index
    %940 = memref.load %arg5[%c1_333] : memref<6xf32, #tpu.memory_space<smem>>
    %941 = vector.broadcast %940 : f32 to vector<2x384xf32>
    %942 = arith.addf %917, %941 : vector<2x384xf32>
    %cst_334 = arith.constant 0.000000e+00 : f32
    %943 = vector.broadcast %cst_334 : f32 to vector<2x384xf32>
    %944 = arith.maximumf %942, %943 : vector<2x384xf32>
    %945 = arith.truncf %944 : vector<2x384xf32> to vector<2x384xbf16>
    %c2_335 = arith.constant 2 : index
    %946 = memref.load %arg5[%c2_335] : memref<6xf32, #tpu.memory_space<smem>>
    %947 = vector.broadcast %946 : f32 to vector<2x384xf32>
    %948 = arith.addf %921, %947 : vector<2x384xf32>
    %cst_336 = arith.constant 0.000000e+00 : f32
    %949 = vector.broadcast %cst_336 : f32 to vector<2x384xf32>
    %950 = arith.maximumf %948, %949 : vector<2x384xf32>
    %951 = arith.truncf %950 : vector<2x384xf32> to vector<2x384xbf16>
    %c3_337 = arith.constant 3 : index
    %952 = memref.load %arg5[%c3_337] : memref<6xf32, #tpu.memory_space<smem>>
    %953 = vector.broadcast %952 : f32 to vector<2x384xf32>
    %954 = arith.addf %925, %953 : vector<2x384xf32>
    %cst_338 = arith.constant 0.000000e+00 : f32
    %955 = vector.broadcast %cst_338 : f32 to vector<2x384xf32>
    %956 = arith.maximumf %954, %955 : vector<2x384xf32>
    %957 = arith.truncf %956 : vector<2x384xf32> to vector<2x384xbf16>
    %c4_339 = arith.constant 4 : index
    %958 = memref.load %arg5[%c4_339] : memref<6xf32, #tpu.memory_space<smem>>
    %959 = vector.broadcast %958 : f32 to vector<2x384xf32>
    %960 = arith.addf %929, %959 : vector<2x384xf32>
    %cst_340 = arith.constant 0.000000e+00 : f32
    %961 = vector.broadcast %cst_340 : f32 to vector<2x384xf32>
    %962 = arith.maximumf %960, %961 : vector<2x384xf32>
    %963 = arith.truncf %962 : vector<2x384xf32> to vector<2x384xbf16>
    %c5_341 = arith.constant 5 : index
    %964 = memref.load %arg5[%c5_341] : memref<6xf32, #tpu.memory_space<smem>>
    %965 = vector.broadcast %964 : f32 to vector<2x384xf32>
    %966 = arith.addf %933, %965 : vector<2x384xf32>
    %cst_342 = arith.constant 0.000000e+00 : f32
    %967 = vector.broadcast %cst_342 : f32 to vector<2x384xf32>
    %968 = arith.maximumf %966, %967 : vector<2x384xf32>
    %969 = arith.truncf %968 : vector<2x384xf32> to vector<2x384xbf16>
    %970 = tpu.concatenate %939, %945, %951 in 1 : vector<2x384xbf16>, vector<2x384xbf16>, vector<2x384xbf16> -> vector<2x1152xbf16>
    %c0_i32_343 = arith.constant 0 : i32
    %c0_i32_344 = arith.constant 0 : i32
    %c0_i32_345 = arith.constant 0 : i32
    %c0_i32_346 = arith.constant 0 : i32
    %c0_i32_347 = arith.constant 0 : i32
    %971 = tpu.memref_slice %arg6[%c0_i32_343, %c0_i32_346, %c0_i32_347] : memref<2x1152x128xbf16, #tpu.memory_space<any>> -> memref<1x1152x128xbf16, #tpu.memory_space<any>>
    %972 = tpu.memref_squeeze %971 : memref<1x1152x128xbf16, #tpu.memory_space<any>> -> memref<1152x128xbf16, #tpu.memory_space<any>>
    %c0_i32_348 = arith.constant 0 : i32
    %c0_i32_349 = arith.constant 0 : i32
    %973 = tpu.memref_slice %arg11[%c0_i32_344, %c0_i32_348, %c0_i32_349] : memref<2x1152x128xbf16, #tpu.memory_space<vmem>> -> memref<1x1152x128xbf16, #tpu.memory_space<vmem>>
    %974 = tpu.memref_squeeze %973 : memref<1x1152x128xbf16, #tpu.memory_space<vmem>> -> memref<1152x128xbf16, #tpu.memory_space<vmem>>
    %975 = tpu.memref_slice %arg12[%c0_i32_345] : memref<2x!tpu.dma_semaphore, #tpu.memory_space<semaphore_mem>> -> memref<1x!tpu.dma_semaphore, #tpu.memory_space<semaphore_mem>>
    %976 = tpu.memref_squeeze %975 : memref<1x!tpu.dma_semaphore, #tpu.memory_space<semaphore_mem>> -> memref<!tpu.dma_semaphore, #tpu.memory_space<semaphore_mem>>
    tpu.wait_dma2 semaphore(%976 : memref<!tpu.dma_semaphore, #tpu.memory_space<semaphore_mem>>) src(%972 : memref<1152x128xbf16, #tpu.memory_space<any>>) dst(%974 : memref<1152x128xbf16, #tpu.memory_space<vmem>>)
    %c0_350 = arith.constant 0 : index
    %c0_351 = arith.constant 0 : index
    %c0_352 = arith.constant 0 : index
    %977 = vector.load %arg11[%c0_350, %c0_351, %c0_352] : memref<2x1152x128xbf16, #tpu.memory_space<vmem>>, vector<1x1152x128xbf16>
    %978 = vector.shape_cast %977 : vector<1x1152x128xbf16> to vector<1152x128xbf16>
    %cst_353 = arith.constant dense<0.000000e+00> : vector<2x128xf32>
    %979 = tpu.matmul %970, %978, %cst_353 {dimension_numbers = #tpu.dot_dimension_numbers<[1], [0], [0], [1], [0, 0, 1, 1], [], []>} : vector<2x1152xbf16>, vector<1152x128xbf16>, vector<2x128xf32> -> vector<2x128xf32>
    %980 = tpu.concatenate %957, %963, %969 in 1 : vector<2x384xbf16>, vector<2x384xbf16>, vector<2x384xbf16> -> vector<2x1152xbf16>
    %c1_i32_354 = arith.constant 1 : i32
    %c1_i32_355 = arith.constant 1 : i32
    %c1_i32_356 = arith.constant 1 : i32
    %c0_i32_357 = arith.constant 0 : i32
    %c0_i32_358 = arith.constant 0 : i32
    %981 = tpu.memref_slice %arg6[%c1_i32_354, %c0_i32_357, %c0_i32_358] : memref<2x1152x128xbf16, #tpu.memory_space<any>> -> memref<1x1152x128xbf16, #tpu.memory_space<any>>
    %982 = tpu.memref_squeeze %981 : memref<1x1152x128xbf16, #tpu.memory_space<any>> -> memref<1152x128xbf16, #tpu.memory_space<any>>
    %c0_i32_359 = arith.constant 0 : i32
    %c0_i32_360 = arith.constant 0 : i32
    %983 = tpu.memref_slice %arg11[%c1_i32_355, %c0_i32_359, %c0_i32_360] : memref<2x1152x128xbf16, #tpu.memory_space<vmem>> -> memref<1x1152x128xbf16, #tpu.memory_space<vmem>>
    %984 = tpu.memref_squeeze %983 : memref<1x1152x128xbf16, #tpu.memory_space<vmem>> -> memref<1152x128xbf16, #tpu.memory_space<vmem>>
    %985 = tpu.memref_slice %arg12[%c1_i32_356] : memref<2x!tpu.dma_semaphore, #tpu.memory_space<semaphore_mem>> -> memref<1x!tpu.dma_semaphore, #tpu.memory_space<semaphore_mem>>
    %986 = tpu.memref_squeeze %985 : memref<1x!tpu.dma_semaphore, #tpu.memory_space<semaphore_mem>> -> memref<!tpu.dma_semaphore, #tpu.memory_space<semaphore_mem>>
    tpu.wait_dma2 semaphore(%986 : memref<!tpu.dma_semaphore, #tpu.memory_space<semaphore_mem>>) src(%982 : memref<1152x128xbf16, #tpu.memory_space<any>>) dst(%984 : memref<1152x128xbf16, #tpu.memory_space<vmem>>)
    %c1_361 = arith.constant 1 : index
    %c0_362 = arith.constant 0 : index
    %c0_363 = arith.constant 0 : index
    %987 = vector.load %arg11[%c1_361, %c0_362, %c0_363] : memref<2x1152x128xbf16, #tpu.memory_space<vmem>>, vector<1x1152x128xbf16>
    %988 = vector.shape_cast %987 : vector<1x1152x128xbf16> to vector<1152x128xbf16>
    %cst_364 = arith.constant dense<0.000000e+00> : vector<2x128xf32>
    %989 = tpu.matmul %980, %988, %cst_364 {dimension_numbers = #tpu.dot_dimension_numbers<[1], [0], [0], [1], [0, 0, 1, 1], [], []>} : vector<2x1152xbf16>, vector<1152x128xbf16>, vector<2x128xf32> -> vector<2x128xf32>
    %990 = arith.addf %979, %989 : vector<2x128xf32>
    %c0_365 = arith.constant 0 : index
    %c0_366 = arith.constant 0 : index
    %991 = vector.load %arg7[%c0_365, %c0_366] : memref<1x128xf32, #tpu.memory_space<vmem>>, vector<1x128xf32>
    %992 = vector.broadcast %991 : vector<1x128xf32> to vector<2x128xf32>
    %993 = arith.addf %990, %992 : vector<2x128xf32>
    %cst_367 = arith.constant 0.000000e+00 : f32
    %994 = vector.broadcast %cst_367 : f32 to vector<2x128xf32>
    %995 = arith.maximumf %993, %994 : vector<2x128xf32>
    %c0_368 = arith.constant 0 : index
    %c0_369 = arith.constant 0 : index
    %996 = vector.load %arg8[%c0_368, %c0_369] : memref<128x128xf32, #tpu.memory_space<vmem>>, vector<128x128xf32>
    %cst_370 = arith.constant dense<0.000000e+00> : vector<2x128xf32>
    %997 = tpu.matmul %995, %996, %cst_370 {dimension_numbers = #tpu.dot_dimension_numbers<[1], [0], [0], [1], [0, 0, 1, 1], [], []>} : vector<2x128xf32>, vector<128x128xf32>, vector<2x128xf32> -> vector<2x128xf32>
    %c0_371 = arith.constant 0 : index
    %c0_372 = arith.constant 0 : index
    %998 = vector.load %arg9[%c0_371, %c0_372] : memref<1x128xf32, #tpu.memory_space<vmem>>, vector<1x128xf32>
    %999 = vector.broadcast %998 : vector<1x128xf32> to vector<2x128xf32>
    %1000 = arith.addf %997, %999 : vector<2x128xf32>
    %cst_373 = arith.constant dense<0xFF800000> : vector<2xf32>
    %1001 = vector.multi_reduction <maximumf>, %1000, %cst_373 [1] : vector<2x128xf32> to vector<2xf32>
    %1002 = vector.shape_cast %1001 : vector<2xf32> to vector<2x1xf32>
    %1003 = vector.broadcast %1002 : vector<2x1xf32> to vector<2x128xf32>
    %1004 = arith.subf %1000, %1003 : vector<2x128xf32>
    %1005 = math.exp %1004 : vector<2x128xf32>
    %cst_374 = arith.constant dense<0.000000e+00> : vector<2xf32>
    %1006 = vector.multi_reduction <add>, %1005, %cst_374 [1] : vector<2x128xf32> to vector<2xf32>
    %1007 = vector.shape_cast %1006 : vector<2xf32> to vector<2x1xf32>
    %1008 = vector.broadcast %1007 : vector<2x1xf32> to vector<2x128xf32>
    %1009 = arith.divf %1005, %1008 : vector<2x128xf32>
    %c0_375 = arith.constant 0 : index
    %c0_376 = arith.constant 0 : index
    %1010 = vector.load %arg10[%c0_375, %c0_376] : memref<2x128xf32, #tpu.memory_space<vmem>>, vector<2x128xf32>
    tpu.vector_store %arg10[%c0_375, %c0_376], %1009 {strides = array<i32>} : memref<2x128xf32, #tpu.memory_space<vmem>>, vector<2x128xf32>,
    return
  }
  func.func @transform_0(%arg0: i32) -> (i32, i32) {
    %c0_i32 = arith.constant 0 : i32
    %c0_i32_0 = arith.constant 0 : i32
    %c0_i32_1 = arith.constant 0 : i32
    return %c0_i32, %c0_i32_0 : i32, i32
  }
  func.func @transform_1(%arg0: i32) -> i32 {
    %c0_i32 = arith.constant 0 : i32
    %c0_i32_0 = arith.constant 0 : i32
    return %c0_i32 : i32
  }
  func.func @transform_2(%arg0: i32) -> i32 {
    %c0_i32 = arith.constant 0 : i32
    %c0_i32_0 = arith.constant 0 : i32
    return %c0_i32 : i32
  }
  func.func @transform_3(%arg0: i32) -> i32 {
    %c0_i32 = arith.constant 0 : i32
    %c0_i32_0 = arith.constant 0 : i32
    return %c0_i32 : i32
  }
  func.func @transform_4(%arg0: i32) -> i32 {
    %c0_i32 = arith.constant 0 : i32
    %c0_i32_0 = arith.constant 0 : i32
    return %c0_i32 : i32
  }
  func.func @transform_6(%arg0: i32) -> (i32, i32) {
    %c0_i32 = arith.constant 0 : i32
    %c0_i32_0 = arith.constant 0 : i32
    %c0_i32_1 = arith.constant 0 : i32
    return %c0_i32, %c0_i32_0 : i32, i32
  }
  func.func @transform_7(%arg0: i32) -> (i32, i32) {
    %c0_i32 = arith.constant 0 : i32
    %c0_i32_0 = arith.constant 0 : i32
    %c0_i32_1 = arith.constant 0 : i32
    return %c0_i32, %c0_i32_0 : i32, i32
  }
  func.func @transform_8(%arg0: i32) -> (i32, i32) {
    %c0_i32 = arith.constant 0 : i32
    %c0_i32_0 = arith.constant 0 : i32
    %c0_i32_1 = arith.constant 0 : i32
    return %c0_i32, %c0_i32_0 : i32, i32
  }
  func.func @transform_9(%arg0: i32) -> (i32, i32) {
    %c0_i32 = arith.constant 0 : i32
    %c0_i32_0 = arith.constant 0 : i32
    %c0_i32_1 = arith.constant 0 : i32
    return %c0_i32, %c0_i32_0 : i32, i32
  }
}

</mosaic_0001>

<llo_original>
// kernel: actor_forward.1
$region0: #{actor_forward.1}
  #allocation0 [shape = 'u32[]', space=smem, size = 0x4, offset = 0x4, fixed_abs, tag = 'smem constant byte address 0x4 - core index']
  #allocation1 [shape = 'u32[144,128]{1,0:T(1,128)}', space=vmem, size = 0x12000, scoped, tag = 'internal scratch']
  #allocation2 [shape = 'bf16[2,1152,128]{2,1,0:T(16,128)(2,1)}', space=vmem, size = 0x90000, scoped, tag = 'scratch operand']
  #allocation3 [shape = 's32[2]{0}', space=sflag, size = 0x8, scoped, tag = 'scratch operand']
  #allocation13 [shape = 's32[]', space=sflag, size = 0x4, offset = 0, fixed_abs, tag = 'sflag constant byte address 0x0 - dummy sync flag']
  #allocation14 [shape = 's32[]', space=sflag, size = 0x4, offset = 0, fixed_abs, tag = 'sflag constant byte address 0x0 - dummy sync flag']
  %s0 = inlined_call_operand.vmem [shape: f32[40,384], index: 0, kind: input, shape index: {}]
  %s1 = inlined_call_operand.vmem [shape: f32[24], index: 1, kind: input, shape index: {}]
  %s2 = inlined_call_operand.vmem [shape: f32[4], index: 2, kind: input, shape index: {}]
  %s3 = inlined_call_operand.vmem [shape: f32[96], index: 3, kind: input, shape index: {}]
  %s4 = inlined_call_operand.vmem [shape: f32[6], index: 4, kind: input, shape index: {}]
  %s5 = inlined_call_operand.vmem [shape: bf16[2,1152,128], index: 5, kind: input, shape index: {}]
  %s6 = inlined_call_operand.vmem [shape: f32[1,128], index: 6, kind: input, shape index: {}]
  %s7 = inlined_call_operand.vmem [shape: f32[128,128], index: 7, kind: input, shape index: {}]
  %s8 = inlined_call_operand.vmem [shape: f32[1,128], index: 8, kind: input, shape index: {}]
  %s9 = inlined_call_operand.hbm [shape: f32[2,128], index: 9, kind: output, shape index: {}]
  %s10 = sld [smem:[#allocation0]]
  $region126: #{actor_forward.1} parent=0
    _
  %s12 = ssub.s32 1, %s10
  %s13 = scalar_select 0, %s12, %s10
  $region1: #{actor_forward.1} parent=0
    #allocation4 [shape = 'u8[512]{0}', space=smem, size = 0x200, scoped, tag = 'input window, operand 1, single buffered']
    #allocation5 [shape = 's32[1]{0}', space=sflag, size = 0x4, scoped, tag = 'scoped memory for actor_forward.1']
    #allocation6 [shape = 's32[1]{0}', space=sflag, size = 0x4, scoped, tag = 'scoped memory for actor_forward.1']
    #allocation7 [shape = 'u8[512]{0}', space=smem, size = 0x200, scoped, tag = 'input window, operand 2, single buffered']
    #allocation8 [shape = 's32[1]{0}', space=sflag, size = 0x4, scoped, tag = 'scoped memory for actor_forward.1']
    #allocation9 [shape = 'u8[512]{0}', space=smem, size = 0x200, scoped, tag = 'input window, operand 3, single buffered']
    #allocation10 [shape = 'u8[512]{0}', space=smem, size = 0x200, scoped, tag = 'input window, operand 4, single buffered']
    #allocation11 [shape = 's32[1]{0}', space=sflag, size = 0x4, scoped, tag = 'scoped memory for actor_forward.1']
    #allocation12 [shape = 'u8[1024]{0}', space=vmem, size = 0x400, scoped, tag = 'output window, operand 0, single buffered']
    %14 = vsyncpa [#allocation6], 0
    %15 = vsyncpa [#allocation8], 0
    %16 = vsyncpa [#allocation11], 0
    %17 = vsyncpa [#allocation5], 0
    // Predicated region
    $region2: #{actor_forward.1} parent=1 // pred_check
      _
    $region3: #{actor_forward.1} parent=1 // pred_check_branch
      %19 = sbr.rel (0) target = $region5
    $region4: #{actor_forward.1} parent=1 // pred_region
      _
    $region5: #{actor_forward.1} parent=1 // pred_fallthru
      _
    // Predicated region
    $region6: #{actor_forward.1} parent=1 // pred_check
      _
    $region7: #{actor_forward.1} parent=1 // pred_check_branch
      %21 = sbr.rel (0) target = $region9
    $region8: #{actor_forward.1} parent=1 // pred_region
      %s23 = ssub.s32 16, 16
      %24 = vsyncadd [#allocation6], %s23
      %s26 = sshll.u32 %s1, 4
      %s27 = int_to_ptr.vmem [resolvable:$true] %s26
      %29 = dma.vmem_to_smem %s27, 16, [#allocation4], [#allocation6]
    $region9: #{actor_forward.1} parent=1 // pred_fallthru
      _
    // Predicated region
    $region10: #{actor_forward.1} parent=1 // pred_check
      _
    $region11: #{actor_forward.1} parent=1 // pred_check_branch
      %31 = sbr.rel (0) target = $region13
    $region12: #{actor_forward.1} parent=1 // pred_region
      %s33 = ssub.s32 16, 16
      %34 = vsyncadd [#allocation8], %s33
      %s36 = sshll.u32 %s2, 4
      %s37 = int_to_ptr.vmem [resolvable:$true] %s36
      %39 = dma.vmem_to_smem %s37, 16, [#allocation7], [#allocation8]
    $region13: #{actor_forward.1} parent=1 // pred_fallthru
      _
    // Predicated region
    $region14: #{actor_forward.1} parent=1 // pred_check
      _
    $region15: #{actor_forward.1} parent=1 // pred_check_branch
      %41 = sbr.rel (0) target = $region17
    $region16: #{actor_forward.1} parent=1 // pred_region
      %s43 = ssub.s32 16, 16
      %44 = vsyncadd [#allocation8], %s43
      %s46 = sshll.u32 %s3, 4
      %s47 = int_to_ptr.vmem [resolvable:$true] %s46
      %49 = dma.vmem_to_smem %s47, 16, [#allocation9], [#allocation8]
    $region17: #{actor_forward.1} parent=1 // pred_fallthru
      _
    // Predicated region
    $region18: #{actor_forward.1} parent=1 // pred_check
      _
    $region19: #{actor_forward.1} parent=1 // pred_check_branch
      %51 = sbr.rel (0) target = $region21
    $region20: #{actor_forward.1} parent=1 // pred_region
      %s53 = ssub.s32 16, 16
      %54 = vsyncadd [#allocation11], %s53
      %s56 = sshll.u32 %s4, 4
      %s57 = int_to_ptr.vmem [resolvable:$true] %s56
      %59 = dma.vmem_to_smem %s57, 16, [#allocation10], [#allocation11]
    $region21: #{actor_forward.1} parent=1 // pred_fallthru
      _
    // Predicated region
    $region22: #{actor_forward.1} parent=1 // pred_check
      _
    $region23: #{actor_forward.1} parent=1 // pred_check_branch
      %61 = sbr.rel (0) target = $region25
    $region24: #{actor_forward.1} parent=1 // pred_region
      _
    $region25: #{actor_forward.1} parent=1 // pred_fallthru
      _
    // Predicated region
    $region26: #{actor_forward.1} parent=1 // pred_check
      _
    $region27: #{actor_forward.1} parent=1 // pred_check_branch
      %63 = sbr.rel (0) target = $region29
    $region28: #{actor_forward.1} parent=1 // pred_region
      _
    $region29: #{actor_forward.1} parent=1 // pred_fallthru
      _
    // Predicated region
    $region30: #{actor_forward.1} parent=1 // pred_check
      _
    $region31: #{actor_forward.1} parent=1 // pred_check_branch
      %65 = sbr.rel (0) target = $region33
    $region32: #{actor_forward.1} parent=1 // pred_region
      _
    $region33: #{actor_forward.1} parent=1 // pred_fallthru
      _
    // Predicated region
    $region34: #{actor_forward.1} parent=1 // pred_check
      _
    $region35: #{actor_forward.1} parent=1 // pred_check_branch
      %67 = sbr.rel (0) target = $region37
    $region36: #{actor_forward.1} parent=1 // pred_region
      %68 = dma.done [#allocation6], 16
    $region37: #{actor_forward.1} parent=1 // pred_fallthru
      _
    // Predicated region
    $region38: #{actor_forward.1} parent=1 // pred_check
      _
    $region39: #{actor_forward.1} parent=1 // pred_check_branch
      %70 = sbr.rel (0) target = $region41
    $region40: #{actor_forward.1} parent=1 // pred_region
      %71 = dma.done [#allocation8], 16
    $region41: #{actor_forward.1} parent=1 // pred_fallthru
      _
    // Predicated region
    $region42: #{actor_forward.1} parent=1 // pred_check
      _
    $region43: #{actor_forward.1} parent=1 // pred_check_branch
      %73 = sbr.rel (0) target = $region45
    $region44: #{actor_forward.1} parent=1 // pred_region
      %74 = dma.done [#allocation8], 16
    $region45: #{actor_forward.1} parent=1 // pred_fallthru
      _
    // Predicated region
    $region46: #{actor_forward.1} parent=1 // pred_check
      _
    $region47: #{actor_forward.1} parent=1 // pred_check_branch
      %76 = sbr.rel (0) target = $region49
    $region48: #{actor_forward.1} parent=1 // pred_region
      %77 = dma.done [#allocation11], 16
    $region49: #{actor_forward.1} parent=1 // pred_fallthru
      _
    %78 = sfence
    %p81 = scmp.lt.u32.totalorder 576, 8
    %p82 = pneg %p81
    // Predicated region
    $region50: #{actor_forward.1} parent=1 // pred_check
      _
    $region51: #{actor_forward.1} parent=1 // pred_check_branch
      %84 = sbr.rel (%p81) target = $region53
    $region52: #{actor_forward.1} parent=1 // pred_region
      %s99 = sand.u32 576, 7
      %p100 = scmp.eq.s32.totalorder %s99, 0
      // Predicated region
      $region65: #{actor_forward.1} parent=52 // pred_check
        %p101 = pneg %p100
      $region66: #{actor_forward.1} parent=52 // pred_check_branch
        %103 = sbr.rel (%p101) target = $region68
      $region67: #{actor_forward.1} parent=52 // pred_region
        loop: start=0, step=1, limit=1
        $region69: #{actor_forward.1} parent=67 // loop_pre_header
          _
        $region70: #{actor_forward.1} parent=67 // loop_header
          %s105 = sphi 0, %s109
          %p106 = scmp.ge.s32.totalorder %s105, 1
          %s110 = sphi %s5, %s5
          %s111 = sphi [#allocation2], [#allocation2]
        $region71: #{actor_forward.1} parent=67 // loop_header_branch
          %108 = sbr.rel (%p106) target = $region75
        $region72: #{actor_forward.1} parent=67 // loop_body
          %v112 = vld [vmem:[%s110] sm:$0xff]
          %113 = vst [vmem:[%s111] sm:$0xff] %v112
          %v114 = vld [vmem:[%s110 + $0x8] sm:$0xff]
          %115 = vst [vmem:[%s111 + $0x8] sm:$0xff] %v114
          %v116 = vld [vmem:[%s110 + $0x10] sm:$0xff]
          %117 = vst [vmem:[%s111 + $0x10] sm:$0xff] %v116
          %v118 = vld [vmem:[%s110 + $0x18] sm:$0xff]
          %119 = vst [vmem:[%s111 + $0x18] sm:$0xff] %v118
          %v120 = vld [vmem:[%s110 + $0x20] sm:$0xff]
          %121 = vst [vmem:[%s111 + $0x20] sm:$0xff] %v120
          %v122 = vld [vmem:[%s110 + $0x28] sm:$0xff]
          %123 = vst [vmem:[%s111 + $0x28] sm:$0xff] %v122
          %v124 = vld [vmem:[%s110 + $0x30] sm:$0xff]
          %125 = vst [vmem:[%s111 + $0x30] sm:$0xff] %v124
          %v126 = vld [vmem:[%s110 + $0x38] sm:$0xff]
          %127 = vst [vmem:[%s111 + $0x38] sm:$0xff] %v126
          %v128 = vld [vmem:[%s110 + $0x40] sm:$0xff]
          %129 = vst [vmem:[%s111 + $0x40] sm:$0xff] %v128
          %v130 = vld [vmem:[%s110 + $0x48] sm:$0xff]
          %131 = vst [vmem:[%s111 + $0x48] sm:$0xff] %v130
          %v132 = vld [vmem:[%s110 + $0x50] sm:$0xff]
          %133 = vst [vmem:[%s111 + $0x50] sm:$0xff] %v132
          %v134 = vld [vmem:[%s110 + $0x58] sm:$0xff]
          %135 = vst [vmem:[%s111 + $0x58] sm:$0xff] %v134
          %v136 = vld [vmem:[%s110 + $0x60] sm:$0xff]
          %137 = vst [vmem:[%s111 + $0x60] sm:$0xff] %v136
          %v138 = vld [vmem:[%s110 + $0x68] sm:$0xff]
          %139 = vst [vmem:[%s111 + $0x68] sm:$0xff] %v138
          %v140 = vld [vmem:[%s110 + $0x70] sm:$0xff]
          %141 = vst [vmem:[%s111 + $0x70] sm:$0xff] %v140
          %v142 = vld [vmem:[%s110 + $0x78] sm:$0xff]
          %143 = vst [vmem:[%s111 + $0x78] sm:$0xff] %v142
          %v144 = vld [vmem:[%s110 + $0x80] sm:$0xff]
          %145 = vst [vmem:[%s111 + $0x80] sm:$0xff] %v144
          %v146 = vld [vmem:[%s110 + $0x88] sm:$0xff]
          %147 = vst [vmem:[%s111 + $0x88] sm:$0xff] %v146
          %v148 = vld [vmem:[%s110 + $0x90] sm:$0xff]
          %149 = vst [vmem:[%s111 + $0x90] sm:$0xff] %v148
          %v150 = vld [vmem:[%s110 + $0x98] sm:$0xff]
          %151 = vst [vmem:[%s111 + $0x98] sm:$0xff] %v150
          %v152 = vld [vmem:[%s110 + $0xa0] sm:$0xff]
          %153 = vst [vmem:[%s111 + $0xa0] sm:$0xff] %v152
          %v154 = vld [vmem:[%s110 + $0xa8] sm:$0xff]
          %155 = vst [vmem:[%s111 + $0xa8] sm:$0xff] %v154
          %v156 = vld [vmem:[%s110 + $0xb0] sm:$0xff]
          %157 = vst [vmem:[%s111 + $0xb0] sm:$0xff] %v156
          %v158 = vld [vmem:[%s110 + $0xb8] sm:$0xff]
          %159 = vst [vmem:[%s111 + $0xb8] sm:$0xff] %v158
          %v160 = vld [vmem:[%s110 + $0xc0] sm:$0xff]
          %161 = vst [vmem:[%s111 + $0xc0] sm:$0xff] %v160
          %v162 = vld [vmem:[%s110 + $0xc8] sm:$0xff]
          %163 = vst [vmem:[%s111 + $0xc8] sm:$0xff] %v162
          %v164 = vld [vmem:[%s110 + $0xd0] sm:$0xff]
          %165 = vst [vmem:[%s111 + $0xd0] sm:$0xff] %v164
          %v166 = vld [vmem:[%s110 + $0xd8] sm:$0xff]
          %167 = vst [vmem:[%s111 + $0xd8] sm:$0xff] %v166
          %v168 = vld [vmem:[%s110 + $0xe0] sm:$0xff]
          %169 = vst [vmem:[%s111 + $0xe0] sm:$0xff] %v168
          %v170 = vld [vmem:[%s110 + $0xe8] sm:$0xff]
          %171 = vst [vmem:[%s111 + $0xe8] sm:$0xff] %v170
          %v172 = vld [vmem:[%s110 + $0xf0] sm:$0xff]
          %173 = vst [vmem:[%s111 + $0xf0] sm:$0xff] %v172
          %v174 = vld [vmem:[%s110 + $0xf8] sm:$0xff]
          %175 = vst [vmem:[%s111 + $0xf8] sm:$0xff] %v174
          %v176 = vld [vmem:[%s110 + $0x100] sm:$0xff]
          %177 = vst [vmem:[%s111 + $0x100] sm:$0xff] %v176
          %v178 = vld [vmem:[%s110 + $0x108] sm:$0xff]
          %179 = vst [vmem:[%s111 + $0x108] sm:$0xff] %v178
          %v180 = vld [vmem:[%s110 + $0x110] sm:$0xff]
          %181 = vst [vmem:[%s111 + $0x110] sm:$0xff] %v180
          %v182 = vld [vmem:[%s110 + $0x118] sm:$0xff]
          %183 = vst [vmem:[%s111 + $0x118] sm:$0xff] %v182
          %v184 = vld [vmem:[%s110 + $0x120] sm:$0xff]
          %185 = vst [vmem:[%s111 + $0x120] sm:$0xff] %v184
          %v186 = vld [vmem:[%s110 + $0x128] sm:$0xff]
          %187 = vst [vmem:[%s111 + $0x128] sm:$0xff] %v186
          %v188 = vld [vmem:[%s110 + $0x130] sm:$0xff]
          %189 = vst [vmem:[%s111 + $0x130] sm:$0xff] %v188
          %v190 = vld [vmem:[%s110 + $0x138] sm:$0xff]
          %191 = vst [vmem:[%s111 + $0x138] sm:$0xff] %v190
          %v192 = vld [vmem:[%s110 + $0x140] sm:$0xff]
          %193 = vst [vmem:[%s111 + $0x140] sm:$0xff] %v192
          %v194 = vld [vmem:[%s110 + $0x148] sm:$0xff]
          %195 = vst [vmem:[%s111 + $0x148] sm:$0xff] %v194
          %v196 = vld [vmem:[%s110 + $0x150] sm:$0xff]
          %197 = vst [vmem:[%s111 + $0x150] sm:$0xff] %v196
          %v198 = vld [vmem:[%s110 + $0x158] sm:$0xff]
          %199 = vst [vmem:[%s111 + $0x158] sm:$0xff] %v198
          %v200 = vld [vmem:[%s110 + $0x160] sm:$0xff]
          %201 = vst [vmem:[%s111 + $0x160] sm:$0xff] %v200
          %v202 = vld [vmem:[%s110 + $0x168] sm:$0xff]
          %203 = vst [vmem:[%s111 + $0x168] sm:$0xff] %v202
          %v204 = vld [vmem:[%s110 + $0x170] sm:$0xff]
          %205 = vst [vmem:[%s111 + $0x170] sm:$0xff] %v204
          %v206 = vld [vmem:[%s110 + $0x178] sm:$0xff]
          %207 = vst [vmem:[%s111 + $0x178] sm:$0xff] %v206
          %v208 = vld [vmem:[%s110 + $0x180] sm:$0xff]
          %209 = vst [vmem:[%s111 + $0x180] sm:$0xff] %v208
          %v210 = vld [vmem:[%s110 + $0x188] sm:$0xff]
          %211 = vst [vmem:[%s111 + $0x188] sm:$0xff] %v210
          %v212 = vld [vmem:[%s110 + $0x190] sm:$0xff]
          %213 = vst [vmem:[%s111 + $0x190] sm:$0xff] %v212
          %v214 = vld [vmem:[%s110 + $0x198] sm:$0xff]
          %215 = vst [vmem:[%s111 + $0x198] sm:$0xff] %v214
          %v216 = vld [vmem:[%s110 + $0x1a0] sm:$0xff]
          %217 = vst [vmem:[%s111 + $0x1a0] sm:$0xff] %v216
          %v218 = vld [vmem:[%s110 + $0x1a8] sm:$0xff]
          %219 = vst [vmem:[%s111 + $0x1a8] sm:$0xff] %v218
          %v220 = vld [vmem:[%s110 + $0x1b0] sm:$0xff]
          %221 = vst [vmem:[%s111 + $0x1b0] sm:$0xff] %v220
          %v222 = vld [vmem:[%s110 + $0x1b8] sm:$0xff]
          %223 = vst [vmem:[%s111 + $0x1b8] sm:$0xff] %v222
          %v224 = vld [vmem:[%s110 + $0x1c0] sm:$0xff]
          %225 = vst [vmem:[%s111 + $0x1c0] sm:$0xff] %v224
          %v226 = vld [vmem:[%s110 + $0x1c8] sm:$0xff]
          %227 = vst [vmem:[%s111 + $0x1c8] sm:$0xff] %v226
          %v228 = vld [vmem:[%s110 + $0x1d0] sm:$0xff]
          %229 = vst [vmem:[%s111 + $0x1d0] sm:$0xff] %v228
          %v230 = vld [vmem:[%s110 + $0x1d8] sm:$0xff]
          %231 = vst [vmem:[%s111 + $0x1d8] sm:$0xff] %v230
          %v232 = vld [vmem:[%s110 + $0x1e0] sm:$0xff]
          %233 = vst [vmem:[%s111 + $0x1e0] sm:$0xff] %v232
          %v234 = vld [vmem:[%s110 + $0x1e8] sm:$0xff]
          %235 = vst [vmem:[%s111 + $0x1e8] sm:$0xff] %v234
          %v236 = vld [vmem:[%s110 + $0x1f0] sm:$0xff]
          %237 = vst [vmem:[%s111 + $0x1f0] sm:$0xff] %v236
          %v238 = vld [vmem:[%s110 + $0x1f8] sm:$0xff]
          %239 = vst [vmem:[%s111 + $0x1f8] sm:$0xff] %v238
          %v240 = vld [vmem:[%s110 + $0x200] sm:$0xff]
          %241 = vst [vmem:[%s111 + $0x200] sm:$0xff] %v240
          %v242 = vld [vmem:[%s110 + $0x208] sm:$0xff]
          %243 = vst [vmem:[%s111 + $0x208] sm:$0xff] %v242
          %v244 = vld [vmem:[%s110 + $0x210] sm:$0xff]
          %245 = vst [vmem:[%s111 + $0x210] sm:$0xff] %v244
          %v246 = vld [vmem:[%s110 + $0x218] sm:$0xff]
          %247 = vst [vmem:[%s111 + $0x218] sm:$0xff] %v246
          %v248 = vld [vmem:[%s110 + $0x220] sm:$0xff]
          %249 = vst [vmem:[%s111 + $0x220] sm:$0xff] %v248
          %v250 = vld [vmem:[%s110 + $0x228] sm:$0xff]
          %251 = vst [vmem:[%s111 + $0x228] sm:$0xff] %v250
          %v252 = vld [vmem:[%s110 + $0x230] sm:$0xff]
          %253 = vst [vmem:[%s111 + $0x230] sm:$0xff] %v252
          %v254 = vld [vmem:[%s110 + $0x238] sm:$0xff]
          %255 = vst [vmem:[%s111 + $0x238] sm:$0xff] %v254
        $region73: #{actor_forward.1} parent=67 // loop_footer
          %s109 = sadd.s32 1, %s105
        $region74: #{actor_forward.1} parent=67 // loop_footer_branch
          %104 = sbr.rel target = $region70
        $region75: #{actor_forward.1} parent=67 // loop_exit
          _
      $region68: #{actor_forward.1} parent=52 // pred_fallthru
        _
      %p256 = pneg %p100
      // Predicated region
      $region76: #{actor_forward.1} parent=52 // pred_check
        _
      $region77: #{actor_forward.1} parent=52 // pred_check_branch
        %258 = sbr.rel (%p100) target = $region79
      $region78: #{actor_forward.1} parent=52 // pred_region
        %s259 = sand.u32 576, 7
      $region79: #{actor_forward.1} parent=52 // pred_fallthru
        _
    $region53: #{actor_forward.1} parent=1 // pred_fallthru
      _
    // Predicated region
    $region54: #{actor_forward.1} parent=1 // pred_check
      %p85 = pneg %p81
    $region55: #{actor_forward.1} parent=1 // pred_check_branch
      %87 = sbr.rel (%p85) target = $region57
    $region56: #{actor_forward.1} parent=1 // pred_region
      %s88 = sshllo.u32 0, 576
      loop: start=0, step=1, limit=1
      $region58: #{actor_forward.1} parent=56 // loop_pre_header
        _
      $region59: #{actor_forward.1} parent=56 // loop_header
        %s90 = sphi 0, %s94
        %p91 = scmp.ge.s32.totalorder %s90, 1
        %s95 = sphi %s5, %s5
        %s96 = sphi [#allocation2], [#allocation2]
      $region60: #{actor_forward.1} parent=56 // loop_header_branch
        %93 = sbr.rel (%p91) target = $region64
      $region61: #{actor_forward.1} parent=56 // loop_body
        %v97 = vld [vmem:[%s95] sm:%s88]
        %98 = vst [vmem:[%s96] sm:%s88] %v97
      $region62: #{actor_forward.1} parent=56 // loop_footer
        %s94 = sadd.s32 1, %s90
      $region63: #{actor_forward.1} parent=56 // loop_footer_branch
        %89 = sbr.rel target = $region59
      $region64: #{actor_forward.1} parent=56 // loop_exit
        _
    $region57: #{actor_forward.1} parent=1 // pred_fallthru
      _
    // Predicated region
    $region80: #{actor_forward.1} parent=1 // pred_check
      _
    $region81: #{actor_forward.1} parent=1 // pred_check_branch
      %262 = sbr.rel (0) target = $region83
    $region82: #{actor_forward.1} parent=1 // pred_region
      %263 = vsyncadd [#allocation3], 9216
    $region83: #{actor_forward.1} parent=1 // pred_fallthru
      _
    %s264 = scalar_lea.vmem %s5, 576
    %s265 = scalar_lea.vmem [#allocation2], 576
    %s266 = scalar_lea.sflag [#allocation3], 1
    %p268 = scmp.lt.u32.totalorder 576, 8
    %p269 = pneg %p268
    // Predicated region
    $region84: #{actor_forward.1} parent=1 // pred_check
      _
    $region85: #{actor_forward.1} parent=1 // pred_check_branch
      %271 = sbr.rel (%p268) target = $region87
    $region86: #{actor_forward.1} parent=1 // pred_region
      %s286 = sand.u32 576, 7
      %p287 = scmp.eq.s32.totalorder %s286, 0
      // Predicated region
      $region99: #{actor_forward.1} parent=86 // pred_check
        %p288 = pneg %p287
      $region100: #{actor_forward.1} parent=86 // pred_check_branch
        %290 = sbr.rel (%p288) target = $region102
      $region101: #{actor_forward.1} parent=86 // pred_region
        loop: start=0, step=1, limit=1
        $region103: #{actor_forward.1} parent=101 // loop_pre_header
          _
        $region104: #{actor_forward.1} parent=101 // loop_header
          %s292 = sphi 0, %s296
          %p293 = scmp.ge.s32.totalorder %s292, 1
          %s297 = sphi %s264, %s264
          %s298 = sphi %s265, %s265
        $region105: #{actor_forward.1} parent=101 // loop_header_branch
          %295 = sbr.rel (%p293) target = $region109
        $region106: #{actor_forward.1} parent=101 // loop_body
          %v299 = vld [vmem:[%s297] sm:$0xff]
          %300 = vst [vmem:[%s298] sm:$0xff] %v299
          %v301 = vld [vmem:[%s297 + $0x8] sm:$0xff]
          %302 = vst [vmem:[%s298 + $0x8] sm:$0xff] %v301
          %v303 = vld [vmem:[%s297 + $0x10] sm:$0xff]
          %304 = vst [vmem:[%s298 + $0x10] sm:$0xff] %v303
          %v305 = vld [vmem:[%s297 + $0x18] sm:$0xff]
          %306 = vst [vmem:[%s298 + $0x18] sm:$0xff] %v305
          %v307 = vld [vmem:[%s297 + $0x20] sm:$0xff]
          %308 = vst [vmem:[%s298 + $0x20] sm:$0xff] %v307
          %v309 = vld [vmem:[%s297 + $0x28] sm:$0xff]
          %310 = vst [vmem:[%s298 + $0x28] sm:$0xff] %v309
          %v311 = vld [vmem:[%s297 + $0x30] sm:$0xff]
          %312 = vst [vmem:[%s298 + $0x30] sm:$0xff] %v311
          %v313 = vld [vmem:[%s297 + $0x38] sm:$0xff]
          %314 = vst [vmem:[%s298 + $0x38] sm:$0xff] %v313
          %v315 = vld [vmem:[%s297 + $0x40] sm:$0xff]
          %316 = vst [vmem:[%s298 + $0x40] sm:$0xff] %v315
          %v317 = vld [vmem:[%s297 + $0x48] sm:$0xff]
          %318 = vst [vmem:[%s298 + $0x48] sm:$0xff] %v317
          %v319 = vld [vmem:[%s297 + $0x50] sm:$0xff]
          %320 = vst [vmem:[%s298 + $0x50] sm:$0xff] %v319
          %v321 = vld [vmem:[%s297 + $0x58] sm:$0xff]
          %322 = vst [vmem:[%s298 + $0x58] sm:$0xff] %v321
          %v323 = vld [vmem:[%s297 + $0x60] sm:$0xff]
          %324 = vst [vmem:[%s298 + $0x60] sm:$0xff] %v323
          %v325 = vld [vmem:[%s297 + $0x68] sm:$0xff]
          %326 = vst [vmem:[%s298 + $0x68] sm:$0xff] %v325
          %v327 = vld [vmem:[%s297 + $0x70] sm:$0xff]
          %328 = vst [vmem:[%s298 + $0x70] sm:$0xff] %v327
          %v329 = vld [vmem:[%s297 + $0x78] sm:$0xff]
          %330 = vst [vmem:[%s298 + $0x78] sm:$0xff] %v329
          %v331 = vld [vmem:[%s297 + $0x80] sm:$0xff]
          %332 = vst [vmem:[%s298 + $0x80] sm:$0xff] %v331
          %v333 = vld [vmem:[%s297 + $0x88] sm:$0xff]
          %334 = vst [vmem:[%s298 + $0x88] sm:$0xff] %v333
          %v335 = vld [vmem:[%s297 + $0x90] sm:$0xff]
          %336 = vst [vmem:[%s298 + $0x90] sm:$0xff] %v335
          %v337 = vld [vmem:[%s297 + $0x98] sm:$0xff]
          %338 = vst [vmem:[%s298 + $0x98] sm:$0xff] %v337
          %v339 = vld [vmem:[%s297 + $0xa0] sm:$0xff]
          %340 = vst [vmem:[%s298 + $0xa0] sm:$0xff] %v339
          %v341 = vld [vmem:[%s297 + $0xa8] sm:$0xff]
          %342 = vst [vmem:[%s298 + $0xa8] sm:$0xff] %v341
          %v343 = vld [vmem:[%s297 + $0xb0] sm:$0xff]
          %344 = vst [vmem:[%s298 + $0xb0] sm:$0xff] %v343
          %v345 = vld [vmem:[%s297 + $0xb8] sm:$0xff]
          %346 = vst [vmem:[%s298 + $0xb8] sm:$0xff] %v345
          %v347 = vld [vmem:[%s297 + $0xc0] sm:$0xff]
          %348 = vst [vmem:[%s298 + $0xc0] sm:$0xff] %v347
          %v349 = vld [vmem:[%s297 + $0xc8] sm:$0xff]
          %350 = vst [vmem:[%s298 + $0xc8] sm:$0xff] %v349
          %v351 = vld [vmem:[%s297 + $0xd0] sm:$0xff]
          %352 = vst [vmem:[%s298 + $0xd0] sm:$0xff] %v351
          %v353 = vld [vmem:[%s297 + $0xd8] sm:$0xff]
          %354 = vst [vmem:[%s298 + $0xd8] sm:$0xff] %v353
          %v355 = vld [vmem:[%s297 + $0xe0] sm:$0xff]
          %356 = vst [vmem:[%s298 + $0xe0] sm:$0xff] %v355
          %v357 = vld [vmem:[%s297 + $0xe8] sm:$0xff]
          %358 = vst [vmem:[%s298 + $0xe8] sm:$0xff] %v357
          %v359 = vld [vmem:[%s297 + $0xf0] sm:$0xff]
          %360 = vst [vmem:[%s298 + $0xf0] sm:$0xff] %v359
          %v361 = vld [vmem:[%s297 + $0xf8] sm:$0xff]
          %362 = vst [vmem:[%s298 + $0xf8] sm:$0xff] %v361
          %v363 = vld [vmem:[%s297 + $0x100] sm:$0xff]
          %364 = vst [vmem:[%s298 + $0x100] sm:$0xff] %v363
          %v365 = vld [vmem:[%s297 + $0x108] sm:$0xff]
          %366 = vst [vmem:[%s298 + $0x108] sm:$0xff] %v365
          %v367 = vld [vmem:[%s297 + $0x110] sm:$0xff]
          %368 = vst [vmem:[%s298 + $0x110] sm:$0xff] %v367
          %v369 = vld [vmem:[%s297 + $0x118] sm:$0xff]
          %370 = vst [vmem:[%s298 + $0x118] sm:$0xff] %v369
          %v371 = vld [vmem:[%s297 + $0x120] sm:$0xff]
          %372 = vst [vmem:[%s298 + $0x120] sm:$0xff] %v371
          %v373 = vld [vmem:[%s297 + $0x128] sm:$0xff]
          %374 = vst [vmem:[%s298 + $0x128] sm:$0xff] %v373
          %v375 = vld [vmem:[%s297 + $0x130] sm:$0xff]
          %376 = vst [vmem:[%s298 + $0x130] sm:$0xff] %v375
          %v377 = vld [vmem:[%s297 + $0x138] sm:$0xff]
          %378 = vst [vmem:[%s298 + $0x138] sm:$0xff] %v377
          %v379 = vld [vmem:[%s297 + $0x140] sm:$0xff]
          %380 = vst [vmem:[%s298 + $0x140] sm:$0xff] %v379
          %v381 = vld [vmem:[%s297 + $0x148] sm:$0xff]
          %382 = vst [vmem:[%s298 + $0x148] sm:$0xff] %v381
          %v383 = vld [vmem:[%s297 + $0x150] sm:$0xff]
          %384 = vst [vmem:[%s298 + $0x150] sm:$0xff] %v383
          %v385 = vld [vmem:[%s297 + $0x158] sm:$0xff]
          %386 = vst [vmem:[%s298 + $0x158] sm:$0xff] %v385
          %v387 = vld [vmem:[%s297 + $0x160] sm:$0xff]
          %388 = vst [vmem:[%s298 + $0x160] sm:$0xff] %v387
          %v389 = vld [vmem:[%s297 + $0x168] sm:$0xff]
          %390 = vst [vmem:[%s298 + $0x168] sm:$0xff] %v389
          %v391 = vld [vmem:[%s297 + $0x170] sm:$0xff]
          %392 = vst [vmem:[%s298 + $0x170] sm:$0xff] %v391
          %v393 = vld [vmem:[%s297 + $0x178] sm:$0xff]
          %394 = vst [vmem:[%s298 + $0x178] sm:$0xff] %v393
          %v395 = vld [vmem:[%s297 + $0x180] sm:$0xff]
          %396 = vst [vmem:[%s298 + $0x180] sm:$0xff] %v395
          %v397 = vld [vmem:[%s297 + $0x188] sm:$0xff]
          %398 = vst [vmem:[%s298 + $0x188] sm:$0xff] %v397
          %v399 = vld [vmem:[%s297 + $0x190] sm:$0xff]
          %400 = vst [vmem:[%s298 + $0x190] sm:$0xff] %v399
          %v401 = vld [vmem:[%s297 + $0x198] sm:$0xff]
          %402 = vst [vmem:[%s298 + $0x198] sm:$0xff] %v401
          %v403 = vld [vmem:[%s297 + $0x1a0] sm:$0xff]
          %404 = vst [vmem:[%s298 + $0x1a0] sm:$0xff] %v403
          %v405 = vld [vmem:[%s297 + $0x1a8] sm:$0xff]
          %406 = vst [vmem:[%s298 + $0x1a8] sm:$0xff] %v405
          %v407 = vld [vmem:[%s297 + $0x1b0] sm:$0xff]
          %408 = vst [vmem:[%s298 + $0x1b0] sm:$0xff] %v407
          %v409 = vld [vmem:[%s297 + $0x1b8] sm:$0xff]
          %410 = vst [vmem:[%s298 + $0x1b8] sm:$0xff] %v409
          %v411 = vld [vmem:[%s297 + $0x1c0] sm:$0xff]
          %412 = vst [vmem:[%s298 + $0x1c0] sm:$0xff] %v411
          %v413 = vld [vmem:[%s297 + $0x1c8] sm:$0xff]
          %414 = vst [vmem:[%s298 + $0x1c8] sm:$0xff] %v413
          %v415 = vld [vmem:[%s297 + $0x1d0] sm:$0xff]
          %416 = vst [vmem:[%s298 + $0x1d0] sm:$0xff] %v415
          %v417 = vld [vmem:[%s297 + $0x1d8] sm:$0xff]
          %418 = vst [vmem:[%s298 + $0x1d8] sm:$0xff] %v417
          %v419 = vld [vmem:[%s297 + $0x1e0] sm:$0xff]
          %420 = vst [vmem:[%s298 + $0x1e0] sm:$0xff] %v419
          %v421 = vld [vmem:[%s297 + $0x1e8] sm:$0xff]
          %422 = vst [vmem:[%s298 + $0x1e8] sm:$0xff] %v421
          %v423 = vld [vmem:[%s297 + $0x1f0] sm:$0xff]
          %424 = vst [vmem:[%s298 + $0x1f0] sm:$0xff] %v423
          %v425 = vld [vmem:[%s297 + $0x1f8] sm:$0xff]
          %426 = vst [vmem:[%s298 + $0x1f8] sm:$0xff] %v425
          %v427 = vld [vmem:[%s297 + $0x200] sm:$0xff]
          %428 = vst [vmem:[%s298 + $0x200] sm:$0xff] %v427
          %v429 = vld [vmem:[%s297 + $0x208] sm:$0xff]
          %430 = vst [vmem:[%s298 + $0x208] sm:$0xff] %v429
          %v431 = vld [vmem:[%s297 + $0x210] sm:$0xff]
          %432 = vst [vmem:[%s298 + $0x210] sm:$0xff] %v431
          %v433 = vld [vmem:[%s297 + $0x218] sm:$0xff]
          %434 = vst [vmem:[%s298 + $0x218] sm:$0xff] %v433
          %v435 = vld [vmem:[%s297 + $0x220] sm:$0xff]
          %436 = vst [vmem:[%s298 + $0x220] sm:$0xff] %v435
          %v437 = vld [vmem:[%s297 + $0x228] sm:$0xff]
          %438 = vst [vmem:[%s298 + $0x228] sm:$0xff] %v437
          %v439 = vld [vmem:[%s297 + $0x230] sm:$0xff]
          %440 = vst [vmem:[%s298 + $0x230] sm:$0xff] %v439
          %v441 = vld [vmem:[%s297 + $0x238] sm:$0xff]
          %442 = vst [vmem:[%s298 + $0x238] sm:$0xff] %v441
        $region107: #{actor_forward.1} parent=101 // loop_footer
          %s296 = sadd.s32 1, %s292
        $region108: #{actor_forward.1} parent=101 // loop_footer_branch
          %291 = sbr.rel target = $region104
        $region109: #{actor_forward.1} parent=101 // loop_exit
          _
      $region102: #{actor_forward.1} parent=86 // pred_fallthru
        _
      %p443 = pneg %p287
      // Predicated region
      $region110: #{actor_forward.1} parent=86 // pred_check
        _
      $region111: #{actor_forward.1} parent=86 // pred_check_branch
        %445 = sbr.rel (%p287) target = $region113
      $region112: #{actor_forward.1} parent=86 // pred_region
        %s446 = sand.u32 576, 7
      $region113: #{actor_forward.1} parent=86 // pred_fallthru
        _
    $region87: #{actor_forward.1} parent=1 // pred_fallthru
      _
    // Predicated region
    $region88: #{actor_forward.1} parent=1 // pred_check
      %p272 = pneg %p268
    $region89: #{actor_forward.1} parent=1 // pred_check_branch
      %274 = sbr.rel (%p272) target = $region91
    $region90: #{actor_forward.1} parent=1 // pred_region
      %s275 = sshllo.u32 0, 576
      loop: start=0, step=1, limit=1
      $region92: #{actor_forward.1} parent=90 // loop_pre_header
        _
      $region93: #{actor_forward.1} parent=90 // loop_header
        %s277 = sphi 0, %s281
        %p278 = scmp.ge.s32.totalorder %s277, 1
        %s282 = sphi %s264, %s264
        %s283 = sphi %s265, %s265
      $region94: #{actor_forward.1} parent=90 // loop_header_branch
        %280 = sbr.rel (%p278) target = $region98
      $region95: #{actor_forward.1} parent=90 // loop_body
        %v284 = vld [vmem:[%s282] sm:%s275]
        %285 = vst [vmem:[%s283] sm:%s275] %v284
      $region96: #{actor_forward.1} parent=90 // loop_footer
        %s281 = sadd.s32 1, %s277
      $region97: #{actor_forward.1} parent=90 // loop_footer_branch
        %276 = sbr.rel target = $region93
      $region98: #{actor_forward.1} parent=90 // loop_exit
        _
    $region91: #{actor_forward.1} parent=1 // pred_fallthru
      _
    // Predicated region
    $region114: #{actor_forward.1} parent=1 // pred_check
      _
    $region115: #{actor_forward.1} parent=1 // pred_check_branch
      %449 = sbr.rel (0) target = $region117
    $region116: #{actor_forward.1} parent=1 // pred_region
      %450 = vsyncadd %s266, 9216
    $region117: #{actor_forward.1} parent=1 // pred_fallthru
      _
    %s451 = sld [smem:[#allocation4]]
    %v452 = vld [vmem:[%s0] sm:$0x3]
    %v453 = vld [vmem:[%s0 + $0x8] sm:$0x3]
    %v454 = vld [vmem:[%s0 + $0x10] sm:$0x3]
    %v455 = vstv %s451
    %v456 = vmul.f32 %v455, %v452
    %v457 = vmul.f32 %v455, %v453
    %v458 = vmul.f32 %v455, %v454
    %s459 = sld [smem:[#allocation4 + $0x1]]
    %v460 = vld [vmem:[%s0 + $0x18] sm:$0x3]
    %v461 = vld [vmem:[%s0 + $0x20] sm:$0x3]
    %v462 = vld [vmem:[%s0 + $0x28] sm:$0x3]
    %v463 = vstv %s459
    %v464 = vmul.f32 %v463, %v460
    %v465 = vmul.f32 %v463, %v461
    %v466 = vmul.f32 %v463, %v462
    %v467 = vadd.f32 %v456, %v464
    %v468 = vadd.f32 %v457, %v465
    %v469 = vadd.f32 %v458, %v466
    %s470 = sld [smem:[#allocation4 + $0x2]]
    %v471 = vld [vmem:[%s0 + $0x30] sm:$0x3]
    %v472 = vld [vmem:[%s0 + $0x38] sm:$0x3]
    %v473 = vld [vmem:[%s0 + $0x40] sm:$0x3]
    %v474 = vstv %s470
    %v475 = vmul.f32 %v474, %v471
    %v476 = vmul.f32 %v474, %v472
    %v477 = vmul.f32 %v474, %v473
    %v478 = vadd.f32 %v467, %v475
    %v479 = vadd.f32 %v468, %v476
    %v480 = vadd.f32 %v469, %v477
    %s481 = sld [smem:[#allocation4 + $0x3]]
    %v482 = vld [vmem:[%s0] sm:$0xc]
    %v483 = vld [vmem:[%s0 + $0x8] sm:$0xc]
    %v484 = vld [vmem:[%s0 + $0x10] sm:$0xc]
    %v485 = vstv %s481
    %v486 = vmul.f32 %v485, %v482
    %v487 = vmul.f32 %v485, %v483
    %v488 = vmul.f32 %v485, %v484
    %v492 = vrot.slane %v486, 2
    %v493 = vrot.slane %v487, 2
    %v494 = vrot.slane %v488, 2
    %v498 = vadd.f32 %v478, %v492
    %v499 = vadd.f32 %v479, %v493
    %v500 = vadd.f32 %v480, %v494
    %s501 = sld [smem:[#allocation4 + $0x4]]
    %v502 = vld [vmem:[%s0 + $0x18] sm:$0xc]
    %v503 = vld [vmem:[%s0 + $0x20] sm:$0xc]
    %v504 = vld [vmem:[%s0 + $0x28] sm:$0xc]
    %v505 = vstv %s501
    %v506 = vmul.f32 %v505, %v502
    %v507 = vmul.f32 %v505, %v503
    %v508 = vmul.f32 %v505, %v504
    %v512 = vrot.slane %v506, 2
    %v513 = vrot.slane %v507, 2
    %v514 = vrot.slane %v508, 2
    %v518 = vadd.f32 %v498, %v512
    %v519 = vadd.f32 %v499, %v513
    %v520 = vadd.f32 %v500, %v514
    %s521 = sld [smem:[#allocation4 + $0x5]]
    %v522 = vld [vmem:[%s0 + $0x30] sm:$0xc]
    %v523 = vld [vmem:[%s0 + $0x38] sm:$0xc]
    %v524 = vld [vmem:[%s0 + $0x40] sm:$0xc]
    %v525 = vstv %s521
    %v526 = vmul.f32 %v525, %v522
    %v527 = vmul.f32 %v525, %v523
    %v528 = vmul.f32 %v525, %v524
    %v532 = vrot.slane %v526, 2
    %v533 = vrot.slane %v527, 2
    %v534 = vrot.slane %v528, 2
    %v538 = vadd.f32 %v518, %v532
    %v539 = vadd.f32 %v519, %v533
    %v540 = vadd.f32 %v520, %v534
    %s541 = sld [smem:[#allocation7]]
    %v542 = vstv %s541
    %v543 = vadd.f32 %v538, %v542
    %v544 = vadd.f32 %v539, %v542
    %v545 = vadd.f32 %v540, %v542
    %v546 = vmax.f32 %v543, 0.0
    %v547 = vmax.f32 %v544, 0.0
    %v548 = vmax.f32 %v545, 0.0
    %s549 = sld [smem:[#allocation9]]
    %v550 = vstv %s549
    %v551 = vmul.f32 %v550, %v546
    %v552 = vmul.f32 %v550, %v547
    %v553 = vmul.f32 %v550, %v548
    %s554 = sld [smem:[#allocation9 + $0x10]]
    %v555 = vstv %s554
    %v556 = vmul.f32 %v555, %v546
    %v557 = vmul.f32 %v555, %v547
    %v558 = vmul.f32 %v555, %v548
    %s559 = sld [smem:[#allocation9 + $0x20]]
    %v560 = vstv %s559
    %v561 = vmul.f32 %v560, %v546
    %v562 = vmul.f32 %v560, %v547
    %v563 = vmul.f32 %v560, %v548
    %s564 = sld [smem:[#allocation9 + $0x30]]
    %v565 = vstv %s564
    %v566 = vmul.f32 %v565, %v546
    %v567 = vmul.f32 %v565, %v547
    %v568 = vmul.f32 %v565, %v548
    %s569 = sld [smem:[#allocation9 + $0x40]]
    %v570 = vstv %s569
    %v571 = vmul.f32 %v570, %v546
    %v572 = vmul.f32 %v570, %v547
    %v573 = vmul.f32 %v570, %v548
    %s574 = sld [smem:[#allocation9 + $0x50]]
    %v575 = vstv %s574
    %v576 = vmul.f32 %v575, %v546
    %v577 = vmul.f32 %v575, %v547
    %v578 = vmul.f32 %v575, %v548
    %s579 = sld [smem:[#allocation4 + $0x6]]
    %v580 = vstv %s579
    %v581 = vmul.f32 %v580, %v452
    %v582 = vmul.f32 %v580, %v453
    %v583 = vmul.f32 %v580, %v454
    %s584 = sld [smem:[#allocation4 + $0x7]]
    %v585 = vstv %s584
    %v586 = vmul.f32 %v585, %v460
    %v587 = vmul.f32 %v585, %v461
    %v588 = vmul.f32 %v585, %v462
    %v589 = vadd.f32 %v581, %v586
    %v590 = vadd.f32 %v582, %v587
    %v591 = vadd.f32 %v583, %v588
    %s592 = sld [smem:[#allocation4 + $0x8]]
    %v593 = vstv %s592
    %v594 = vmul.f32 %v593, %v471
    %v595 = vmul.f32 %v593, %v472
    %v596 = vmul.f32 %v593, %v473
    %v597 = vadd.f32 %v589, %v594
    %v598 = vadd.f32 %v590, %v595
    %v599 = vadd.f32 %v591, %v596
    %s600 = sld [smem:[#allocation4 + $0x9]]
    %v601 = vstv %s600
    %v602 = vmul.f32 %v601, %v482
    %v603 = vmul.f32 %v601, %v483
    %v604 = vmul.f32 %v601, %v484
    %v608 = vrot.slane %v602, 2
    %v609 = vrot.slane %v603, 2
    %v610 = vrot.slane %v604, 2
    %v614 = vadd.f32 %v597, %v608
    %v615 = vadd.f32 %v598, %v609
    %v616 = vadd.f32 %v599, %v610
    %s617 = sld [smem:[#allocation4 + $0xa]]
    %v618 = vstv %s617
    %v619 = vmul.f32 %v618, %v502
    %v620 = vmul.f32 %v618, %v503
    %v621 = vmul.f32 %v618, %v504
    %v625 = vrot.slane %v619, 2
    %v626 = vrot.slane %v620, 2
    %v627 = vrot.slane %v621, 2
    %v631 = vadd.f32 %v614, %v625
    %v632 = vadd.f32 %v615, %v626
    %v633 = vadd.f32 %v616, %v627
    %s634 = sld [smem:[#allocation4 + $0xb]]
    %v635 = vstv %s634
    %v636 = vmul.f32 %v635, %v522
    %v637 = vmul.f32 %v635, %v523
    %v638 = vmul.f32 %v635, %v524
    %v642 = vrot.slane %v636, 2
    %v643 = vrot.slane %v637, 2
    %v644 = vrot.slane %v638, 2
    %v648 = vadd.f32 %v631, %v642
    %v649 = vadd.f32 %v632, %v643
    %v650 = vadd.f32 %v633, %v644
    %s651 = sld [smem:[#allocation7 + $0x1]]
    %v652 = vstv %s651
    %v653 = vadd.f32 %v648, %v652
    %v654 = vadd.f32 %v649, %v652
    %v655 = vadd.f32 %v650, %v652
    %v656 = vmax.f32 %v653, 0.0
    %v657 = vmax.f32 %v654, 0.0
    %v658 = vmax.f32 %v655, 0.0
    %s659 = sld [smem:[#allocation9 + $0x4]]
    %v660 = vstv %s659
    %v661 = vmul.f32 %v660, %v656
    %v662 = vmul.f32 %v660, %v657
    %v663 = vmul.f32 %v660, %v658
    %v664 = vadd.f32 %v551, %v661
    %v665 = vadd.f32 %v552, %v662
    %v666 = vadd.f32 %v553, %v663
    %s667 = sld [smem:[#allocation9 + $0x14]]
    %v668 = vstv %s667
    %v669 = vmul.f32 %v668, %v656
    %v670 = vmul.f32 %v668, %v657
    %v671 = vmul.f32 %v668, %v658
    %v672 = vadd.f32 %v556, %v669
    %v673 = vadd.f32 %v557, %v670
    %v674 = vadd.f32 %v558, %v671
    %s675 = sld [smem:[#allocation9 + $0x24]]
    %v676 = vstv %s675
    %v677 = vmul.f32 %v676, %v656
    %v678 = vmul.f32 %v676, %v657
    %v679 = vmul.f32 %v676, %v658
    %v680 = vadd.f32 %v561, %v677
    %v681 = vadd.f32 %v562, %v678
    %v682 = vadd.f32 %v563, %v679
    %s683 = sld [smem:[#allocation9 + $0x34]]
    %v684 = vstv %s683
    %v685 = vmul.f32 %v684, %v656
    %v686 = vmul.f32 %v684, %v657
    %v687 = vmul.f32 %v684, %v658
    %v688 = vadd.f32 %v566, %v685
    %v689 = vadd.f32 %v567, %v686
    %v690 = vadd.f32 %v568, %v687
    %s691 = sld [smem:[#allocation9 + $0x44]]
    %v692 = vstv %s691
    %v693 = vmul.f32 %v692, %v656
    %v694 = vmul.f32 %v692, %v657
    %v695 = vmul.f32 %v692, %v658
    %v696 = vadd.f32 %v571, %v693
    %v697 = vadd.f32 %v572, %v694
    %v698 = vadd.f32 %v573, %v695
    %s699 = sld [smem:[#allocation9 + $0x54]]
    %v700 = vstv %s699
    %v701 = vmul.f32 %v700, %v656
    %v702 = vmul.f32 %v700, %v657
    %v703 = vmul.f32 %v700, %v658
    %v704 = vadd.f32 %v576, %v701
    %v705 = vadd.f32 %v577, %v702
    %v706 = vadd.f32 %v578, %v703
    %s707 = sld [smem:[#allocation4 + $0xc]]
    %v708 = vstv %s707
    %v709 = vmul.f32 %v708, %v452
    %v710 = vmul.f32 %v708, %v453
    %v711 = vmul.f32 %v708, %v454
    %s712 = sld [smem:[#allocation4 + $0xd]]
    %v713 = vstv %s712
    %v714 = vmul.f32 %v713, %v460
    %v715 = vmul.f32 %v713, %v461
    %v716 = vmul.f32 %v713, %v462
    %v717 = vadd.f32 %v709, %v714
    %v718 = vadd.f32 %v710, %v715
    %v719 = vadd.f32 %v711, %v716
    %s720 = sld [smem:[#allocation4 + $0xe]]
    %v721 = vstv %s720
    %v722 = vmul.f32 %v721, %v471
    %v723 = vmul.f32 %v721, %v472
    %v724 = vmul.f32 %v721, %v473
    %v725 = vadd.f32 %v717, %v722
    %v726 = vadd.f32 %v718, %v723
    %v727 = vadd.f32 %v719, %v724
    %s728 = sld [smem:[#allocation4 + $0xf]]
    %v729 = vstv %s728
    %v730 = vmul.f32 %v729, %v482
    %v731 = vmul.f32 %v729, %v483
    %v732 = vmul.f32 %v729, %v484
    %v736 = vrot.slane %v730, 2
    %v737 = vrot.slane %v731, 2
    %v738 = vrot.slane %v732, 2
    %v742 = vadd.f32 %v725, %v736
    %v743 = vadd.f32 %v726, %v737
    %v744 = vadd.f32 %v727, %v738
    %s745 = sld [smem:[#allocation4 + $0x10]]
    %v746 = vstv %s745
    %v747 = vmul.f32 %v746, %v502
    %v748 = vmul.f32 %v746, %v503
    %v749 = vmul.f32 %v746, %v504
    %v753 = vrot.slane %v747, 2
    %v754 = vrot.slane %v748, 2
    %v755 = vrot.slane %v749, 2
    %v759 = vadd.f32 %v742, %v753
    %v760 = vadd.f32 %v743, %v754
    %v761 = vadd.f32 %v744, %v755
    %s762 = sld [smem:[#allocation4 + $0x11]]
    %v763 = vstv %s762
    %v764 = vmul.f32 %v763, %v522
    %v765 = vmul.f32 %v763, %v523
    %v766 = vmul.f32 %v763, %v524
    %v770 = vrot.slane %v764, 2
    %v771 = vrot.slane %v765, 2
    %v772 = vrot.slane %v766, 2
    %v776 = vadd.f32 %v759, %v770
    %v777 = vadd.f32 %v760, %v771
    %v778 = vadd.f32 %v761, %v772
    %s779 = sld [smem:[#allocation7 + $0x2]]
    %v780 = vstv %s779
    %v781 = vadd.f32 %v776, %v780
    %v782 = vadd.f32 %v777, %v780
    %v783 = vadd.f32 %v778, %v780
    %v784 = vmax.f32 %v781, 0.0
    %v785 = vmax.f32 %v782, 0.0
    %v786 = vmax.f32 %v783, 0.0
    %s787 = sld [smem:[#allocation9 + $0x8]]
    %v788 = vstv %s787
    %v789 = vmul.f32 %v788, %v784
    %v790 = vmul.f32 %v788, %v785
    %v791 = vmul.f32 %v788, %v786
    %v792 = vadd.f32 %v664, %v789
    %v793 = vadd.f32 %v665, %v790
    %v794 = vadd.f32 %v666, %v791
    %s795 = sld [smem:[#allocation9 + $0x18]]
    %v796 = vstv %s795
    %v797 = vmul.f32 %v796, %v784
    %v798 = vmul.f32 %v796, %v785
    %v799 = vmul.f32 %v796, %v786
    %v800 = vadd.f32 %v672, %v797
    %v801 = vadd.f32 %v673, %v798
    %v802 = vadd.f32 %v674, %v799
    %s803 = sld [smem:[#allocation9 + $0x28]]
    %v804 = vstv %s803
    %v805 = vmul.f32 %v804, %v784
    %v806 = vmul.f32 %v804, %v785
    %v807 = vmul.f32 %v804, %v786
    %v808 = vadd.f32 %v680, %v805
    %v809 = vadd.f32 %v681, %v806
    %v810 = vadd.f32 %v682, %v807
    %s811 = sld [smem:[#allocation9 + $0x38]]
    %v812 = vstv %s811
    %v813 = vmul.f32 %v812, %v784
    %v814 = vmul.f32 %v812, %v785
    %v815 = vmul.f32 %v812, %v786
    %v816 = vadd.f32 %v688, %v813
    %v817 = vadd.f32 %v689, %v814
    %v818 = vadd.f32 %v690, %v815
    %s819 = sld [smem:[#allocation9 + $0x48]]
    %v820 = vstv %s819
    %v821 = vmul.f32 %v820, %v784
    %v822 = vmul.f32 %v820, %v785
    %v823 = vmul.f32 %v820, %v786
    %v824 = vadd.f32 %v696, %v821
    %v825 = vadd.f32 %v697, %v822
    %v826 = vadd.f32 %v698, %v823
    %s827 = sld [smem:[#allocation9 + $0x58]]
    %v828 = vstv %s827
    %v829 = vmul.f32 %v828, %v784
    %v830 = vmul.f32 %v828, %v785
    %v831 = vmul.f32 %v828, %v786
    %v832 = vadd.f32 %v704, %v829
    %v833 = vadd.f32 %v705, %v830
    %v834 = vadd.f32 %v706, %v831
    %s835 = sld [smem:[#allocation4 + $0x12]]
    %v836 = vstv %s835
    %v837 = vmul.f32 %v836, %v452
    %v838 = vmul.f32 %v836, %v453
    %v839 = vmul.f32 %v836, %v454
    %s840 = sld [smem:[#allocation4 + $0x13]]
    %v841 = vstv %s840
    %v842 = vmul.f32 %v841, %v460
    %v843 = vmul.f32 %v841, %v461
    %v844 = vmul.f32 %v841, %v462
    %v845 = vadd.f32 %v837, %v842
    %v846 = vadd.f32 %v838, %v843
    %v847 = vadd.f32 %v839, %v844
    %s848 = sld [smem:[#allocation4 + $0x14]]
    %v849 = vstv %s848
    %v850 = vmul.f32 %v849, %v471
    %v851 = vmul.f32 %v849, %v472
    %v852 = vmul.f32 %v849, %v473
    %v853 = vadd.f32 %v845, %v850
    %v854 = vadd.f32 %v846, %v851
    %v855 = vadd.f32 %v847, %v852
    %s856 = sld [smem:[#allocation4 + $0x15]]
    %v857 = vstv %s856
    %v858 = vmul.f32 %v857, %v482
    %v859 = vmul.f32 %v857, %v483
    %v860 = vmul.f32 %v857, %v484
    %v864 = vrot.slane %v858, 2
    %v865 = vrot.slane %v859, 2
    %v866 = vrot.slane %v860, 2
    %v870 = vadd.f32 %v853, %v864
    %v871 = vadd.f32 %v854, %v865
    %v872 = vadd.f32 %v855, %v866
    %s873 = sld [smem:[#allocation4 + $0x16]]
    %v874 = vstv %s873
    %v875 = vmul.f32 %v874, %v502
    %v876 = vmul.f32 %v874, %v503
    %v877 = vmul.f32 %v874, %v504
    %v881 = vrot.slane %v875, 2
    %v882 = vrot.slane %v876, 2
    %v883 = vrot.slane %v877, 2
    %v887 = vadd.f32 %v870, %v881
    %v888 = vadd.f32 %v871, %v882
    %v889 = vadd.f32 %v872, %v883
    %s890 = sld [smem:[#allocation4 + $0x17]]
    %v891 = vstv %s890
    %v892 = vmul.f32 %v891, %v522
    %v893 = vmul.f32 %v891, %v523
    %v894 = vmul.f32 %v891, %v524
    %v898 = vrot.slane %v892, 2
    %v899 = vrot.slane %v893, 2
    %v900 = vrot.slane %v894, 2
    %v904 = vadd.f32 %v887, %v898
    %v905 = vadd.f32 %v888, %v899
    %v906 = vadd.f32 %v889, %v900
    %s907 = sld [smem:[#allocation7 + $0x3]]
    %v908 = vstv %s907
    %v909 = vadd.f32 %v904, %v908
    %v910 = vadd.f32 %v905, %v908
    %v911 = vadd.f32 %v906, %v908
    %v912 = vmax.f32 %v909, 0.0
    %v913 = vmax.f32 %v910, 0.0
    %v914 = vmax.f32 %v911, 0.0
    %s915 = sld [smem:[#allocation9 + $0xc]]
    %v916 = vstv %s915
    %v917 = vmul.f32 %v916, %v912
    %v918 = vmul.f32 %v916, %v913
    %v919 = vmul.f32 %v916, %v914
    %v920 = vadd.f32 %v792, %v917
    %v921 = vadd.f32 %v793, %v918
    %v922 = vadd.f32 %v794, %v919
    %s923 = sld [smem:[#allocation9 + $0x1c]]
    %v924 = vstv %s923
    %v925 = vmul.f32 %v924, %v912
    %v926 = vmul.f32 %v924, %v913
    %v927 = vmul.f32 %v924, %v914
    %v928 = vadd.f32 %v800, %v925
    %v929 = vadd.f32 %v801, %v926
    %v930 = vadd.f32 %v802, %v927
    %s931 = sld [smem:[#allocation9 + $0x2c]]
    %v932 = vstv %s931
    %v933 = vmul.f32 %v932, %v912
    %v934 = vmul.f32 %v932, %v913
    %v935 = vmul.f32 %v932, %v914
    %v936 = vadd.f32 %v808, %v933
    %v937 = vadd.f32 %v809, %v934
    %v938 = vadd.f32 %v810, %v935
    %s939 = sld [smem:[#allocation9 + $0x3c]]
    %v940 = vstv %s939
    %v941 = vmul.f32 %v940, %v912
    %v942 = vmul.f32 %v940, %v913
    %v943 = vmul.f32 %v940, %v914
    %v944 = vadd.f32 %v816, %v941
    %v945 = vadd.f32 %v817, %v942
    %v946 = vadd.f32 %v818, %v943
    %s947 = sld [smem:[#allocation9 + $0x4c]]
    %v948 = vstv %s947
    %v949 = vmul.f32 %v948, %v912
    %v950 = vmul.f32 %v948, %v913
    %v951 = vmul.f32 %v948, %v914
    %v952 = vadd.f32 %v824, %v949
    %v953 = vadd.f32 %v825, %v950
    %v954 = vadd.f32 %v826, %v951
    %s955 = sld [smem:[#allocation9 + $0x5c]]
    %v956 = vstv %s955
    %v957 = vmul.f32 %v956, %v912
    %v958 = vmul.f32 %v956, %v913
    %v959 = vmul.f32 %v956, %v914
    %v960 = vadd.f32 %v832, %v957
    %v961 = vadd.f32 %v833, %v958
    %v962 = vadd.f32 %v834, %v959
    %v963 = vld [vmem:[%s0] sm:$0x30]
    %v964 = vld [vmem:[%s0 + $0x8] sm:$0x30]
    %v965 = vld [vmem:[%s0 + $0x10] sm:$0x30]
    %v966 = vmul.f32 %v455, %v963
    %v967 = vmul.f32 %v455, %v964
    %v968 = vmul.f32 %v455, %v965
    %v969 = vld [vmem:[%s0 + $0x18] sm:$0x30]
    %v970 = vld [vmem:[%s0 + $0x20] sm:$0x30]
    %v971 = vld [vmem:[%s0 + $0x28] sm:$0x30]
    %v972 = vmul.f32 %v463, %v969
    %v973 = vmul.f32 %v463, %v970
    %v974 = vmul.f32 %v463, %v971
    %v975 = vadd.f32 %v966, %v972
    %v976 = vadd.f32 %v967, %v973
    %v977 = vadd.f32 %v968, %v974
    %v978 = vld [vmem:[%s0 + $0x30] sm:$0x30]
    %v979 = vld [vmem:[%s0 + $0x38] sm:$0x30]
    %v980 = vld [vmem:[%s0 + $0x40] sm:$0x30]
    %v981 = vmul.f32 %v474, %v978
    %v982 = vmul.f32 %v474, %v979
    %v983 = vmul.f32 %v474, %v980
    %v984 = vadd.f32 %v975, %v981
    %v985 = vadd.f32 %v976, %v982
    %v986 = vadd.f32 %v977, %v983
    %v987 = vld [vmem:[%s0] sm:$0xc0]
    %v988 = vld [vmem:[%s0 + $0x8] sm:$0xc0]
    %v989 = vld [vmem:[%s0 + $0x10] sm:$0xc0]
    %v990 = vmul.f32 %v485, %v987
    %v991 = vmul.f32 %v485, %v988
    %v992 = vmul.f32 %v485, %v989
    %v996 = vrot.slane %v990, 2
    %v997 = vrot.slane %v991, 2
    %v998 = vrot.slane %v992, 2
    %v1002 = vadd.f32 %v984, %v996
    %v1003 = vadd.f32 %v985, %v997
    %v1004 = vadd.f32 %v986, %v998
    %v1005 = vld [vmem:[%s0 + $0x18] sm:$0xc0]
    %v1006 = vld [vmem:[%s0 + $0x20] sm:$0xc0]
    %v1007 = vld [vmem:[%s0 + $0x28] sm:$0xc0]
    %v1008 = vmul.f32 %v505, %v1005
    %v1009 = vmul.f32 %v505, %v1006
    %v1010 = vmul.f32 %v505, %v1007
    %v1014 = vrot.slane %v1008, 2
    %v1015 = vrot.slane %v1009, 2
    %v1016 = vrot.slane %v1010, 2
    %v1020 = vadd.f32 %v1002, %v1014
    %v1021 = vadd.f32 %v1003, %v1015
    %v1022 = vadd.f32 %v1004, %v1016
    %v1023 = vld [vmem:[%s0 + $0x30] sm:$0xc0]
    %v1024 = vld [vmem:[%s0 + $0x38] sm:$0xc0]
    %v1025 = vld [vmem:[%s0 + $0x40] sm:$0xc0]
    %v1026 = vmul.f32 %v525, %v1023
    %v1027 = vmul.f32 %v525, %v1024
    %v1028 = vmul.f32 %v525, %v1025
    %v1032 = vrot.slane %v1026, 2
    %v1033 = vrot.slane %v1027, 2
    %v1034 = vrot.slane %v1028, 2
    %v1038 = vadd.f32 %v1020, %v1032
    %v1039 = vadd.f32 %v1021, %v1033
    %v1040 = vadd.f32 %v1022, %v1034
    %v1041 = vadd.f32 %v1038, %v542
    %v1042 = vadd.f32 %v1039, %v542
    %v1043 = vadd.f32 %v1040, %v542
    %v1044 = vmax.f32 %v1041, 0.0
    %v1045 = vmax.f32 %v1042, 0.0
    %v1046 = vmax.f32 %v1043, 0.0
    %s1047 = sld [smem:[#allocation9 + $0x2]]
    %v1048 = vstv %s1047
    %v1049 = vmul.f32 %v1048, %v1044
    %v1050 = vmul.f32 %v1048, %v1045
    %v1051 = vmul.f32 %v1048, %v1046
    %v1055 = vrot.slane %v1049, 4
    %v1056 = vrot.slane %v1050, 4
    %v1057 = vrot.slane %v1051, 4
    %v1061 = vadd.f32 %v920, %v1055
    %v1062 = vadd.f32 %v921, %v1056
    %v1063 = vadd.f32 %v922, %v1057
    %s1064 = sld [smem:[#allocation9 + $0x12]]
    %v1065 = vstv %s1064
    %v1066 = vmul.f32 %v1065, %v1044
    %v1067 = vmul.f32 %v1065, %v1045
    %v1068 = vmul.f32 %v1065, %v1046
    %v1072 = vrot.slane %v1066, 4
    %v1073 = vrot.slane %v1067, 4
    %v1074 = vrot.slane %v1068, 4
    %v1078 = vadd.f32 %v928, %v1072
    %v1079 = vadd.f32 %v929, %v1073
    %v1080 = vadd.f32 %v930, %v1074
    %s1081 = sld [smem:[#allocation9 + $0x22]]
    %v1082 = vstv %s1081
    %v1083 = vmul.f32 %v1082, %v1044
    %v1084 = vmul.f32 %v1082, %v1045
    %v1085 = vmul.f32 %v1082, %v1046
    %v1089 = vrot.slane %v1083, 4
    %v1090 = vrot.slane %v1084, 4
    %v1091 = vrot.slane %v1085, 4
    %v1095 = vadd.f32 %v936, %v1089
    %v1096 = vadd.f32 %v937, %v1090
    %v1097 = vadd.f32 %v938, %v1091
    %s1098 = sld [smem:[#allocation9 + $0x32]]
    %v1099 = vstv %s1098
    %v1100 = vmul.f32 %v1099, %v1044
    %v1101 = vmul.f32 %v1099, %v1045
    %v1102 = vmul.f32 %v1099, %v1046
    %v1106 = vrot.slane %v1100, 4
    %v1107 = vrot.slane %v1101, 4
    %v1108 = vrot.slane %v1102, 4
    %v1112 = vadd.f32 %v944, %v1106
    %v1113 = vadd.f32 %v945, %v1107
    %v1114 = vadd.f32 %v946, %v1108
    %s1115 = sld [smem:[#allocation9 + $0x42]]
    %v1116 = vstv %s1115
    %v1117 = vmul.f32 %v1116, %v1044
    %v1118 = vmul.f32 %v1116, %v1045
    %v1119 = vmul.f32 %v1116, %v1046
    %v1123 = vrot.slane %v1117, 4
    %v1124 = vrot.slane %v1118, 4
    %v1125 = vrot.slane %v1119, 4
    %v1129 = vadd.f32 %v952, %v1123
    %v1130 = vadd.f32 %v953, %v1124
    %v1131 = vadd.f32 %v954, %v1125
    %s1132 = sld [smem:[#allocation9 + $0x52]]
    %v1133 = vstv %s1132
    %v1134 = vmul.f32 %v1133, %v1044
    %v1135 = vmul.f32 %v1133, %v1045
    %v1136 = vmul.f32 %v1133, %v1046
    %v1140 = vrot.slane %v1134, 4
    %v1141 = vrot.slane %v1135, 4
    %v1142 = vrot.slane %v1136, 4
    %v1146 = vadd.f32 %v960, %v1140
    %v1147 = vadd.f32 %v961, %v1141
    %v1148 = vadd.f32 %v962, %v1142
    %v1149 = vmul.f32 %v580, %v963
    %v1150 = vmul.f32 %v580, %v964
    %v1151 = vmul.f32 %v580, %v965
    %v1152 = vmul.f32 %v585, %v969
    %v1153 = vmul.f32 %v585, %v970
    %v1154 = vmul.f32 %v585, %v971
    %v1155 = vadd.f32 %v1149, %v1152
    %v1156 = vadd.f32 %v1150, %v1153
    %v1157 = vadd.f32 %v1151, %v1154
    %v1158 = vmul.f32 %v593, %v978
    %v1159 = vmul.f32 %v593, %v979
    %v1160 = vmul.f32 %v593, %v980
    %v1161 = vadd.f32 %v1155, %v1158
    %v1162 = vadd.f32 %v1156, %v1159
    %v1163 = vadd.f32 %v1157, %v1160
    %v1164 = vmul.f32 %v601, %v987
    %v1165 = vmul.f32 %v601, %v988
    %v1166 = vmul.f32 %v601, %v989
    %v1170 = vrot.slane %v1164, 2
    %v1171 = vrot.slane %v1165, 2
    %v1172 = vrot.slane %v1166, 2
    %v1176 = vadd.f32 %v1161, %v1170
    %v1177 = vadd.f32 %v1162, %v1171
    %v1178 = vadd.f32 %v1163, %v1172
    %v1179 = vmul.f32 %v618, %v1005
    %v1180 = vmul.f32 %v618, %v1006
    %v1181 = vmul.f32 %v618, %v1007
    %v1185 = vrot.slane %v1179, 2
    %v1186 = vrot.slane %v1180, 2
    %v1187 = vrot.slane %v1181, 2
    %v1191 = vadd.f32 %v1176, %v1185
    %v1192 = vadd.f32 %v1177, %v1186
    %v1193 = vadd.f32 %v1178, %v1187
    %v1194 = vmul.f32 %v635, %v1023
    %v1195 = vmul.f32 %v635, %v1024
    %v1196 = vmul.f32 %v635, %v1025
    %v1200 = vrot.slane %v1194, 2
    %v1201 = vrot.slane %v1195, 2
    %v1202 = vrot.slane %v1196, 2
    %v1206 = vadd.f32 %v1191, %v1200
    %v1207 = vadd.f32 %v1192, %v1201
    %v1208 = vadd.f32 %v1193, %v1202
    %v1209 = vadd.f32 %v1206, %v652
    %v1210 = vadd.f32 %v1207, %v652
    %v1211 = vadd.f32 %v1208, %v652
    %v1212 = vmax.f32 %v1209, 0.0
    %v1213 = vmax.f32 %v1210, 0.0
    %v1214 = vmax.f32 %v1211, 0.0
    %s1215 = sld [smem:[#allocation9 + $0x6]]
    %v1216 = vstv %s1215
    %v1217 = vmul.f32 %v1216, %v1212
    %v1218 = vmul.f32 %v1216, %v1213
    %v1219 = vmul.f32 %v1216, %v1214
    %v1223 = vrot.slane %v1217, 4
    %v1224 = vrot.slane %v1218, 4
    %v1225 = vrot.slane %v1219, 4
    %v1229 = vadd.f32 %v1061, %v1223
    %v1230 = vadd.f32 %v1062, %v1224
    %v1231 = vadd.f32 %v1063, %v1225
    %s1232 = sld [smem:[#allocation9 + $0x16]]
    %v1233 = vstv %s1232
    %v1234 = vmul.f32 %v1233, %v1212
    %v1235 = vmul.f32 %v1233, %v1213
    %v1236 = vmul.f32 %v1233, %v1214
    %v1240 = vrot.slane %v1234, 4
    %v1241 = vrot.slane %v1235, 4
    %v1242 = vrot.slane %v1236, 4
    %v1246 = vadd.f32 %v1078, %v1240
    %v1247 = vadd.f32 %v1079, %v1241
    %v1248 = vadd.f32 %v1080, %v1242
    %s1249 = sld [smem:[#allocation9 + $0x26]]
    %v1250 = vstv %s1249
    %v1251 = vmul.f32 %v1250, %v1212
    %v1252 = vmul.f32 %v1250, %v1213
    %v1253 = vmul.f32 %v1250, %v1214
    %v1257 = vrot.slane %v1251, 4
    %v1258 = vrot.slane %v1252, 4
    %v1259 = vrot.slane %v1253, 4
    %v1263 = vadd.f32 %v1095, %v1257
    %v1264 = vadd.f32 %v1096, %v1258
    %v1265 = vadd.f32 %v1097, %v1259
    %s1266 = sld [smem:[#allocation9 + $0x36]]
    %v1267 = vstv %s1266
    %v1268 = vmul.f32 %v1267, %v1212
    %v1269 = vmul.f32 %v1267, %v1213
    %v1270 = vmul.f32 %v1267, %v1214
    %v1274 = vrot.slane %v1268, 4
    %v1275 = vrot.slane %v1269, 4
    %v1276 = vrot.slane %v1270, 4
    %v1280 = vadd.f32 %v1112, %v1274
    %v1281 = vadd.f32 %v1113, %v1275
    %v1282 = vadd.f32 %v1114, %v1276
    %s1283 = sld [smem:[#allocation9 + $0x46]]
    %v1284 = vstv %s1283
    %v1285 = vmul.f32 %v1284, %v1212
    %v1286 = vmul.f32 %v1284, %v1213
    %v1287 = vmul.f32 %v1284, %v1214
    %v1291 = vrot.slane %v1285, 4
    %v1292 = vrot.slane %v1286, 4
    %v1293 = vrot.slane %v1287, 4
    %v1297 = vadd.f32 %v1129, %v1291
    %v1298 = vadd.f32 %v1130, %v1292
    %v1299 = vadd.f32 %v1131, %v1293
    %s1300 = sld [smem:[#allocation9 + $0x56]]
    %v1301 = vstv %s1300
    %v1302 = vmul.f32 %v1301, %v1212
    %v1303 = vmul.f32 %v1301, %v1213
    %v1304 = vmul.f32 %v1301, %v1214
    %v1308 = vrot.slane %v1302, 4
    %v1309 = vrot.slane %v1303, 4
    %v1310 = vrot.slane %v1304, 4
    %v1314 = vadd.f32 %v1146, %v1308
    %v1315 = vadd.f32 %v1147, %v1309
    %v1316 = vadd.f32 %v1148, %v1310
    %v1317 = vmul.f32 %v708, %v963
    %v1318 = vmul.f32 %v708, %v964
    %v1319 = vmul.f32 %v708, %v965
    %v1320 = vmul.f32 %v713, %v969
    %v1321 = vmul.f32 %v713, %v970
    %v1322 = vmul.f32 %v713, %v971
    %v1323 = vadd.f32 %v1317, %v1320
    %v1324 = vadd.f32 %v1318, %v1321
    %v1325 = vadd.f32 %v1319, %v1322
    %v1326 = vmul.f32 %v721, %v978
    %v1327 = vmul.f32 %v721, %v979
    %v1328 = vmul.f32 %v721, %v980
    %v1329 = vadd.f32 %v1323, %v1326
    %v1330 = vadd.f32 %v1324, %v1327
    %v1331 = vadd.f32 %v1325, %v1328
    %v1332 = vmul.f32 %v729, %v987
    %v1333 = vmul.f32 %v729, %v988
    %v1334 = vmul.f32 %v729, %v989
    %v1338 = vrot.slane %v1332, 2
    %v1339 = vrot.slane %v1333, 2
    %v1340 = vrot.slane %v1334, 2
    %v1344 = vadd.f32 %v1329, %v1338
    %v1345 = vadd.f32 %v1330, %v1339
    %v1346 = vadd.f32 %v1331, %v1340
    %v1347 = vmul.f32 %v746, %v1005
    %v1348 = vmul.f32 %v746, %v1006
    %v1349 = vmul.f32 %v746, %v1007
    %v1353 = vrot.slane %v1347, 2
    %v1354 = vrot.slane %v1348, 2
    %v1355 = vrot.slane %v1349, 2
    %v1359 = vadd.f32 %v1344, %v1353
    %v1360 = vadd.f32 %v1345, %v1354
    %v1361 = vadd.f32 %v1346, %v1355
    %v1362 = vmul.f32 %v763, %v1023
    %v1363 = vmul.f32 %v763, %v1024
    %v1364 = vmul.f32 %v763, %v1025
    %v1368 = vrot.slane %v1362, 2
    %v1369 = vrot.slane %v1363, 2
    %v1370 = vrot.slane %v1364, 2
    %v1374 = vadd.f32 %v1359, %v1368
    %v1375 = vadd.f32 %v1360, %v1369
    %v1376 = vadd.f32 %v1361, %v1370
    %v1377 = vadd.f32 %v1374, %v780
    %v1378 = vadd.f32 %v1375, %v780
    %v1379 = vadd.f32 %v1376, %v780
    %v1380 = vmax.f32 %v1377, 0.0
    %v1381 = vmax.f32 %v1378, 0.0
    %v1382 = vmax.f32 %v1379, 0.0
    %s1383 = sld [smem:[#allocation9 + $0xa]]
    %v1384 = vstv %s1383
    %v1385 = vmul.f32 %v1384, %v1380
    %v1386 = vmul.f32 %v1384, %v1381
    %v1387 = vmul.f32 %v1384, %v1382
    %v1391 = vrot.slane %v1385, 4
    %v1392 = vrot.slane %v1386, 4
    %v1393 = vrot.slane %v1387, 4
    %v1397 = vadd.f32 %v1229, %v1391
    %v1398 = vadd.f32 %v1230, %v1392
    %v1399 = vadd.f32 %v1231, %v1393
    %s1400 = sld [smem:[#allocation9 + $0x1a]]
    %v1401 = vstv %s1400
    %v1402 = vmul.f32 %v1401, %v1380
    %v1403 = vmul.f32 %v1401, %v1381
    %v1404 = vmul.f32 %v1401, %v1382
    %v1408 = vrot.slane %v1402, 4
    %v1409 = vrot.slane %v1403, 4
    %v1410 = vrot.slane %v1404, 4
    %v1414 = vadd.f32 %v1246, %v1408
    %v1415 = vadd.f32 %v1247, %v1409
    %v1416 = vadd.f32 %v1248, %v1410
    %s1417 = sld [smem:[#allocation9 + $0x2a]]
    %v1418 = vstv %s1417
    %v1419 = vmul.f32 %v1418, %v1380
    %v1420 = vmul.f32 %v1418, %v1381
    %v1421 = vmul.f32 %v1418, %v1382
    %v1425 = vrot.slane %v1419, 4
    %v1426 = vrot.slane %v1420, 4
    %v1427 = vrot.slane %v1421, 4
    %v1431 = vadd.f32 %v1263, %v1425
    %v1432 = vadd.f32 %v1264, %v1426
    %v1433 = vadd.f32 %v1265, %v1427
    %s1434 = sld [smem:[#allocation9 + $0x3a]]
    %v1435 = vstv %s1434
    %v1436 = vmul.f32 %v1435, %v1380
    %v1437 = vmul.f32 %v1435, %v1381
    %v1438 = vmul.f32 %v1435, %v1382
    %v1442 = vrot.slane %v1436, 4
    %v1443 = vrot.slane %v1437, 4
    %v1444 = vrot.slane %v1438, 4
    %v1448 = vadd.f32 %v1280, %v1442
    %v1449 = vadd.f32 %v1281, %v1443
    %v1450 = vadd.f32 %v1282, %v1444
    %s1451 = sld [smem:[#allocation9 + $0x4a]]
    %v1452 = vstv %s1451
    %v1453 = vmul.f32 %v1452, %v1380
    %v1454 = vmul.f32 %v1452, %v1381
    %v1455 = vmul.f32 %v1452, %v1382
    %v1459 = vrot.slane %v1453, 4
    %v1460 = vrot.slane %v1454, 4
    %v1461 = vrot.slane %v1455, 4
    %v1465 = vadd.f32 %v1297, %v1459
    %v1466 = vadd.f32 %v1298, %v1460
    %v1467 = vadd.f32 %v1299, %v1461
    %s1468 = sld [smem:[#allocation9 + $0x5a]]
    %v1469 = vstv %s1468
    %v1470 = vmul.f32 %v1469, %v1380
    %v1471 = vmul.f32 %v1469, %v1381
    %v1472 = vmul.f32 %v1469, %v1382
    %v1476 = vrot.slane %v1470, 4
    %v1477 = vrot.slane %v1471, 4
    %v1478 = vrot.slane %v1472, 4
    %v1482 = vadd.f32 %v1314, %v1476
    %v1483 = vadd.f32 %v1315, %v1477
    %v1484 = vadd.f32 %v1316, %v1478
    %v1485 = vmul.f32 %v836, %v963
    %v1486 = vmul.f32 %v836, %v964
    %v1487 = vmul.f32 %v836, %v965
    %v1488 = vmul.f32 %v841, %v969
    %v1489 = vmul.f32 %v841, %v970
    %v1490 = vmul.f32 %v841, %v971
    %v1491 = vadd.f32 %v1485, %v1488
    %v1492 = vadd.f32 %v1486, %v1489
    %v1493 = vadd.f32 %v1487, %v1490
    %v1494 = vmul.f32 %v849, %v978
    %v1495 = vmul.f32 %v849, %v979
    %v1496 = vmul.f32 %v849, %v980
    %v1497 = vadd.f32 %v1491, %v1494
    %v1498 = vadd.f32 %v1492, %v1495
    %v1499 = vadd.f32 %v1493, %v1496
    %v1500 = vmul.f32 %v857, %v987
    %v1501 = vmul.f32 %v857, %v988
    %v1502 = vmul.f32 %v857, %v989
    %v1506 = vrot.slane %v1500, 2
    %v1507 = vrot.slane %v1501, 2
    %v1508 = vrot.slane %v1502, 2
    %v1512 = vadd.f32 %v1497, %v1506
    %v1513 = vadd.f32 %v1498, %v1507
    %v1514 = vadd.f32 %v1499, %v1508
    %v1515 = vmul.f32 %v874, %v1005
    %v1516 = vmul.f32 %v874, %v1006
    %v1517 = vmul.f32 %v874, %v1007
    %v1521 = vrot.slane %v1515, 2
    %v1522 = vrot.slane %v1516, 2
    %v1523 = vrot.slane %v1517, 2
    %v1527 = vadd.f32 %v1512, %v1521
    %v1528 = vadd.f32 %v1513, %v1522
    %v1529 = vadd.f32 %v1514, %v1523
    %v1530 = vmul.f32 %v891, %v1023
    %v1531 = vmul.f32 %v891, %v1024
    %v1532 = vmul.f32 %v891, %v1025
    %v1536 = vrot.slane %v1530, 2
    %v1537 = vrot.slane %v1531, 2
    %v1538 = vrot.slane %v1532, 2
    %v1542 = vadd.f32 %v1527, %v1536
    %v1543 = vadd.f32 %v1528, %v1537
    %v1544 = vadd.f32 %v1529, %v1538
    %v1545 = vadd.f32 %v1542, %v908
    %v1546 = vadd.f32 %v1543, %v908
    %v1547 = vadd.f32 %v1544, %v908
    %v1548 = vmax.f32 %v1545, 0.0
    %v1549 = vmax.f32 %v1546, 0.0
    %v1550 = vmax.f32 %v1547, 0.0
    %s1551 = sld [smem:[#allocation9 + $0xe]]
    %v1552 = vstv %s1551
    %v1553 = vmul.f32 %v1552, %v1548
    %v1554 = vmul.f32 %v1552, %v1549
    %v1555 = vmul.f32 %v1552, %v1550
    %v1559 = vrot.slane %v1553, 4
    %v1560 = vrot.slane %v1554, 4
    %v1561 = vrot.slane %v1555, 4
    %v1565 = vadd.f32 %v1397, %v1559
    %v1566 = vadd.f32 %v1398, %v1560
    %v1567 = vadd.f32 %v1399, %v1561
    %s1568 = sld [smem:[#allocation9 + $0x1e]]
    %v1569 = vstv %s1568
    %v1570 = vmul.f32 %v1569, %v1548
    %v1571 = vmul.f32 %v1569, %v1549
    %v1572 = vmul.f32 %v1569, %v1550
    %v1576 = vrot.slane %v1570, 4
    %v1577 = vrot.slane %v1571, 4
    %v1578 = vrot.slane %v1572, 4
    %v1582 = vadd.f32 %v1414, %v1576
    %v1583 = vadd.f32 %v1415, %v1577
    %v1584 = vadd.f32 %v1416, %v1578
    %s1585 = sld [smem:[#allocation9 + $0x2e]]
    %v1586 = vstv %s1585
    %v1587 = vmul.f32 %v1586, %v1548
    %v1588 = vmul.f32 %v1586, %v1549
    %v1589 = vmul.f32 %v1586, %v1550
    %v1593 = vrot.slane %v1587, 4
    %v1594 = vrot.slane %v1588, 4
    %v1595 = vrot.slane %v1589, 4
    %v1599 = vadd.f32 %v1431, %v1593
    %v1600 = vadd.f32 %v1432, %v1594
    %v1601 = vadd.f32 %v1433, %v1595
    %s1602 = sld [smem:[#allocation9 + $0x3e]]
    %v1603 = vstv %s1602
    %v1604 = vmul.f32 %v1603, %v1548
    %v1605 = vmul.f32 %v1603, %v1549
    %v1606 = vmul.f32 %v1603, %v1550
    %v1610 = vrot.slane %v1604, 4
    %v1611 = vrot.slane %v1605, 4
    %v1612 = vrot.slane %v1606, 4
    %v1616 = vadd.f32 %v1448, %v1610
    %v1617 = vadd.f32 %v1449, %v1611
    %v1618 = vadd.f32 %v1450, %v1612
    %s1619 = sld [smem:[#allocation9 + $0x4e]]
    %v1620 = vstv %s1619
    %v1621 = vmul.f32 %v1620, %v1548
    %v1622 = vmul.f32 %v1620, %v1549
    %v1623 = vmul.f32 %v1620, %v1550
    %v1627 = vrot.slane %v1621, 4
    %v1628 = vrot.slane %v1622, 4
    %v1629 = vrot.slane %v1623, 4
    %v1633 = vadd.f32 %v1465, %v1627
    %v1634 = vadd.f32 %v1466, %v1628
    %v1635 = vadd.f32 %v1467, %v1629
    %s1636 = sld [smem:[#allocation9 + $0x5e]]
    %v1637 = vstv %s1636
    %v1638 = vmul.f32 %v1637, %v1548
    %v1639 = vmul.f32 %v1637, %v1549
    %v1640 = vmul.f32 %v1637, %v1550
    %v1644 = vrot.slane %v1638, 4
    %v1645 = vrot.slane %v1639, 4
    %v1646 = vrot.slane %v1640, 4
    %v1650 = vadd.f32 %v1482, %v1644
    %v1651 = vadd.f32 %v1483, %v1645
    %v1652 = vadd.f32 %v1484, %v1646
    %v1653 = vmul.f32 %v455, %v471
    %v1654 = vmul.f32 %v455, %v472
    %v1655 = vmul.f32 %v455, %v473
    %v1656 = vld [vmem:[%s0 + $0x48] sm:$0x3]
    %v1657 = vld [vmem:[%s0 + $0x50] sm:$0x3]
    %v1658 = vld [vmem:[%s0 + $0x58] sm:$0x3]
    %v1659 = vmul.f32 %v463, %v1656
    %v1660 = vmul.f32 %v463, %v1657
    %v1661 = vmul.f32 %v463, %v1658
    %v1662 = vadd.f32 %v1653, %v1659
    %v1663 = vadd.f32 %v1654, %v1660
    %v1664 = vadd.f32 %v1655, %v1661
    %v1665 = vld [vmem:[%s0 + $0x60] sm:$0x3]
    %v1666 = vld [vmem:[%s0 + $0x68] sm:$0x3]
    %v1667 = vld [vmem:[%s0 + $0x70] sm:$0x3]
    %v1668 = vmul.f32 %v474, %v1665
    %v1669 = vmul.f32 %v474, %v1666
    %v1670 = vmul.f32 %v474, %v1667
    %v1671 = vadd.f32 %v1662, %v1668
    %v1672 = vadd.f32 %v1663, %v1669
    %v1673 = vadd.f32 %v1664, %v1670
    %v1674 = vmul.f32 %v485, %v522
    %v1675 = vmul.f32 %v485, %v523
    %v1676 = vmul.f32 %v485, %v524
    %v1680 = vrot.slane %v1674, 2
    %v1681 = vrot.slane %v1675, 2
    %v1682 = vrot.slane %v1676, 2
    %v1686 = vadd.f32 %v1671, %v1680
    %v1687 = vadd.f32 %v1672, %v1681
    %v1688 = vadd.f32 %v1673, %v1682
    %v1689 = vld [vmem:[%s0 + $0x48] sm:$0xc]
    %v1690 = vld [vmem:[%s0 + $0x50] sm:$0xc]
    %v1691 = vld [vmem:[%s0 + $0x58] sm:$0xc]
    %v1692 = vmul.f32 %v505, %v1689
    %v1693 = vmul.f32 %v505, %v1690
    %v1694 = vmul.f32 %v505, %v1691
    %v1698 = vrot.slane %v1692, 2
    %v1699 = vrot.slane %v1693, 2
    %v1700 = vrot.slane %v1694, 2
    %v1704 = vadd.f32 %v1686, %v1698
    %v1705 = vadd.f32 %v1687, %v1699
    %v1706 = vadd.f32 %v1688, %v1700
    %v1707 = vld [vmem:[%s0 + $0x60] sm:$0xc]
    %v1708 = vld [vmem:[%s0 + $0x68] sm:$0xc]
    %v1709 = vld [vmem:[%s0 + $0x70] sm:$0xc]
    %v1710 = vmul.f32 %v525, %v1707
    %v1711 = vmul.f32 %v525, %v1708
    %v1712 = vmul.f32 %v525, %v1709
    %v1716 = vrot.slane %v1710, 2
    %v1717 = vrot.slane %v1711, 2
    %v1718 = vrot.slane %v1712, 2
    %v1722 = vadd.f32 %v1704, %v1716
    %v1723 = vadd.f32 %v1705, %v1717
    %v1724 = vadd.f32 %v1706, %v1718
    %v1725 = vadd.f32 %v1722, %v542
    %v1726 = vadd.f32 %v1723, %v542
    %v1727 = vadd.f32 %v1724, %v542
    %v1728 = vmax.f32 %v1725, 0.0
    %v1729 = vmax.f32 %v1726, 0.0
    %v1730 = vmax.f32 %v1727, 0.0
    %s1731 = sld [smem:[#allocation9 + $0x1]]
    %v1732 = vstv %s1731
    %v1733 = vmul.f32 %v1732, %v1728
    %v1734 = vmul.f32 %v1732, %v1729
    %v1735 = vmul.f32 %v1732, %v1730
    %v1736 = vadd.f32 %v1565, %v1733
    %v1737 = vadd.f32 %v1566, %v1734
    %v1738 = vadd.f32 %v1567, %v1735
    %s1739 = sld [smem:[#allocation9 + $0x11]]
    %v1740 = vstv %s1739
    %v1741 = vmul.f32 %v1740, %v1728
    %v1742 = vmul.f32 %v1740, %v1729
    %v1743 = vmul.f32 %v1740, %v1730
    %v1744 = vadd.f32 %v1582, %v1741
    %v1745 = vadd.f32 %v1583, %v1742
    %v1746 = vadd.f32 %v1584, %v1743
    %s1747 = sld [smem:[#allocation9 + $0x21]]
    %v1748 = vstv %s1747
    %v1749 = vmul.f32 %v1748, %v1728
    %v1750 = vmul.f32 %v1748, %v1729
    %v1751 = vmul.f32 %v1748, %v1730
    %v1752 = vadd.f32 %v1599, %v1749
    %v1753 = vadd.f32 %v1600, %v1750
    %v1754 = vadd.f32 %v1601, %v1751
    %s1755 = sld [smem:[#allocation9 + $0x31]]
    %v1756 = vstv %s1755
    %v1757 = vmul.f32 %v1756, %v1728
    %v1758 = vmul.f32 %v1756, %v1729
    %v1759 = vmul.f32 %v1756, %v1730
    %v1760 = vadd.f32 %v1616, %v1757
    %v1761 = vadd.f32 %v1617, %v1758
    %v1762 = vadd.f32 %v1618, %v1759
    %s1763 = sld [smem:[#allocation9 + $0x41]]
    %v1764 = vstv %s1763
    %v1765 = vmul.f32 %v1764, %v1728
    %v1766 = vmul.f32 %v1764, %v1729
    %v1767 = vmul.f32 %v1764, %v1730
    %v1768 = vadd.f32 %v1633, %v1765
    %v1769 = vadd.f32 %v1634, %v1766
    %v1770 = vadd.f32 %v1635, %v1767
    %s1771 = sld [smem:[#allocation9 + $0x51]]
    %v1772 = vstv %s1771
    %v1773 = vmul.f32 %v1772, %v1728
    %v1774 = vmul.f32 %v1772, %v1729
    %v1775 = vmul.f32 %v1772, %v1730
    %v1776 = vadd.f32 %v1650, %v1773
    %v1777 = vadd.f32 %v1651, %v1774
    %v1778 = vadd.f32 %v1652, %v1775
    %v1779 = vmul.f32 %v580, %v471
    %v1780 = vmul.f32 %v580, %v472
    %v1781 = vmul.f32 %v580, %v473
    %v1782 = vmul.f32 %v585, %v1656
    %v1783 = vmul.f32 %v585, %v1657
    %v1784 = vmul.f32 %v585, %v1658
    %v1785 = vadd.f32 %v1779, %v1782
    %v1786 = vadd.f32 %v1780, %v1783
    %v1787 = vadd.f32 %v1781, %v1784
    %v1788 = vmul.f32 %v593, %v1665
    %v1789 = vmul.f32 %v593, %v1666
    %v1790 = vmul.f32 %v593, %v1667
    %v1791 = vadd.f32 %v1785, %v1788
    %v1792 = vadd.f32 %v1786, %v1789
    %v1793 = vadd.f32 %v1787, %v1790
    %v1794 = vmul.f32 %v601, %v522
    %v1795 = vmul.f32 %v601, %v523
    %v1796 = vmul.f32 %v601, %v524
    %v1800 = vrot.slane %v1794, 2
    %v1801 = vrot.slane %v1795, 2
    %v1802 = vrot.slane %v1796, 2
    %v1806 = vadd.f32 %v1791, %v1800
    %v1807 = vadd.f32 %v1792, %v1801
    %v1808 = vadd.f32 %v1793, %v1802
    %v1809 = vmul.f32 %v618, %v1689
    %v1810 = vmul.f32 %v618, %v1690
    %v1811 = vmul.f32 %v618, %v1691
    %v1815 = vrot.slane %v1809, 2
    %v1816 = vrot.slane %v1810, 2
    %v1817 = vrot.slane %v1811, 2
    %v1821 = vadd.f32 %v1806, %v1815
    %v1822 = vadd.f32 %v1807, %v1816
    %v1823 = vadd.f32 %v1808, %v1817
    %v1824 = vmul.f32 %v635, %v1707
    %v1825 = vmul.f32 %v635, %v1708
    %v1826 = vmul.f32 %v635, %v1709
    %v1830 = vrot.slane %v1824, 2
    %v1831 = vrot.slane %v1825, 2
    %v1832 = vrot.slane %v1826, 2
    %v1836 = vadd.f32 %v1821, %v1830
    %v1837 = vadd.f32 %v1822, %v1831
    %v1838 = vadd.f32 %v1823, %v1832
    %v1839 = vadd.f32 %v1836, %v652
    %v1840 = vadd.f32 %v1837, %v652
    %v1841 = vadd.f32 %v1838, %v652
    %v1842 = vmax.f32 %v1839, 0.0
    %v1843 = vmax.f32 %v1840, 0.0
    %v1844 = vmax.f32 %v1841, 0.0
    %s1845 = sld [smem:[#allocation9 + $0x5]]
    %v1846 = vstv %s1845
    %v1847 = vmul.f32 %v1846, %v1842
    %v1848 = vmul.f32 %v1846, %v1843
    %v1849 = vmul.f32 %v1846, %v1844
    %v1850 = vadd.f32 %v1736, %v1847
    %v1851 = vadd.f32 %v1737, %v1848
    %v1852 = vadd.f32 %v1738, %v1849
    %s1853 = sld [smem:[#allocation9 + $0x15]]
    %v1854 = vstv %s1853
    %v1855 = vmul.f32 %v1854, %v1842
    %v1856 = vmul.f32 %v1854, %v1843
    %v1857 = vmul.f32 %v1854, %v1844
    %v1858 = vadd.f32 %v1744, %v1855
    %v1859 = vadd.f32 %v1745, %v1856
    %v1860 = vadd.f32 %v1746, %v1857
    %s1861 = sld [smem:[#allocation9 + $0x25]]
    %v1862 = vstv %s1861
    %v1863 = vmul.f32 %v1862, %v1842
    %v1864 = vmul.f32 %v1862, %v1843
    %v1865 = vmul.f32 %v1862, %v1844
    %v1866 = vadd.f32 %v1752, %v1863
    %v1867 = vadd.f32 %v1753, %v1864
    %v1868 = vadd.f32 %v1754, %v1865
    %s1869 = sld [smem:[#allocation9 + $0x35]]
    %v1870 = vstv %s1869
    %v1871 = vmul.f32 %v1870, %v1842
    %v1872 = vmul.f32 %v1870, %v1843
    %v1873 = vmul.f32 %v1870, %v1844
    %v1874 = vadd.f32 %v1760, %v1871
    %v1875 = vadd.f32 %v1761, %v1872
    %v1876 = vadd.f32 %v1762, %v1873
    %s1877 = sld [smem:[#allocation9 + $0x45]]
    %v1878 = vstv %s1877
    %v1879 = vmul.f32 %v1878, %v1842
    %v1880 = vmul.f32 %v1878, %v1843
    %v1881 = vmul.f32 %v1878, %v1844
    %v1882 = vadd.f32 %v1768, %v1879
    %v1883 = vadd.f32 %v1769, %v1880
    %v1884 = vadd.f32 %v1770, %v1881
    %s1885 = sld [smem:[#allocation9 + $0x55]]
    %v1886 = vstv %s1885
    %v1887 = vmul.f32 %v1886, %v1842
    %v1888 = vmul.f32 %v1886, %v1843
    %v1889 = vmul.f32 %v1886, %v1844
    %v1890 = vadd.f32 %v1776, %v1887
    %v1891 = vadd.f32 %v1777, %v1888
    %v1892 = vadd.f32 %v1778, %v1889
    %v1893 = vmul.f32 %v708, %v471
    %v1894 = vmul.f32 %v708, %v472
    %v1895 = vmul.f32 %v708, %v473
    %v1896 = vmul.f32 %v713, %v1656
    %v1897 = vmul.f32 %v713, %v1657
    %v1898 = vmul.f32 %v713, %v1658
    %v1899 = vadd.f32 %v1893, %v1896
    %v1900 = vadd.f32 %v1894, %v1897
    %v1901 = vadd.f32 %v1895, %v1898
    %v1902 = vmul.f32 %v721, %v1665
    %v1903 = vmul.f32 %v721, %v1666
    %v1904 = vmul.f32 %v721, %v1667
    %v1905 = vadd.f32 %v1899, %v1902
    %v1906 = vadd.f32 %v1900, %v1903
    %v1907 = vadd.f32 %v1901, %v1904
    %v1908 = vmul.f32 %v729, %v522
    %v1909 = vmul.f32 %v729, %v523
    %v1910 = vmul.f32 %v729, %v524
    %v1914 = vrot.slane %v1908, 2
    %v1915 = vrot.slane %v1909, 2
    %v1916 = vrot.slane %v1910, 2
    %v1920 = vadd.f32 %v1905, %v1914
    %v1921 = vadd.f32 %v1906, %v1915
    %v1922 = vadd.f32 %v1907, %v1916
    %v1923 = vmul.f32 %v746, %v1689
    %v1924 = vmul.f32 %v746, %v1690
    %v1925 = vmul.f32 %v746, %v1691
    %v1929 = vrot.slane %v1923, 2
    %v1930 = vrot.slane %v1924, 2
    %v1931 = vrot.slane %v1925, 2
    %v1935 = vadd.f32 %v1920, %v1929
    %v1936 = vadd.f32 %v1921, %v1930
    %v1937 = vadd.f32 %v1922, %v1931
    %v1938 = vmul.f32 %v763, %v1707
    %v1939 = vmul.f32 %v763, %v1708
    %v1940 = vmul.f32 %v763, %v1709
    %v1944 = vrot.slane %v1938, 2
    %v1945 = vrot.slane %v1939, 2
    %v1946 = vrot.slane %v1940, 2
    %v1950 = vadd.f32 %v1935, %v1944
    %v1951 = vadd.f32 %v1936, %v1945
    %v1952 = vadd.f32 %v1937, %v1946
    %v1953 = vadd.f32 %v1950, %v780
    %v1954 = vadd.f32 %v1951, %v780
    %v1955 = vadd.f32 %v1952, %v780
    %v1956 = vmax.f32 %v1953, 0.0
    %v1957 = vmax.f32 %v1954, 0.0
    %v1958 = vmax.f32 %v1955, 0.0
    %s1959 = sld [smem:[#allocation9 + $0x9]]
    %v1960 = vstv %s1959
    %v1961 = vmul.f32 %v1960, %v1956
    %v1962 = vmul.f32 %v1960, %v1957
    %v1963 = vmul.f32 %v1960, %v1958
    %v1964 = vadd.f32 %v1850, %v1961
    %v1965 = vadd.f32 %v1851, %v1962
    %v1966 = vadd.f32 %v1852, %v1963
    %s1967 = sld [smem:[#allocation9 + $0x19]]
    %v1968 = vstv %s1967
    %v1969 = vmul.f32 %v1968, %v1956
    %v1970 = vmul.f32 %v1968, %v1957
    %v1971 = vmul.f32 %v1968, %v1958
    %v1972 = vadd.f32 %v1858, %v1969
    %v1973 = vadd.f32 %v1859, %v1970
    %v1974 = vadd.f32 %v1860, %v1971
    %s1975 = sld [smem:[#allocation9 + $0x29]]
    %v1976 = vstv %s1975
    %v1977 = vmul.f32 %v1976, %v1956
    %v1978 = vmul.f32 %v1976, %v1957
    %v1979 = vmul.f32 %v1976, %v1958
    %v1980 = vadd.f32 %v1866, %v1977
    %v1981 = vadd.f32 %v1867, %v1978
    %v1982 = vadd.f32 %v1868, %v1979
    %s1983 = sld [smem:[#allocation9 + $0x39]]
    %v1984 = vstv %s1983
    %v1985 = vmul.f32 %v1984, %v1956
    %v1986 = vmul.f32 %v1984, %v1957
    %v1987 = vmul.f32 %v1984, %v1958
    %v1988 = vadd.f32 %v1874, %v1985
    %v1989 = vadd.f32 %v1875, %v1986
    %v1990 = vadd.f32 %v1876, %v1987
    %s1991 = sld [smem:[#allocation9 + $0x49]]
    %v1992 = vstv %s1991
    %v1993 = vmul.f32 %v1992, %v1956
    %v1994 = vmul.f32 %v1992, %v1957
    %v1995 = vmul.f32 %v1992, %v1958
    %v1996 = vadd.f32 %v1882, %v1993
    %v1997 = vadd.f32 %v1883, %v1994
    %v1998 = vadd.f32 %v1884, %v1995
    %s1999 = sld [smem:[#allocation9 + $0x59]]
    %v2000 = vstv %s1999
    %v2001 = vmul.f32 %v2000, %v1956
    %v2002 = vmul.f32 %v2000, %v1957
    %v2003 = vmul.f32 %v2000, %v1958
    %v2004 = vadd.f32 %v1890, %v2001
    %v2005 = vadd.f32 %v1891, %v2002
    %v2006 = vadd.f32 %v1892, %v2003
    %v2007 = vmul.f32 %v836, %v471
    %v2008 = vmul.f32 %v836, %v472
    %v2009 = vmul.f32 %v836, %v473
    %v2010 = vmul.f32 %v841, %v1656
    %v2011 = vmul.f32 %v841, %v1657
    %v2012 = vmul.f32 %v841, %v1658
    %v2013 = vadd.f32 %v2007, %v2010
    %v2014 = vadd.f32 %v2008, %v2011
    %v2015 = vadd.f32 %v2009, %v2012
    %v2016 = vmul.f32 %v849, %v1665
    %v2017 = vmul.f32 %v849, %v1666
    %v2018 = vmul.f32 %v849, %v1667
    %v2019 = vadd.f32 %v2013, %v2016
    %v2020 = vadd.f32 %v2014, %v2017
    %v2021 = vadd.f32 %v2015, %v2018
    %v2022 = vmul.f32 %v857, %v522
    %v2023 = vmul.f32 %v857, %v523
    %v2024 = vmul.f32 %v857, %v524
    %v2028 = vrot.slane %v2022, 2
    %v2029 = vrot.slane %v2023, 2
    %v2030 = vrot.slane %v2024, 2
    %v2034 = vadd.f32 %v2019, %v2028
    %v2035 = vadd.f32 %v2020, %v2029
    %v2036 = vadd.f32 %v2021, %v2030
    %v2037 = vmul.f32 %v874, %v1689
    %v2038 = vmul.f32 %v874, %v1690
    %v2039 = vmul.f32 %v874, %v1691
    %v2043 = vrot.slane %v2037, 2
    %v2044 = vrot.slane %v2038, 2
    %v2045 = vrot.slane %v2039, 2
    %v2049 = vadd.f32 %v2034, %v2043
    %v2050 = vadd.f32 %v2035, %v2044
    %v2051 = vadd.f32 %v2036, %v2045
    %v2052 = vmul.f32 %v891, %v1707
    %v2053 = vmul.f32 %v891, %v1708
    %v2054 = vmul.f32 %v891, %v1709
    %v2058 = vrot.slane %v2052, 2
    %v2059 = vrot.slane %v2053, 2
    %v2060 = vrot.slane %v2054, 2
    %v2064 = vadd.f32 %v2049, %v2058
    %v2065 = vadd.f32 %v2050, %v2059
    %v2066 = vadd.f32 %v2051, %v2060
    %v2067 = vadd.f32 %v2064, %v908
    %v2068 = vadd.f32 %v2065, %v908
    %v2069 = vadd.f32 %v2066, %v908
    %v2070 = vmax.f32 %v2067, 0.0
    %v2071 = vmax.f32 %v2068, 0.0
    %v2072 = vmax.f32 %v2069, 0.0
    %s2073 = sld [smem:[#allocation9 + $0xd]]
    %v2074 = vstv %s2073
    %v2075 = vmul.f32 %v2074, %v2070
    %v2076 = vmul.f32 %v2074, %v2071
    %v2077 = vmul.f32 %v2074, %v2072
    %v2078 = vadd.f32 %v1964, %v2075
    %v2079 = vadd.f32 %v1965, %v2076
    %v2080 = vadd.f32 %v1966, %v2077
    %s2081 = sld [smem:[#allocation9 + $0x1d]]
    %v2082 = vstv %s2081
    %v2083 = vmul.f32 %v2082, %v2070
    %v2084 = vmul.f32 %v2082, %v2071
    %v2085 = vmul.f32 %v2082, %v2072
    %v2086 = vadd.f32 %v1972, %v2083
    %v2087 = vadd.f32 %v1973, %v2084
    %v2088 = vadd.f32 %v1974, %v2085
    %s2089 = sld [smem:[#allocation9 + $0x2d]]
    %v2090 = vstv %s2089
    %v2091 = vmul.f32 %v2090, %v2070
    %v2092 = vmul.f32 %v2090, %v2071
    %v2093 = vmul.f32 %v2090, %v2072
    %v2094 = vadd.f32 %v1980, %v2091
    %v2095 = vadd.f32 %v1981, %v2092
    %v2096 = vadd.f32 %v1982, %v2093
    %s2097 = sld [smem:[#allocation9 + $0x3d]]
    %v2098 = vstv %s2097
    %v2099 = vmul.f32 %v2098, %v2070
    %v2100 = vmul.f32 %v2098, %v2071
    %v2101 = vmul.f32 %v2098, %v2072
    %v2102 = vadd.f32 %v1988, %v2099
    %v2103 = vadd.f32 %v1989, %v2100
    %v2104 = vadd.f32 %v1990, %v2101
    %s2105 = sld [smem:[#allocation9 + $0x4d]]
    %v2106 = vstv %s2105
    %v2107 = vmul.f32 %v2106, %v2070
    %v2108 = vmul.f32 %v2106, %v2071
    %v2109 = vmul.f32 %v2106, %v2072
    %v2110 = vadd.f32 %v1996, %v2107
    %v2111 = vadd.f32 %v1997, %v2108
    %v2112 = vadd.f32 %v1998, %v2109
    %s2113 = sld [smem:[#allocation9 + $0x5d]]
    %v2114 = vstv %s2113
    %v2115 = vmul.f32 %v2114, %v2070
    %v2116 = vmul.f32 %v2114, %v2071
    %v2117 = vmul.f32 %v2114, %v2072
    %v2118 = vadd.f32 %v2004, %v2115
    %v2119 = vadd.f32 %v2005, %v2116
    %v2120 = vadd.f32 %v2006, %v2117
    %v2121 = vmul.f32 %v455, %v978
    %v2122 = vmul.f32 %v455, %v979
    %v2123 = vmul.f32 %v455, %v980
    %v2124 = vld [vmem:[%s0 + $0x48] sm:$0x30]
    %v2125 = vld [vmem:[%s0 + $0x50] sm:$0x30]
    %v2126 = vld [vmem:[%s0 + $0x58] sm:$0x30]
    %v2127 = vmul.f32 %v463, %v2124
    %v2128 = vmul.f32 %v463, %v2125
    %v2129 = vmul.f32 %v463, %v2126
    %v2130 = vadd.f32 %v2121, %v2127
    %v2131 = vadd.f32 %v2122, %v2128
    %v2132 = vadd.f32 %v2123, %v2129
    %v2133 = vld [vmem:[%s0 + $0x60] sm:$0x30]
    %v2134 = vld [vmem:[%s0 + $0x68] sm:$0x30]
    %v2135 = vld [vmem:[%s0 + $0x70] sm:$0x30]
    %v2136 = vmul.f32 %v474, %v2133
    %v2137 = vmul.f32 %v474, %v2134
    %v2138 = vmul.f32 %v474, %v2135
    %v2139 = vadd.f32 %v2130, %v2136
    %v2140 = vadd.f32 %v2131, %v2137
    %v2141 = vadd.f32 %v2132, %v2138
    %v2142 = vmul.f32 %v485, %v1023
    %v2143 = vmul.f32 %v485, %v1024
    %v2144 = vmul.f32 %v485, %v1025
    %v2148 = vrot.slane %v2142, 2
    %v2149 = vrot.slane %v2143, 2
    %v2150 = vrot.slane %v2144, 2
    %v2154 = vadd.f32 %v2139, %v2148
    %v2155 = vadd.f32 %v2140, %v2149
    %v2156 = vadd.f32 %v2141, %v2150
    %v2157 = vld [vmem:[%s0 + $0x48] sm:$0xc0]
    %v2158 = vld [vmem:[%s0 + $0x50] sm:$0xc0]
    %v2159 = vld [vmem:[%s0 + $0x58] sm:$0xc0]
    %v2160 = vmul.f32 %v505, %v2157
    %v2161 = vmul.f32 %v505, %v2158
    %v2162 = vmul.f32 %v505, %v2159
    %v2166 = vrot.slane %v2160, 2
    %v2167 = vrot.slane %v2161, 2
    %v2168 = vrot.slane %v2162, 2
    %v2172 = vadd.f32 %v2154, %v2166
    %v2173 = vadd.f32 %v2155, %v2167
    %v2174 = vadd.f32 %v2156, %v2168
    %v2175 = vld [vmem:[%s0 + $0x60] sm:$0xc0]
    %v2176 = vld [vmem:[%s0 + $0x68] sm:$0xc0]
    %v2177 = vld [vmem:[%s0 + $0x70] sm:$0xc0]
    %v2178 = vmul.f32 %v525, %v2175
    %v2179 = vmul.f32 %v525, %v2176
    %v2180 = vmul.f32 %v525, %v2177
    %v2184 = vrot.slane %v2178, 2
    %v2185 = vrot.slane %v2179, 2
    %v2186 = vrot.slane %v2180, 2
    %v2190 = vadd.f32 %v2172, %v2184
    %v2191 = vadd.f32 %v2173, %v2185
    %v2192 = vadd.f32 %v2174, %v2186
    %v2193 = vadd.f32 %v2190, %v542
    %v2194 = vadd.f32 %v2191, %v542
    %v2195 = vadd.f32 %v2192, %v542
    %v2196 = vmax.f32 %v2193, 0.0
    %v2197 = vmax.f32 %v2194, 0.0
    %v2198 = vmax.f32 %v2195, 0.0
    %s2199 = sld [smem:[#allocation9 + $0x3]]
    %v2200 = vstv %s2199
    %v2201 = vmul.f32 %v2200, %v2196
    %v2202 = vmul.f32 %v2200, %v2197
    %v2203 = vmul.f32 %v2200, %v2198
    %v2207 = vrot.slane %v2201, 4
    %v2208 = vrot.slane %v2202, 4
    %v2209 = vrot.slane %v2203, 4
    %v2213 = vadd.f32 %v2078, %v2207
    %v2214 = vadd.f32 %v2079, %v2208
    %v2215 = vadd.f32 %v2080, %v2209
    %s2216 = sld [smem:[#allocation9 + $0x13]]
    %v2217 = vstv %s2216
    %v2218 = vmul.f32 %v2217, %v2196
    %v2219 = vmul.f32 %v2217, %v2197
    %v2220 = vmul.f32 %v2217, %v2198
    %v2224 = vrot.slane %v2218, 4
    %v2225 = vrot.slane %v2219, 4
    %v2226 = vrot.slane %v2220, 4
    %v2230 = vadd.f32 %v2086, %v2224
    %v2231 = vadd.f32 %v2087, %v2225
    %v2232 = vadd.f32 %v2088, %v2226
    %s2233 = sld [smem:[#allocation9 + $0x23]]
    %v2234 = vstv %s2233
    %v2235 = vmul.f32 %v2234, %v2196
    %v2236 = vmul.f32 %v2234, %v2197
    %v2237 = vmul.f32 %v2234, %v2198
    %v2241 = vrot.slane %v2235, 4
    %v2242 = vrot.slane %v2236, 4
    %v2243 = vrot.slane %v2237, 4
    %v2247 = vadd.f32 %v2094, %v2241
    %v2248 = vadd.f32 %v2095, %v2242
    %v2249 = vadd.f32 %v2096, %v2243
    %s2250 = sld [smem:[#allocation9 + $0x33]]
    %v2251 = vstv %s2250
    %v2252 = vmul.f32 %v2251, %v2196
    %v2253 = vmul.f32 %v2251, %v2197
    %v2254 = vmul.f32 %v2251, %v2198
    %v2258 = vrot.slane %v2252, 4
    %v2259 = vrot.slane %v2253, 4
    %v2260 = vrot.slane %v2254, 4
    %v2264 = vadd.f32 %v2102, %v2258
    %v2265 = vadd.f32 %v2103, %v2259
    %v2266 = vadd.f32 %v2104, %v2260
    %s2267 = sld [smem:[#allocation9 + $0x43]]
    %v2268 = vstv %s2267
    %v2269 = vmul.f32 %v2268, %v2196
    %v2270 = vmul.f32 %v2268, %v2197
    %v2271 = vmul.f32 %v2268, %v2198
    %v2275 = vrot.slane %v2269, 4
    %v2276 = vrot.slane %v2270, 4
    %v2277 = vrot.slane %v2271, 4
    %v2281 = vadd.f32 %v2110, %v2275
    %v2282 = vadd.f32 %v2111, %v2276
    %v2283 = vadd.f32 %v2112, %v2277
    %s2284 = sld [smem:[#allocation9 + $0x53]]
    %v2285 = vstv %s2284
    %v2286 = vmul.f32 %v2285, %v2196
    %v2287 = vmul.f32 %v2285, %v2197
    %v2288 = vmul.f32 %v2285, %v2198
    %v2292 = vrot.slane %v2286, 4
    %v2293 = vrot.slane %v2287, 4
    %v2294 = vrot.slane %v2288, 4
    %v2298 = vadd.f32 %v2118, %v2292
    %v2299 = vadd.f32 %v2119, %v2293
    %v2300 = vadd.f32 %v2120, %v2294
    %v2301 = vmul.f32 %v580, %v978
    %v2302 = vmul.f32 %v580, %v979
    %v2303 = vmul.f32 %v580, %v980
    %v2304 = vmul.f32 %v585, %v2124
    %v2305 = vmul.f32 %v585, %v2125
    %v2306 = vmul.f32 %v585, %v2126
    %v2307 = vadd.f32 %v2301, %v2304
    %v2308 = vadd.f32 %v2302, %v2305
    %v2309 = vadd.f32 %v2303, %v2306
    %v2310 = vmul.f32 %v593, %v2133
    %v2311 = vmul.f32 %v593, %v2134
    %v2312 = vmul.f32 %v593, %v2135
    %v2313 = vadd.f32 %v2307, %v2310
    %v2314 = vadd.f32 %v2308, %v2311
    %v2315 = vadd.f32 %v2309, %v2312
    %v2316 = vmul.f32 %v601, %v1023
    %v2317 = vmul.f32 %v601, %v1024
    %v2318 = vmul.f32 %v601, %v1025
    %v2322 = vrot.slane %v2316, 2
    %v2323 = vrot.slane %v2317, 2
    %v2324 = vrot.slane %v2318, 2
    %v2328 = vadd.f32 %v2313, %v2322
    %v2329 = vadd.f32 %v2314, %v2323
    %v2330 = vadd.f32 %v2315, %v2324
    %v2331 = vmul.f32 %v618, %v2157
    %v2332 = vmul.f32 %v618, %v2158
    %v2333 = vmul.f32 %v618, %v2159
    %v2337 = vrot.slane %v2331, 2
    %v2338 = vrot.slane %v2332, 2
    %v2339 = vrot.slane %v2333, 2
    %v2343 = vadd.f32 %v2328, %v2337
    %v2344 = vadd.f32 %v2329, %v2338
    %v2345 = vadd.f32 %v2330, %v2339
    %v2346 = vmul.f32 %v635, %v2175
    %v2347 = vmul.f32 %v635, %v2176
    %v2348 = vmul.f32 %v635, %v2177
    %v2352 = vrot.slane %v2346, 2
    %v2353 = vrot.slane %v2347, 2
    %v2354 = vrot.slane %v2348, 2
    %v2358 = vadd.f32 %v2343, %v2352
    %v2359 = vadd.f32 %v2344, %v2353
    %v2360 = vadd.f32 %v2345, %v2354
    %v2361 = vadd.f32 %v2358, %v652
    %v2362 = vadd.f32 %v2359, %v652
    %v2363 = vadd.f32 %v2360, %v652
    %v2364 = vmax.f32 %v2361, 0.0
    %v2365 = vmax.f32 %v2362, 0.0
    %v2366 = vmax.f32 %v2363, 0.0
    %s2367 = sld [smem:[#allocation9 + $0x7]]
    %v2368 = vstv %s2367
    %v2369 = vmul.f32 %v2368, %v2364
    %v2370 = vmul.f32 %v2368, %v2365
    %v2371 = vmul.f32 %v2368, %v2366
    %v2375 = vrot.slane %v2369, 4
    %v2376 = vrot.slane %v2370, 4
    %v2377 = vrot.slane %v2371, 4
    %v2381 = vadd.f32 %v2213, %v2375
    %v2382 = vadd.f32 %v2214, %v2376
    %v2383 = vadd.f32 %v2215, %v2377
    %s2384 = sld [smem:[#allocation9 + $0x17]]
    %v2385 = vstv %s2384
    %v2386 = vmul.f32 %v2385, %v2364
    %v2387 = vmul.f32 %v2385, %v2365
    %v2388 = vmul.f32 %v2385, %v2366
    %v2392 = vrot.slane %v2386, 4
    %v2393 = vrot.slane %v2387, 4
    %v2394 = vrot.slane %v2388, 4
    %v2398 = vadd.f32 %v2230, %v2392
    %v2399 = vadd.f32 %v2231, %v2393
    %v2400 = vadd.f32 %v2232, %v2394
    %s2401 = sld [smem:[#allocation9 + $0x27]]
    %v2402 = vstv %s2401
    %v2403 = vmul.f32 %v2402, %v2364
    %v2404 = vmul.f32 %v2402, %v2365
    %v2405 = vmul.f32 %v2402, %v2366
    %v2409 = vrot.slane %v2403, 4
    %v2410 = vrot.slane %v2404, 4
    %v2411 = vrot.slane %v2405, 4
    %v2415 = vadd.f32 %v2247, %v2409
    %v2416 = vadd.f32 %v2248, %v2410
    %v2417 = vadd.f32 %v2249, %v2411
    %s2418 = sld [smem:[#allocation9 + $0x37]]
    %v2419 = vstv %s2418
    %v2420 = vmul.f32 %v2419, %v2364
    %v2421 = vmul.f32 %v2419, %v2365
    %v2422 = vmul.f32 %v2419, %v2366
    %v2426 = vrot.slane %v2420, 4
    %v2427 = vrot.slane %v2421, 4
    %v2428 = vrot.slane %v2422, 4
    %v2432 = vadd.f32 %v2264, %v2426
    %v2433 = vadd.f32 %v2265, %v2427
    %v2434 = vadd.f32 %v2266, %v2428
    %s2435 = sld [smem:[#allocation9 + $0x47]]
    %v2436 = vstv %s2435
    %v2437 = vmul.f32 %v2436, %v2364
    %v2438 = vmul.f32 %v2436, %v2365
    %v2439 = vmul.f32 %v2436, %v2366
    %v2443 = vrot.slane %v2437, 4
    %v2444 = vrot.slane %v2438, 4
    %v2445 = vrot.slane %v2439, 4
    %v2449 = vadd.f32 %v2281, %v2443
    %v2450 = vadd.f32 %v2282, %v2444
    %v2451 = vadd.f32 %v2283, %v2445
    %s2452 = sld [smem:[#allocation9 + $0x57]]
    %v2453 = vstv %s2452
    %v2454 = vmul.f32 %v2453, %v2364
    %v2455 = vmul.f32 %v2453, %v2365
    %v2456 = vmul.f32 %v2453, %v2366
    %v2460 = vrot.slane %v2454, 4
    %v2461 = vrot.slane %v2455, 4
    %v2462 = vrot.slane %v2456, 4
    %v2466 = vadd.f32 %v2298, %v2460
    %v2467 = vadd.f32 %v2299, %v2461
    %v2468 = vadd.f32 %v2300, %v2462
    %v2469 = vmul.f32 %v708, %v978
    %v2470 = vmul.f32 %v708, %v979
    %v2471 = vmul.f32 %v708, %v980
    %v2472 = vmul.f32 %v713, %v2124
    %v2473 = vmul.f32 %v713, %v2125
    %v2474 = vmul.f32 %v713, %v2126
    %v2475 = vadd.f32 %v2469, %v2472
    %v2476 = vadd.f32 %v2470, %v2473
    %v2477 = vadd.f32 %v2471, %v2474
    %v2478 = vmul.f32 %v721, %v2133
    %v2479 = vmul.f32 %v721, %v2134
    %v2480 = vmul.f32 %v721, %v2135
    %v2481 = vadd.f32 %v2475, %v2478
    %v2482 = vadd.f32 %v2476, %v2479
    %v2483 = vadd.f32 %v2477, %v2480
    %v2484 = vmul.f32 %v729, %v1023
    %v2485 = vmul.f32 %v729, %v1024
    %v2486 = vmul.f32 %v729, %v1025
    %v2490 = vrot.slane %v2484, 2
    %v2491 = vrot.slane %v2485, 2
    %v2492 = vrot.slane %v2486, 2
    %v2496 = vadd.f32 %v2481, %v2490
    %v2497 = vadd.f32 %v2482, %v2491
    %v2498 = vadd.f32 %v2483, %v2492
    %v2499 = vmul.f32 %v746, %v2157
    %v2500 = vmul.f32 %v746, %v2158
    %v2501 = vmul.f32 %v746, %v2159
    %v2505 = vrot.slane %v2499, 2
    %v2506 = vrot.slane %v2500, 2
    %v2507 = vrot.slane %v2501, 2
    %v2511 = vadd.f32 %v2496, %v2505
    %v2512 = vadd.f32 %v2497, %v2506
    %v2513 = vadd.f32 %v2498, %v2507
    %v2514 = vmul.f32 %v763, %v2175
    %v2515 = vmul.f32 %v763, %v2176
    %v2516 = vmul.f32 %v763, %v2177
    %v2520 = vrot.slane %v2514, 2
    %v2521 = vrot.slane %v2515, 2
    %v2522 = vrot.slane %v2516, 2
    %v2526 = vadd.f32 %v2511, %v2520
    %v2527 = vadd.f32 %v2512, %v2521
    %v2528 = vadd.f32 %v2513, %v2522
    %v2529 = vadd.f32 %v2526, %v780
    %v2530 = vadd.f32 %v2527, %v780
    %v2531 = vadd.f32 %v2528, %v780
    %v2532 = vmax.f32 %v2529, 0.0
    %v2533 = vmax.f32 %v2530, 0.0
    %v2534 = vmax.f32 %v2531, 0.0
    %s2535 = sld [smem:[#allocation9 + $0xb]]
    %v2536 = vstv %s2535
    %v2537 = vmul.f32 %v2536, %v2532
    %v2538 = vmul.f32 %v2536, %v2533
    %v2539 = vmul.f32 %v2536, %v2534
    %v2543 = vrot.slane %v2537, 4
    %v2544 = vrot.slane %v2538, 4
    %v2545 = vrot.slane %v2539, 4
    %v2549 = vadd.f32 %v2381, %v2543
    %v2550 = vadd.f32 %v2382, %v2544
    %v2551 = vadd.f32 %v2383, %v2545
    %s2552 = sld [smem:[#allocation9 + $0x1b]]
    %v2553 = vstv %s2552
    %v2554 = vmul.f32 %v2553, %v2532
    %v2555 = vmul.f32 %v2553, %v2533
    %v2556 = vmul.f32 %v2553, %v2534
    %v2560 = vrot.slane %v2554, 4
    %v2561 = vrot.slane %v2555, 4
    %v2562 = vrot.slane %v2556, 4
    %v2566 = vadd.f32 %v2398, %v2560
    %v2567 = vadd.f32 %v2399, %v2561
    %v2568 = vadd.f32 %v2400, %v2562
    %s2569 = sld [smem:[#allocation9 + $0x2b]]
    %v2570 = vstv %s2569
    %v2571 = vmul.f32 %v2570, %v2532
    %v2572 = vmul.f32 %v2570, %v2533
    %v2573 = vmul.f32 %v2570, %v2534
    %v2577 = vrot.slane %v2571, 4
    %v2578 = vrot.slane %v2572, 4
    %v2579 = vrot.slane %v2573, 4
    %v2583 = vadd.f32 %v2415, %v2577
    %v2584 = vadd.f32 %v2416, %v2578
    %v2585 = vadd.f32 %v2417, %v2579
    %s2586 = sld [smem:[#allocation9 + $0x3b]]
    %v2587 = vstv %s2586
    %v2588 = vmul.f32 %v2587, %v2532
    %v2589 = vmul.f32 %v2587, %v2533
    %v2590 = vmul.f32 %v2587, %v2534
    %v2594 = vrot.slane %v2588, 4
    %v2595 = vrot.slane %v2589, 4
    %v2596 = vrot.slane %v2590, 4
    %v2600 = vadd.f32 %v2432, %v2594
    %v2601 = vadd.f32 %v2433, %v2595
    %v2602 = vadd.f32 %v2434, %v2596
    %s2603 = sld [smem:[#allocation9 + $0x4b]]
    %v2604 = vstv %s2603
    %v2605 = vmul.f32 %v2604, %v2532
    %v2606 = vmul.f32 %v2604, %v2533
    %v2607 = vmul.f32 %v2604, %v2534
    %v2611 = vrot.slane %v2605, 4
    %v2612 = vrot.slane %v2606, 4
    %v2613 = vrot.slane %v2607, 4
    %v2617 = vadd.f32 %v2449, %v2611
    %v2618 = vadd.f32 %v2450, %v2612
    %v2619 = vadd.f32 %v2451, %v2613
    %s2620 = sld [smem:[#allocation9 + $0x5b]]
    %v2621 = vstv %s2620
    %v2622 = vmul.f32 %v2621, %v2532
    %v2623 = vmul.f32 %v2621, %v2533
    %v2624 = vmul.f32 %v2621, %v2534
    %v2628 = vrot.slane %v2622, 4
    %v2629 = vrot.slane %v2623, 4
    %v2630 = vrot.slane %v2624, 4
    %v2634 = vadd.f32 %v2466, %v2628
    %v2635 = vadd.f32 %v2467, %v2629
    %v2636 = vadd.f32 %v2468, %v2630
    %v2637 = vmul.f32 %v836, %v978
    %v2638 = vmul.f32 %v836, %v979
    %v2639 = vmul.f32 %v836, %v980
    %v2640 = vmul.f32 %v841, %v2124
    %v2641 = vmul.f32 %v841, %v2125
    %v2642 = vmul.f32 %v841, %v2126
    %v2643 = vadd.f32 %v2637, %v2640
    %v2644 = vadd.f32 %v2638, %v2641
    %v2645 = vadd.f32 %v2639, %v2642
    %v2646 = vmul.f32 %v849, %v2133
    %v2647 = vmul.f32 %v849, %v2134
    %v2648 = vmul.f32 %v849, %v2135
    %v2649 = vadd.f32 %v2643, %v2646
    %v2650 = vadd.f32 %v2644, %v2647
    %v2651 = vadd.f32 %v2645, %v2648
    %v2652 = vmul.f32 %v857, %v1023
    %v2653 = vmul.f32 %v857, %v1024
    %v2654 = vmul.f32 %v857, %v1025
    %v2658 = vrot.slane %v2652, 2
    %v2659 = vrot.slane %v2653, 2
    %v2660 = vrot.slane %v2654, 2
    %v2664 = vadd.f32 %v2649, %v2658
    %v2665 = vadd.f32 %v2650, %v2659
    %v2666 = vadd.f32 %v2651, %v2660
    %v2667 = vmul.f32 %v874, %v2157
    %v2668 = vmul.f32 %v874, %v2158
    %v2669 = vmul.f32 %v874, %v2159
    %v2673 = vrot.slane %v2667, 2
    %v2674 = vrot.slane %v2668, 2
    %v2675 = vrot.slane %v2669, 2
    %v2679 = vadd.f32 %v2664, %v2673
    %v2680 = vadd.f32 %v2665, %v2674
    %v2681 = vadd.f32 %v2666, %v2675
    %v2682 = vmul.f32 %v891, %v2175
    %v2683 = vmul.f32 %v891, %v2176
    %v2684 = vmul.f32 %v891, %v2177
    %v2688 = vrot.slane %v2682, 2
    %v2689 = vrot.slane %v2683, 2
    %v2690 = vrot.slane %v2684, 2
    %v2694 = vadd.f32 %v2679, %v2688
    %v2695 = vadd.f32 %v2680, %v2689
    %v2696 = vadd.f32 %v2681, %v2690
    %v2697 = vadd.f32 %v2694, %v908
    %v2698 = vadd.f32 %v2695, %v908
    %v2699 = vadd.f32 %v2696, %v908
    %v2700 = vmax.f32 %v2697, 0.0
    %v2701 = vmax.f32 %v2698, 0.0
    %v2702 = vmax.f32 %v2699, 0.0
    %s2703 = sld [smem:[#allocation9 + $0xf]]
    %v2704 = vstv %s2703
    %v2705 = vmul.f32 %v2704, %v2700
    %v2706 = vmul.f32 %v2704, %v2701
    %v2707 = vmul.f32 %v2704, %v2702
    %v2711 = vrot.slane %v2705, 4
    %v2712 = vrot.slane %v2706, 4
    %v2713 = vrot.slane %v2707, 4
    %v2717 = vadd.f32 %v2549, %v2711
    %v2718 = vadd.f32 %v2550, %v2712
    %v2719 = vadd.f32 %v2551, %v2713
    %s2720 = sld [smem:[#allocation9 + $0x1f]]
    %v2721 = vstv %s2720
    %v2722 = vmul.f32 %v2721, %v2700
    %v2723 = vmul.f32 %v2721, %v2701
    %v2724 = vmul.f32 %v2721, %v2702
    %v2728 = vrot.slane %v2722, 4
    %v2729 = vrot.slane %v2723, 4
    %v2730 = vrot.slane %v2724, 4
    %v2734 = vadd.f32 %v2566, %v2728
    %v2735 = vadd.f32 %v2567, %v2729
    %v2736 = vadd.f32 %v2568, %v2730
    %s2737 = sld [smem:[#allocation9 + $0x2f]]
    %v2738 = vstv %s2737
    %v2739 = vmul.f32 %v2738, %v2700
    %v2740 = vmul.f32 %v2738, %v2701
    %v2741 = vmul.f32 %v2738, %v2702
    %v2745 = vrot.slane %v2739, 4
    %v2746 = vrot.slane %v2740, 4
    %v2747 = vrot.slane %v2741, 4
    %v2751 = vadd.f32 %v2583, %v2745
    %v2752 = vadd.f32 %v2584, %v2746
    %v2753 = vadd.f32 %v2585, %v2747
    %s2754 = sld [smem:[#allocation9 + $0x3f]]
    %v2755 = vstv %s2754
    %v2756 = vmul.f32 %v2755, %v2700
    %v2757 = vmul.f32 %v2755, %v2701
    %v2758 = vmul.f32 %v2755, %v2702
    %v2762 = vrot.slane %v2756, 4
    %v2763 = vrot.slane %v2757, 4
    %v2764 = vrot.slane %v2758, 4
    %v2768 = vadd.f32 %v2600, %v2762
    %v2769 = vadd.f32 %v2601, %v2763
    %v2770 = vadd.f32 %v2602, %v2764
    %s2771 = sld [smem:[#allocation9 + $0x4f]]
    %v2772 = vstv %s2771
    %v2773 = vmul.f32 %v2772, %v2700
    %v2774 = vmul.f32 %v2772, %v2701
    %v2775 = vmul.f32 %v2772, %v2702
    %v2779 = vrot.slane %v2773, 4
    %v2780 = vrot.slane %v2774, 4
    %v2781 = vrot.slane %v2775, 4
    %v2785 = vadd.f32 %v2617, %v2779
    %v2786 = vadd.f32 %v2618, %v2780
    %v2787 = vadd.f32 %v2619, %v2781
    %s2788 = sld [smem:[#allocation9 + $0x5f]]
    %v2789 = vstv %s2788
    %v2790 = vmul.f32 %v2789, %v2700
    %v2791 = vmul.f32 %v2789, %v2701
    %v2792 = vmul.f32 %v2789, %v2702
    %v2796 = vrot.slane %v2790, 4
    %v2797 = vrot.slane %v2791, 4
    %v2798 = vrot.slane %v2792, 4
    %v2802 = vadd.f32 %v2634, %v2796
    %v2803 = vadd.f32 %v2635, %v2797
    %v2804 = vadd.f32 %v2636, %v2798
    %s2805 = sld [smem:[#allocation10]]
    %v2806 = vstv %s2805
    %v2807 = vadd.f32 %v2717, %v2806
    %v2808 = vadd.f32 %v2718, %v2806
    %v2809 = vadd.f32 %v2719, %v2806
    %v2810 = vmax.f32 %v2807, 0.0
    %v2811 = vmax.f32 %v2808, 0.0
    %v2812 = vmax.f32 %v2809, 0.0
    %v2813 = vpack.c.bf16 %v2810, %v2810
    %v2814 = vpack.c.bf16 %v2811, %v2811
    %v2815 = vpack.c.bf16 %v2812, %v2812
    %s2816 = sld [smem:[#allocation10 + $0x1]]
    %v2817 = vstv %s2816
    %v2818 = vadd.f32 %v2734, %v2817
    %v2819 = vadd.f32 %v2735, %v2817
    %v2820 = vadd.f32 %v2736, %v2817
    %v2821 = vmax.f32 %v2818, 0.0
    %v2822 = vmax.f32 %v2819, 0.0
    %v2823 = vmax.f32 %v2820, 0.0
    %v2824 = vpack.c.bf16 %v2821, %v2821
    %v2825 = vpack.c.bf16 %v2822, %v2822
    %v2826 = vpack.c.bf16 %v2823, %v2823
    %s2827 = sld [smem:[#allocation10 + $0x2]]
    %v2828 = vstv %s2827
    %v2829 = vadd.f32 %v2751, %v2828
    %v2830 = vadd.f32 %v2752, %v2828
    %v2831 = vadd.f32 %v2753, %v2828
    %v2832 = vmax.f32 %v2829, 0.0
    %v2833 = vmax.f32 %v2830, 0.0
    %v2834 = vmax.f32 %v2831, 0.0
    %v2835 = vpack.c.bf16 %v2832, %v2832
    %v2836 = vpack.c.bf16 %v2833, %v2833
    %v2837 = vpack.c.bf16 %v2834, %v2834
    %s2838 = sld [smem:[#allocation10 + $0x3]]
    %v2839 = vstv %s2838
    %v2840 = vadd.f32 %v2768, %v2839
    %v2841 = vadd.f32 %v2769, %v2839
    %v2842 = vadd.f32 %v2770, %v2839
    %v2843 = vmax.f32 %v2840, 0.0
    %v2844 = vmax.f32 %v2841, 0.0
    %v2845 = vmax.f32 %v2842, 0.0
    %v2846 = vpack.c.bf16 %v2843, %v2843
    %v2847 = vpack.c.bf16 %v2844, %v2844
    %v2848 = vpack.c.bf16 %v2845, %v2845
    %s2849 = sld [smem:[#allocation10 + $0x4]]
    %v2850 = vstv %s2849
    %v2851 = vadd.f32 %v2785, %v2850
    %v2852 = vadd.f32 %v2786, %v2850
    %v2853 = vadd.f32 %v2787, %v2850
    %v2854 = vmax.f32 %v2851, 0.0
    %v2855 = vmax.f32 %v2852, 0.0
    %v2856 = vmax.f32 %v2853, 0.0
    %v2857 = vpack.c.bf16 %v2854, %v2854
    %v2858 = vpack.c.bf16 %v2855, %v2855
    %v2859 = vpack.c.bf16 %v2856, %v2856
    %s2860 = sld [smem:[#allocation10 + $0x5]]
    %v2861 = vstv %s2860
    %v2862 = vadd.f32 %v2802, %v2861
    %v2863 = vadd.f32 %v2803, %v2861
    %v2864 = vadd.f32 %v2804, %v2861
    %v2865 = vmax.f32 %v2862, 0.0
    %v2866 = vmax.f32 %v2863, 0.0
    %v2867 = vmax.f32 %v2864, 0.0
    %v2868 = vpack.c.bf16 %v2865, %v2865
    %v2869 = vpack.c.bf16 %v2866, %v2866
    %v2870 = vpack.c.bf16 %v2867, %v2867
    %s2871 = smul.u32 4, 144
    %s2872 = smul.u32 %s2871, 1
    %s2873 = sshll.u32 %s2872, 4
    %2874 = dma.done [#allocation3], %s2873
    %v2875 = vld [vmem:[#allocation2] sm:$0xff]
    %v2876 = vld [vmem:[#allocation2 + $0x8] sm:$0xff]
    %v2877 = vld [vmem:[#allocation2 + $0x10] sm:$0xff]
    %v2878 = vld [vmem:[#allocation2 + $0x18] sm:$0xff]
    %v2879 = vld [vmem:[#allocation2 + $0x20] sm:$0xff]
    %v2880 = vld [vmem:[#allocation2 + $0x28] sm:$0xff]
    %v2881 = vld [vmem:[#allocation2 + $0x30] sm:$0xff]
    %v2882 = vld [vmem:[#allocation2 + $0x38] sm:$0xff]
    %v2883 = vld [vmem:[#allocation2 + $0x40] sm:$0xff]
    %v2884 = vld [vmem:[#allocation2 + $0x48] sm:$0xff]
    %v2885 = vld [vmem:[#allocation2 + $0x50] sm:$0xff]
    %v2886 = vld [vmem:[#allocation2 + $0x58] sm:$0xff]
    %v2887 = vld [vmem:[#allocation2 + $0x60] sm:$0xff]
    %v2888 = vld [vmem:[#allocation2 + $0x68] sm:$0xff]
    %v2889 = vld [vmem:[#allocation2 + $0x70] sm:$0xff]
    %v2890 = vld [vmem:[#allocation2 + $0x78] sm:$0xff]
    %v2891 = vld [vmem:[#allocation2 + $0x80] sm:$0xff]
    %v2892 = vld [vmem:[#allocation2 + $0x88] sm:$0xff]
    %v2893 = vld [vmem:[#allocation2 + $0x90] sm:$0xff]
    %v2894 = vld [vmem:[#allocation2 + $0x98] sm:$0xff]
    %v2895 = vld [vmem:[#allocation2 + $0xa0] sm:$0xff]
    %v2896 = vld [vmem:[#allocation2 + $0xa8] sm:$0xff]
    %v2897 = vld [vmem:[#allocation2 + $0xb0] sm:$0xff]
    %v2898 = vld [vmem:[#allocation2 + $0xb8] sm:$0xff]
    %v2899 = vld [vmem:[#allocation2 + $0xc0] sm:$0xff]
    %v2900 = vld [vmem:[#allocation2 + $0xc8] sm:$0xff]
    %v2901 = vld [vmem:[#allocation2 + $0xd0] sm:$0xff]
    %v2902 = vld [vmem:[#allocation2 + $0xd8] sm:$0xff]
    %v2903 = vld [vmem:[#allocation2 + $0xe0] sm:$0xff]
    %v2904 = vld [vmem:[#allocation2 + $0xe8] sm:$0xff]
    %v2905 = vld [vmem:[#allocation2 + $0xf0] sm:$0xff]
    %v2906 = vld [vmem:[#allocation2 + $0xf8] sm:$0xff]
    %v2907 = vld [vmem:[#allocation2 + $0x100] sm:$0xff]
    %v2908 = vld [vmem:[#allocation2 + $0x108] sm:$0xff]
    %v2909 = vld [vmem:[#allocation2 + $0x110] sm:$0xff]
    %v2910 = vld [vmem:[#allocation2 + $0x118] sm:$0xff]
    %v2911 = vld [vmem:[#allocation2 + $0x120] sm:$0xff]
    %v2912 = vld [vmem:[#allocation2 + $0x128] sm:$0xff]
    %v2913 = vld [vmem:[#allocation2 + $0x130] sm:$0xff]
    %v2914 = vld [vmem:[#allocation2 + $0x138] sm:$0xff]
    %v2915 = vld [vmem:[#allocation2 + $0x140] sm:$0xff]
    %v2916 = vld [vmem:[#allocation2 + $0x148] sm:$0xff]
    %v2917 = vld [vmem:[#allocation2 + $0x150] sm:$0xff]
    %v2918 = vld [vmem:[#allocation2 + $0x158] sm:$0xff]
    %v2919 = vld [vmem:[#allocation2 + $0x160] sm:$0xff]
    %v2920 = vld [vmem:[#allocation2 + $0x168] sm:$0xff]
    %v2921 = vld [vmem:[#allocation2 + $0x170] sm:$0xff]
    %v2922 = vld [vmem:[#allocation2 + $0x178] sm:$0xff]
    %v2923 = vld [vmem:[#allocation2 + $0x180] sm:$0xff]
    %v2924 = vld [vmem:[#allocation2 + $0x188] sm:$0xff]
    %v2925 = vld [vmem:[#allocation2 + $0x190] sm:$0xff]
    %v2926 = vld [vmem:[#allocation2 + $0x198] sm:$0xff]
    %v2927 = vld [vmem:[#allocation2 + $0x1a0] sm:$0xff]
    %v2928 = vld [vmem:[#allocation2 + $0x1a8] sm:$0xff]
    %v2929 = vld [vmem:[#allocation2 + $0x1b0] sm:$0xff]
    %v2930 = vld [vmem:[#allocation2 + $0x1b8] sm:$0xff]
    %v2931 = vld [vmem:[#allocation2 + $0x1c0] sm:$0xff]
    %v2932 = vld [vmem:[#allocation2 + $0x1c8] sm:$0xff]
    %v2933 = vld [vmem:[#allocation2 + $0x1d0] sm:$0xff]
    %v2934 = vld [vmem:[#allocation2 + $0x1d8] sm:$0xff]
    %v2935 = vld [vmem:[#allocation2 + $0x1e0] sm:$0xff]
    %v2936 = vld [vmem:[#allocation2 + $0x1e8] sm:$0xff]
    %v2937 = vld [vmem:[#allocation2 + $0x1f0] sm:$0xff]
    %v2938 = vld [vmem:[#allocation2 + $0x1f8] sm:$0xff]
    %v2939 = vld [vmem:[#allocation2 + $0x200] sm:$0xff]
    %v2940 = vld [vmem:[#allocation2 + $0x208] sm:$0xff]
    %v2941 = vld [vmem:[#allocation2 + $0x210] sm:$0xff]
    %v2942 = vld [vmem:[#allocation2 + $0x218] sm:$0xff]
    %v2943 = vld [vmem:[#allocation2 + $0x220] sm:$0xff]
    %v2944 = vld [vmem:[#allocation2 + $0x228] sm:$0xff]
    %v2945 = vld [vmem:[#allocation2 + $0x230] sm:$0xff]
    %v2946 = vld [vmem:[#allocation2 + $0x238] sm:$0xff]
    %s2947 = sshll.u32 %s2872, 4
    %2948 = dma.done %s266, %s2947
    %v2949 = vld [vmem:[%s265] sm:$0xff]
    %v2950 = vld [vmem:[%s265 + $0x8] sm:$0xff]
    %v2951 = vld [vmem:[%s265 + $0x10] sm:$0xff]
    %v2952 = vld [vmem:[%s265 + $0x18] sm:$0xff]
    %v2953 = vld [vmem:[%s265 + $0x20] sm:$0xff]
    %v2954 = vld [vmem:[%s265 + $0x28] sm:$0xff]
    %v2955 = vld [vmem:[%s265 + $0x30] sm:$0xff]
    %v2956 = vld [vmem:[%s265 + $0x38] sm:$0xff]
    %v2957 = vld [vmem:[%s265 + $0x40] sm:$0xff]
    %v2958 = vld [vmem:[%s265 + $0x48] sm:$0xff]
    %v2959 = vld [vmem:[%s265 + $0x50] sm:$0xff]
    %v2960 = vld [vmem:[%s265 + $0x58] sm:$0xff]
    %v2961 = vld [vmem:[%s265 + $0x60] sm:$0xff]
    %v2962 = vld [vmem:[%s265 + $0x68] sm:$0xff]
    %v2963 = vld [vmem:[%s265 + $0x70] sm:$0xff]
    %v2964 = vld [vmem:[%s265 + $0x78] sm:$0xff]
    %v2965 = vld [vmem:[%s265 + $0x80] sm:$0xff]
    %v2966 = vld [vmem:[%s265 + $0x88] sm:$0xff]
    %v2967 = vld [vmem:[%s265 + $0x90] sm:$0xff]
    %v2968 = vld [vmem:[%s265 + $0x98] sm:$0xff]
    %v2969 = vld [vmem:[%s265 + $0xa0] sm:$0xff]
    %v2970 = vld [vmem:[%s265 + $0xa8] sm:$0xff]
    %v2971 = vld [vmem:[%s265 + $0xb0] sm:$0xff]
    %v2972 = vld [vmem:[%s265 + $0xb8] sm:$0xff]
    %v2973 = vld [vmem:[%s265 + $0xc0] sm:$0xff]
    %v2974 = vld [vmem:[%s265 + $0xc8] sm:$0xff]
    %v2975 = vld [vmem:[%s265 + $0xd0] sm:$0xff]
    %v2976 = vld [vmem:[%s265 + $0xd8] sm:$0xff]
    %v2977 = vld [vmem:[%s265 + $0xe0] sm:$0xff]
    %v2978 = vld [vmem:[%s265 + $0xe8] sm:$0xff]
    %v2979 = vld [vmem:[%s265 + $0xf0] sm:$0xff]
    %v2980 = vld [vmem:[%s265 + $0xf8] sm:$0xff]
    %v2981 = vld [vmem:[%s265 + $0x100] sm:$0xff]
    %v2982 = vld [vmem:[%s265 + $0x108] sm:$0xff]
    %v2983 = vld [vmem:[%s265 + $0x110] sm:$0xff]
    %v2984 = vld [vmem:[%s265 + $0x118] sm:$0xff]
    %v2985 = vld [vmem:[%s265 + $0x120] sm:$0xff]
    %v2986 = vld [vmem:[%s265 + $0x128] sm:$0xff]
    %v2987 = vld [vmem:[%s265 + $0x130] sm:$0xff]
    %v2988 = vld [vmem:[%s265 + $0x138] sm:$0xff]
    %v2989 = vld [vmem:[%s265 + $0x140] sm:$0xff]
    %v2990 = vld [vmem:[%s265 + $0x148] sm:$0xff]
    %v2991 = vld [vmem:[%s265 + $0x150] sm:$0xff]
    %v2992 = vld [vmem:[%s265 + $0x158] sm:$0xff]
    %v2993 = vld [vmem:[%s265 + $0x160] sm:$0xff]
    %v2994 = vld [vmem:[%s265 + $0x168] sm:$0xff]
    %v2995 = vld [vmem:[%s265 + $0x170] sm:$0xff]
    %v2996 = vld [vmem:[%s265 + $0x178] sm:$0xff]
    %v2997 = vld [vmem:[%s265 + $0x180] sm:$0xff]
    %v2998 = vld [vmem:[%s265 + $0x188] sm:$0xff]
    %v2999 = vld [vmem:[%s265 + $0x190] sm:$0xff]
    %v3000 = vld [vmem:[%s265 + $0x198] sm:$0xff]
    %v3001 = vld [vmem:[%s265 + $0x1a0] sm:$0xff]
    %v3002 = vld [vmem:[%s265 + $0x1a8] sm:$0xff]
    %v3003 = vld [vmem:[%s265 + $0x1b0] sm:$0xff]
    %v3004 = vld [vmem:[%s265 + $0x1b8] sm:$0xff]
    %v3005 = vld [vmem:[%s265 + $0x1c0] sm:$0xff]
    %v3006 = vld [vmem:[%s265 + $0x1c8] sm:$0xff]
    %v3007 = vld [vmem:[%s265 + $0x1d0] sm:$0xff]
    %v3008 = vld [vmem:[%s265 + $0x1d8] sm:$0xff]
    %v3009 = vld [vmem:[%s265 + $0x1e0] sm:$0xff]
    %v3010 = vld [vmem:[%s265 + $0x1e8] sm:$0xff]
    %v3011 = vld [vmem:[%s265 + $0x1f0] sm:$0xff]
    %v3012 = vld [vmem:[%s265 + $0x1f8] sm:$0xff]
    %v3013 = vld [vmem:[%s265 + $0x200] sm:$0xff]
    %v3014 = vld [vmem:[%s265 + $0x208] sm:$0xff]
    %v3015 = vld [vmem:[%s265 + $0x210] sm:$0xff]
    %v3016 = vld [vmem:[%s265 + $0x218] sm:$0xff]
    %v3017 = vld [vmem:[%s265 + $0x220] sm:$0xff]
    %v3018 = vld [vmem:[%s265 + $0x228] sm:$0xff]
    %v3019 = vld [vmem:[%s265 + $0x230] sm:$0xff]
    %v3020 = vld [vmem:[%s265 + $0x238] sm:$0xff]
    %3021 = vmatprep.subr.bf16.mxu0 0
    %3022 = vmatpush1.bf16.msra.mxu0 %v2949
    %3023 = vmatprep.subr.bf16.mxu0 0
    %3024 = vmatpush1.bf16.msra.mxu0 %v2950
    %3025 = vmatprep.subr.bf16.mxu0 0
    %3026 = vmatpush1.bf16.msra.mxu0 %v2951
    %3027 = vmatprep.subr.bf16.mxu0 0
    %3028 = vmatpush1.bf16.msra.mxu0 %v2952
    %3029 = vmatprep.subr.bf16.mxu0 0
    %3030 = vmatpush1.bf16.msra.mxu0 %v2953
    %3031 = vmatprep.subr.bf16.mxu0 0
    %3032 = vmatpush1.bf16.msra.mxu0 %v2954
    %3033 = vmatprep.subr.bf16.mxu0 0
    %3034 = vmatpush1.bf16.msra.mxu0 %v2955
    %3035 = vmatprep.subr.bf16.mxu0 0
    %3036 = vmatpush1.bf16.msra.mxu0 %v2956
    %3037 = vmatprep.subr.bf16.mxu0 0
    %3038 = vmatpush1.bf16.msra.mxu0 %v2957
    %3039 = vmatprep.subr.bf16.mxu0 0
    %3040 = vmatpush1.bf16.msra.mxu0 %v2958
    %3041 = vmatprep.subr.bf16.mxu0 0
    %3042 = vmatpush1.bf16.msra.mxu0 %v2959
    %3043 = vmatprep.subr.bf16.mxu0 0
    %3044 = vmatpush1.bf16.msra.mxu0 %v2960
    %3045 = vmatprep.subr.bf16.mxu0 0
    %3046 = vmatpush1.bf16.msra.mxu0 %v2961
    %3047 = vmatprep.subr.bf16.mxu0 0
    %3048 = vmatpush1.bf16.msra.mxu0 %v2962
    %3049 = vmatprep.subr.bf16.mxu0 0
    %3050 = vmatpush1.bf16.msra.mxu0 %v2963
    %3051 = vmatprep.subr.bf16.mxu0 0
    %3052 = vmatpush1.bf16.msra.mxu0 %v2964
    %3053 = vmatprep.mubr.bf16.mxu0 %v2847
    %3054 = vmatmul.mubr.bf16.gmra.mrb[0].mxu0 %v2846
    %v3055 = vpop.f32.mrb[0].mxu0
    %v3056 = vadd.f32 0.0, %v3055
    %v3057 = vpop.f32.mrb[0].mxu0
    %v3058 = vpop.f32.mrb[0].mxu0
    %v3059 = vpop.f32.mrb[0].mxu0
    %3060 = vdwg.mxu0
    %3061 = vmatprep.subr.bf16.mxu0 0
    %3062 = vmatpush1.bf16.msra.mxu0 %v2965
    %3063 = vmatprep.subr.bf16.mxu0 0
    %3064 = vmatpush1.bf16.msra.mxu0 %v2966
    %3065 = vmatprep.subr.bf16.mxu0 0
    %3066 = vmatpush1.bf16.msra.mxu0 %v2967
    %3067 = vmatprep.subr.bf16.mxu0 0
    %3068 = vmatpush1.bf16.msra.mxu0 %v2968
    %3069 = vmatprep.subr.bf16.mxu0 0
    %3070 = vmatpush1.bf16.msra.mxu0 %v2969
    %3071 = vmatprep.subr.bf16.mxu0 0
    %3072 = vmatpush1.bf16.msra.mxu0 %v2970
    %3073 = vmatprep.subr.bf16.mxu0 0
    %3074 = vmatpush1.bf16.msra.mxu0 %v2971
    %3075 = vmatprep.subr.bf16.mxu0 0
    %3076 = vmatpush1.bf16.msra.mxu0 %v2972
    %3077 = vmatprep.subr.bf16.mxu0 0
    %3078 = vmatpush1.bf16.msra.mxu0 %v2973
    %3079 = vmatprep.subr.bf16.mxu0 0
    %3080 = vmatpush1.bf16.msra.mxu0 %v2974
    %3081 = vmatprep.subr.bf16.mxu0 0
    %3082 = vmatpush1.bf16.msra.mxu0 %v2975
    %3083 = vmatprep.subr.bf16.mxu0 0
    %3084 = vmatpush1.bf16.msra.mxu0 %v2976
    %3085 = vmatprep.subr.bf16.mxu0 0
    %3086 = vmatpush1.bf16.msra.mxu0 %v2977
    %3087 = vmatprep.subr.bf16.mxu0 0
    %3088 = vmatpush1.bf16.msra.mxu0 %v2978
    %3089 = vmatprep.subr.bf16.mxu0 0
    %3090 = vmatpush1.bf16.msra.mxu0 %v2979
    %3091 = vmatprep.subr.bf16.mxu0 0
    %3092 = vmatpush1.bf16.msra.mxu0 %v2980
    %3093 = vmatprep.mubr.bf16.mxu0 %v2857
    %3094 = vmatmul.mubr.bf16.gmra.mrb[0].mxu0 %v2848
    %v3095 = vpop.f32.mrb[0].mxu0
    %v3096 = vadd.f32 %v3056, %v3095
    %v3097 = vpop.f32.mrb[0].mxu0
    %v3098 = vpop.f32.mrb[0].mxu0
    %v3099 = vpop.f32.mrb[0].mxu0
    %3100 = vdwg.mxu0
    %3101 = vmatprep.subr.bf16.mxu0 0
    %3102 = vmatpush1.bf16.msra.mxu0 %v2981
    %3103 = vmatprep.subr.bf16.mxu0 0
    %3104 = vmatpush1.bf16.msra.mxu0 %v2982
    %3105 = vmatprep.subr.bf16.mxu0 0
    %3106 = vmatpush1.bf16.msra.mxu0 %v2983
    %3107 = vmatprep.subr.bf16.mxu0 0
    %3108 = vmatpush1.bf16.msra.mxu0 %v2984
    %3109 = vmatprep.subr.bf16.mxu0 0
    %3110 = vmatpush1.bf16.msra.mxu0 %v2985
    %3111 = vmatprep.subr.bf16.mxu0 0
    %3112 = vmatpush1.bf16.msra.mxu0 %v2986
    %3113 = vmatprep.subr.bf16.mxu0 0
    %3114 = vmatpush1.bf16.msra.mxu0 %v2987
    %3115 = vmatprep.subr.bf16.mxu0 0
    %3116 = vmatpush1.bf16.msra.mxu0 %v2988
    %3117 = vmatprep.subr.bf16.mxu0 0
    %3118 = vmatpush1.bf16.msra.mxu0 %v2989
    %3119 = vmatprep.subr.bf16.mxu0 0
    %3120 = vmatpush1.bf16.msra.mxu0 %v2990
    %3121 = vmatprep.subr.bf16.mxu0 0
    %3122 = vmatpush1.bf16.msra.mxu0 %v2991
    %3123 = vmatprep.subr.bf16.mxu0 0
    %3124 = vmatpush1.bf16.msra.mxu0 %v2992
    %3125 = vmatprep.subr.bf16.mxu0 0
    %3126 = vmatpush1.bf16.msra.mxu0 %v2993
    %3127 = vmatprep.subr.bf16.mxu0 0
    %3128 = vmatpush1.bf16.msra.mxu0 %v2994
    %3129 = vmatprep.subr.bf16.mxu0 0
    %3130 = vmatpush1.bf16.msra.mxu0 %v2995
    %3131 = vmatprep.subr.bf16.mxu0 0
    %3132 = vmatpush1.bf16.msra.mxu0 %v2996
    %3133 = vmatprep.mubr.bf16.mxu0 %v2859
    %3134 = vmatmul.mubr.bf16.gmra.mrb[0].mxu0 %v2858
    %v3135 = vpop.f32.mrb[0].mxu0
    %v3136 = vadd.f32 %v3096, %v3135
    %v3137 = vpop.f32.mrb[0].mxu0
    %v3138 = vpop.f32.mrb[0].mxu0
    %v3139 = vpop.f32.mrb[0].mxu0
    %3140 = vdwg.mxu0
    %3141 = vmatprep.subr.bf16.mxu0 0
    %3142 = vmatpush1.bf16.msra.mxu0 %v2997
    %3143 = vmatprep.subr.bf16.mxu0 0
    %3144 = vmatpush1.bf16.msra.mxu0 %v2998
    %3145 = vmatprep.subr.bf16.mxu0 0
    %3146 = vmatpush1.bf16.msra.mxu0 %v2999
    %3147 = vmatprep.subr.bf16.mxu0 0
    %3148 = vmatpush1.bf16.msra.mxu0 %v3000
    %3149 = vmatprep.subr.bf16.mxu0 0
    %3150 = vmatpush1.bf16.msra.mxu0 %v3001
    %3151 = vmatprep.subr.bf16.mxu0 0
    %3152 = vmatpush1.bf16.msra.mxu0 %v3002
    %3153 = vmatprep.subr.bf16.mxu0 0
    %3154 = vmatpush1.bf16.msra.mxu0 %v3003
    %3155 = vmatprep.subr.bf16.mxu0 0
    %3156 = vmatpush1.bf16.msra.mxu0 %v3004
    %3157 = vmatprep.subr.bf16.mxu0 0
    %3158 = vmatpush1.bf16.msra.mxu0 %v3005
    %3159 = vmatprep.subr.bf16.mxu0 0
    %3160 = vmatpush1.bf16.msra.mxu0 %v3006
    %3161 = vmatprep.subr.bf16.mxu0 0
    %3162 = vmatpush1.bf16.msra.mxu0 %v3007
    %3163 = vmatprep.subr.bf16.mxu0 0
    %3164 = vmatpush1.bf16.msra.mxu0 %v3008
    %3165 = vmatprep.subr.bf16.mxu0 0
    %3166 = vmatpush1.bf16.msra.mxu0 %v3009
    %3167 = vmatprep.subr.bf16.mxu0 0
    %3168 = vmatpush1.bf16.msra.mxu0 %v3010
    %3169 = vmatprep.subr.bf16.mxu0 0
    %3170 = vmatpush1.bf16.msra.mxu0 %v3011
    %3171 = vmatprep.subr.bf16.mxu0 0
    %3172 = vmatpush1.bf16.msra.mxu0 %v3012
    %3173 = vmatprep.mubr.bf16.mxu0 %v2869
    %3174 = vmatmul.mubr.bf16.gmra.mrb[0].mxu0 %v2868
    %v3175 = vpop.f32.mrb[0].mxu0
    %v3176 = vadd.f32 %v3136, %v3175
    %v3177 = vpop.f32.mrb[0].mxu0
    %v3178 = vpop.f32.mrb[0].mxu0
    %v3179 = vpop.f32.mrb[0].mxu0
    %3180 = vdwg.mxu0
    %3181 = vmatprep.subr.bf16.mxu0 0
    %3182 = vmatpush1.bf16.msra.mxu0 %v3013
    %3183 = vmatprep.subr.bf16.mxu0 0
    %3184 = vmatpush1.bf16.msra.mxu0 %v3014
    %3185 = vmatprep.subr.bf16.mxu0 0
    %3186 = vmatpush1.bf16.msra.mxu0 %v3015
    %3187 = vmatprep.subr.bf16.mxu0 0
    %3188 = vmatpush1.bf16.msra.mxu0 %v3016
    %3189 = vmatprep.subr.bf16.mxu0 0
    %3190 = vmatpush1.bf16.msra.mxu0 %v3017
    %3191 = vmatprep.subr.bf16.mxu0 0
    %3192 = vmatpush1.bf16.msra.mxu0 %v3018
    %3193 = vmatprep.subr.bf16.mxu0 0
    %3194 = vmatpush1.bf16.msra.mxu0 %v3019
    %3195 = vmatprep.subr.bf16.mxu0 0
    %3196 = vmatpush1.bf16.msra.mxu0 %v3020
    %3197 = vmatprep.subr.bf16.mxu0 0
    %3198 = vmatpush1.bf16.msra.mxu0 0
    %3199 = vmatprep.subr.bf16.mxu0 0
    %3200 = vmatpush1.bf16.msra.mxu0 0
    %3201 = vmatprep.subr.bf16.mxu0 0
    %3202 = vmatpush1.bf16.msra.mxu0 0
    %3203 = vmatprep.subr.bf16.mxu0 0
    %3204 = vmatpush1.bf16.msra.mxu0 0
    %3205 = vmatprep.subr.bf16.mxu0 0
    %3206 = vmatpush1.bf16.msra.mxu0 0
    %3207 = vmatprep.subr.bf16.mxu0 0
    %3208 = vmatpush1.bf16.msra.mxu0 0
    %3209 = vmatprep.subr.bf16.mxu0 0
    %3210 = vmatpush1.bf16.msra.mxu0 0
    %3211 = vmatprep.subr.bf16.mxu0 0
    %3212 = vmatpush1.bf16.msra.mxu0 0
    %3213 = vmatprep.mubr.bf16.mxu0 0
    %3214 = vmatmul.mubr.bf16.gmra.mrb[0].mxu0 %v2870
    %v3215 = vpop.f32.mrb[0].mxu0
    %v3216 = vadd.f32 %v3176, %v3215
    %v3217 = vpop.f32.mrb[0].mxu0
    %v3218 = vpop.f32.mrb[0].mxu0
    %v3219 = vpop.f32.mrb[0].mxu0
    %3220 = vdwg.mxu0
    %3221 = vmatprep.subr.bf16.mxu0 0
    %3222 = vmatpush1.bf16.msra.mxu0 %v2875
    %3223 = vmatprep.subr.bf16.mxu0 0
    %3224 = vmatpush1.bf16.msra.mxu0 %v2876
    %3225 = vmatprep.subr.bf16.mxu0 0
    %3226 = vmatpush1.bf16.msra.mxu0 %v2877
    %3227 = vmatprep.subr.bf16.mxu0 0
    %3228 = vmatpush1.bf16.msra.mxu0 %v2878
    %3229 = vmatprep.subr.bf16.mxu0 0
    %3230 = vmatpush1.bf16.msra.mxu0 %v2879
    %3231 = vmatprep.subr.bf16.mxu0 0
    %3232 = vmatpush1.bf16.msra.mxu0 %v2880
    %3233 = vmatprep.subr.bf16.mxu0 0
    %3234 = vmatpush1.bf16.msra.mxu0 %v2881
    %3235 = vmatprep.subr.bf16.mxu0 0
    %3236 = vmatpush1.bf16.msra.mxu0 %v2882
    %3237 = vmatprep.subr.bf16.mxu0 0
    %3238 = vmatpush1.bf16.msra.mxu0 %v2883
    %3239 = vmatprep.subr.bf16.mxu0 0
    %3240 = vmatpush1.bf16.msra.mxu0 %v2884
    %3241 = vmatprep.subr.bf16.mxu0 0
    %3242 = vmatpush1.bf16.msra.mxu0 %v2885
    %3243 = vmatprep.subr.bf16.mxu0 0
    %3244 = vmatpush1.bf16.msra.mxu0 %v2886
    %3245 = vmatprep.subr.bf16.mxu0 0
    %3246 = vmatpush1.bf16.msra.mxu0 %v2887
    %3247 = vmatprep.subr.bf16.mxu0 0
    %3248 = vmatpush1.bf16.msra.mxu0 %v2888
    %3249 = vmatprep.subr.bf16.mxu0 0
    %3250 = vmatpush1.bf16.msra.mxu0 %v2889
    %3251 = vmatprep.subr.bf16.mxu0 0
    %3252 = vmatpush1.bf16.msra.mxu0 %v2890
    %3253 = vmatprep.mubr.bf16.mxu0 %v2814
    %3254 = vmatmul.mubr.bf16.gmra.mrb[0].mxu0 %v2813
    %v3255 = vpop.f32.mrb[0].mxu0
    %v3256 = vadd.f32 %v3216, %v3255
    %v3257 = vpop.f32.mrb[0].mxu0
    %v3258 = vpop.f32.mrb[0].mxu0
    %v3259 = vpop.f32.mrb[0].mxu0
    %3260 = vdwg.mxu0
    %3261 = vmatprep.subr.bf16.mxu0 0
    %3262 = vmatpush1.bf16.msra.mxu0 %v2891
    %3263 = vmatprep.subr.bf16.mxu0 0
    %3264 = vmatpush1.bf16.msra.mxu0 %v2892
    %3265 = vmatprep.subr.bf16.mxu0 0
    %3266 = vmatpush1.bf16.msra.mxu0 %v2893
    %3267 = vmatprep.subr.bf16.mxu0 0
    %3268 = vmatpush1.bf16.msra.mxu0 %v2894
    %3269 = vmatprep.subr.bf16.mxu0 0
    %3270 = vmatpush1.bf16.msra.mxu0 %v2895
    %3271 = vmatprep.subr.bf16.mxu0 0
    %3272 = vmatpush1.bf16.msra.mxu0 %v2896
    %3273 = vmatprep.subr.bf16.mxu0 0
    %3274 = vmatpush1.bf16.msra.mxu0 %v2897
    %3275 = vmatprep.subr.bf16.mxu0 0
    %3276 = vmatpush1.bf16.msra.mxu0 %v2898
    %3277 = vmatprep.subr.bf16.mxu0 0
    %3278 = vmatpush1.bf16.msra.mxu0 %v2899
    %3279 = vmatprep.subr.bf16.mxu0 0
    %3280 = vmatpush1.bf16.msra.mxu0 %v2900
    %3281 = vmatprep.subr.bf16.mxu0 0
    %3282 = vmatpush1.bf16.msra.mxu0 %v2901
    %3283 = vmatprep.subr.bf16.mxu0 0
    %3284 = vmatpush1.bf16.msra.mxu0 %v2902
    %3285 = vmatprep.subr.bf16.mxu0 0
    %3286 = vmatpush1.bf16.msra.mxu0 %v2903
    %3287 = vmatprep.subr.bf16.mxu0 0
    %3288 = vmatpush1.bf16.msra.mxu0 %v2904
    %3289 = vmatprep.subr.bf16.mxu0 0
    %3290 = vmatpush1.bf16.msra.mxu0 %v2905
    %3291 = vmatprep.subr.bf16.mxu0 0
    %3292 = vmatpush1.bf16.msra.mxu0 %v2906
    %3293 = vmatprep.mubr.bf16.mxu0 %v2824
    %3294 = vmatmul.mubr.bf16.gmra.mrb[0].mxu0 %v2815
    %v3295 = vpop.f32.mrb[0].mxu0
    %v3296 = vadd.f32 %v3256, %v3295
    %v3297 = vpop.f32.mrb[0].mxu0
    %v3298 = vpop.f32.mrb[0].mxu0
    %v3299 = vpop.f32.mrb[0].mxu0
    %3300 = vdwg.mxu0
    %3301 = vmatprep.subr.bf16.mxu0 0
    %3302 = vmatpush1.bf16.msra.mxu0 %v2907
    %3303 = vmatprep.subr.bf16.mxu0 0
    %3304 = vmatpush1.bf16.msra.mxu0 %v2908
    %3305 = vmatprep.subr.bf16.mxu0 0
    %3306 = vmatpush1.bf16.msra.mxu0 %v2909
    %3307 = vmatprep.subr.bf16.mxu0 0
    %3308 = vmatpush1.bf16.msra.mxu0 %v2910
    %3309 = vmatprep.subr.bf16.mxu0 0
    %3310 = vmatpush1.bf16.msra.mxu0 %v2911
    %3311 = vmatprep.subr.bf16.mxu0 0
    %3312 = vmatpush1.bf16.msra.mxu0 %v2912
    %3313 = vmatprep.subr.bf16.mxu0 0
    %3314 = vmatpush1.bf16.msra.mxu0 %v2913
    %3315 = vmatprep.subr.bf16.mxu0 0
    %3316 = vmatpush1.bf16.msra.mxu0 %v2914
    %3317 = vmatprep.subr.bf16.mxu0 0
    %3318 = vmatpush1.bf16.msra.mxu0 %v2915
    %3319 = vmatprep.subr.bf16.mxu0 0
    %3320 = vmatpush1.bf16.msra.mxu0 %v2916
    %3321 = vmatprep.subr.bf16.mxu0 0
    %3322 = vmatpush1.bf16.msra.mxu0 %v2917
    %3323 = vmatprep.subr.bf16.mxu0 0
    %3324 = vmatpush1.bf16.msra.mxu0 %v2918
    %3325 = vmatprep.subr.bf16.mxu0 0
    %3326 = vmatpush1.bf16.msra.mxu0 %v2919
    %3327 = vmatprep.subr.bf16.mxu0 0
    %3328 = vmatpush1.bf16.msra.mxu0 %v2920
    %3329 = vmatprep.subr.bf16.mxu0 0
    %3330 = vmatpush1.bf16.msra.mxu0 %v2921
    %3331 = vmatprep.subr.bf16.mxu0 0
    %3332 = vmatpush1.bf16.msra.mxu0 %v2922
    %3333 = vmatprep.mubr.bf16.mxu0 %v2826
    %3334 = vmatmul.mubr.bf16.gmra.mrb[0].mxu0 %v2825
    %v3335 = vpop.f32.mrb[0].mxu0
    %v3336 = vadd.f32 %v3296, %v3335
    %v3337 = vpop.f32.mrb[0].mxu0
    %v3338 = vpop.f32.mrb[0].mxu0
    %v3339 = vpop.f32.mrb[0].mxu0
    %3340 = vdwg.mxu0
    %3341 = vmatprep.subr.bf16.mxu0 0
    %3342 = vmatpush1.bf16.msra.mxu0 %v2923
    %3343 = vmatprep.subr.bf16.mxu0 0
    %3344 = vmatpush1.bf16.msra.mxu0 %v2924
    %3345 = vmatprep.subr.bf16.mxu0 0
    %3346 = vmatpush1.bf16.msra.mxu0 %v2925
    %3347 = vmatprep.subr.bf16.mxu0 0
    %3348 = vmatpush1.bf16.msra.mxu0 %v2926
    %3349 = vmatprep.subr.bf16.mxu0 0
    %3350 = vmatpush1.bf16.msra.mxu0 %v2927
    %3351 = vmatprep.subr.bf16.mxu0 0
    %3352 = vmatpush1.bf16.msra.mxu0 %v2928
    %3353 = vmatprep.subr.bf16.mxu0 0
    %3354 = vmatpush1.bf16.msra.mxu0 %v2929
    %3355 = vmatprep.subr.bf16.mxu0 0
    %3356 = vmatpush1.bf16.msra.mxu0 %v2930
    %3357 = vmatprep.subr.bf16.mxu0 0
    %3358 = vmatpush1.bf16.msra.mxu0 %v2931
    %3359 = vmatprep.subr.bf16.mxu0 0
    %3360 = vmatpush1.bf16.msra.mxu0 %v2932
    %3361 = vmatprep.subr.bf16.mxu0 0
    %3362 = vmatpush1.bf16.msra.mxu0 %v2933
    %3363 = vmatprep.subr.bf16.mxu0 0
    %3364 = vmatpush1.bf16.msra.mxu0 %v2934
    %3365 = vmatprep.subr.bf16.mxu0 0
    %3366 = vmatpush1.bf16.msra.mxu0 %v2935
    %3367 = vmatprep.subr.bf16.mxu0 0
    %3368 = vmatpush1.bf16.msra.mxu0 %v2936
    %3369 = vmatprep.subr.bf16.mxu0 0
    %3370 = vmatpush1.bf16.msra.mxu0 %v2937
    %3371 = vmatprep.subr.bf16.mxu0 0
    %3372 = vmatpush1.bf16.msra.mxu0 %v2938
    %3373 = vmatprep.mubr.bf16.mxu0 %v2836
    %3374 = vmatmul.mubr.bf16.gmra.mrb[0].mxu0 %v2835
    %v3375 = vpop.f32.mrb[0].mxu0
    %v3376 = vadd.f32 %v3336, %v3375
    %v3377 = vpop.f32.mrb[0].mxu0
    %v3378 = vpop.f32.mrb[0].mxu0
    %v3379 = vpop.f32.mrb[0].mxu0
    %3380 = vdwg.mxu0
    %3381 = vmatprep.subr.bf16.mxu0 0
    %3382 = vmatpush1.bf16.msra.mxu0 %v2939
    %3383 = vmatprep.subr.bf16.mxu0 0
    %3384 = vmatpush1.bf16.msra.mxu0 %v2940
    %3385 = vmatprep.subr.bf16.mxu0 0
    %3386 = vmatpush1.bf16.msra.mxu0 %v2941
    %3387 = vmatprep.subr.bf16.mxu0 0
    %3388 = vmatpush1.bf16.msra.mxu0 %v2942
    %3389 = vmatprep.subr.bf16.mxu0 0
    %3390 = vmatpush1.bf16.msra.mxu0 %v2943
    %3391 = vmatprep.subr.bf16.mxu0 0
    %3392 = vmatpush1.bf16.msra.mxu0 %v2944
    %3393 = vmatprep.subr.bf16.mxu0 0
    %3394 = vmatpush1.bf16.msra.mxu0 %v2945
    %3395 = vmatprep.subr.bf16.mxu0 0
    %3396 = vmatpush1.bf16.msra.mxu0 %v2946
    %3397 = vmatprep.subr.bf16.mxu0 0
    %3398 = vmatpush1.bf16.msra.mxu0 0
    %3399 = vmatprep.subr.bf16.mxu0 0
    %3400 = vmatpush1.bf16.msra.mxu0 0
    %3401 = vmatprep.subr.bf16.mxu0 0
    %3402 = vmatpush1.bf16.msra.mxu0 0
    %3403 = vmatprep.subr.bf16.mxu0 0
    %3404 = vmatpush1.bf16.msra.mxu0 0
    %3405 = vmatprep.subr.bf16.mxu0 0
    %3406 = vmatpush1.bf16.msra.mxu0 0
    %3407 = vmatprep.subr.bf16.mxu0 0
    %3408 = vmatpush1.bf16.msra.mxu0 0
    %3409 = vmatprep.subr.bf16.mxu0 0
    %3410 = vmatpush1.bf16.msra.mxu0 0
    %3411 = vmatprep.subr.bf16.mxu0 0
    %3412 = vmatpush1.bf16.msra.mxu0 0
    %3413 = vmatprep.mubr.bf16.mxu0 0
    %3414 = vmatmul.mubr.bf16.gmra.mrb[0].mxu0 %v2837
    %v3415 = vpop.f32.mrb[0].mxu0
    %v3416 = vadd.f32 %v3376, %v3415
    %v3417 = vpop.f32.mrb[0].mxu0
    %v3418 = vpop.f32.mrb[0].mxu0
    %v3419 = vpop.f32.mrb[0].mxu0
    %3420 = vdwg.mxu0
    %v3421 = vld [vmem:[%s6] sm:$0x1]
    %v3423 = vlaneseq
    %v3424 = vshrl.u32 %v3423, 7
    %v3425 = vsub.s32 0, %v3424
    %v3426 = vrot.slane %v3421, %v3425
    %v3428 = vadd.f32 %v3416, %v3426
    %v3429 = vmax.f32 %v3428, 0.0
    %v3430 = vld [vmem:[%s7] sm:$0xff]
    %v3431 = vld [vmem:[%s7 + $0x8] sm:$0xff]
    %v3432 = vld [vmem:[%s7 + $0x10] sm:$0xff]
    %v3433 = vld [vmem:[%s7 + $0x18] sm:$0xff]
    %v3434 = vld [vmem:[%s7 + $0x20] sm:$0xff]
    %v3435 = vld [vmem:[%s7 + $0x28] sm:$0xff]
    %v3436 = vld [vmem:[%s7 + $0x30] sm:$0xff]
    %v3437 = vld [vmem:[%s7 + $0x38] sm:$0xff]
    %v3438 = vld [vmem:[%s7 + $0x40] sm:$0xff]
    %v3439 = vld [vmem:[%s7 + $0x48] sm:$0xff]
    %v3440 = vld [vmem:[%s7 + $0x50] sm:$0xff]
    %v3441 = vld [vmem:[%s7 + $0x58] sm:$0xff]
    %v3442 = vld [vmem:[%s7 + $0x60] sm:$0xff]
    %v3443 = vld [vmem:[%s7 + $0x68] sm:$0xff]
    %v3444 = vld [vmem:[%s7 + $0x70] sm:$0xff]
    %v3445 = vld [vmem:[%s7 + $0x78] sm:$0xff]
    %v3446 = vld [vmem:[%s8] sm:$0x1]
    %v3448 = vlaneseq
    %v3449 = vshrl.u32 %v3448, 7
    %v3450 = vsub.s32 0, %v3449
    %v3451 = vrot.slane %v3446, %v3450
    %3453 = vmatprep.subr.mxu0 0.0
    %3454 = vmatpush1.msra.mxu0 %v3430
    %3455 = vmatprep.subr.mxu0 0.0
    %3456 = vmatpush1.msra.mxu0 %v3431
    %3457 = vmatprep.subr.mxu0 0.0
    %3458 = vmatpush1.msra.mxu0 %v3432
    %3459 = vmatprep.subr.mxu0 0.0
    %3460 = vmatpush1.msra.mxu0 %v3433
    %3461 = vmatprep.subr.mxu0 0.0
    %3462 = vmatpush1.msra.mxu0 %v3434
    %3463 = vmatprep.subr.mxu0 0.0
    %3464 = vmatpush1.msra.mxu0 %v3435
    %3465 = vmatprep.subr.mxu0 0.0
    %3466 = vmatpush1.msra.mxu0 %v3436
    %3467 = vmatprep.subr.mxu0 0.0
    %3468 = vmatpush1.msra.mxu0 %v3437
    %3469 = vmatprep.subr.mxu0 0.0
    %3470 = vmatpush1.msra.mxu0 %v3438
    %3471 = vmatprep.subr.mxu0 0.0
    %3472 = vmatpush1.msra.mxu0 %v3439
    %3473 = vmatprep.subr.mxu0 0.0
    %3474 = vmatpush1.msra.mxu0 %v3440
    %3475 = vmatprep.subr.mxu0 0.0
    %3476 = vmatpush1.msra.mxu0 %v3441
    %3477 = vmatprep.subr.mxu0 0.0
    %3478 = vmatpush1.msra.mxu0 %v3442
    %3479 = vmatprep.subr.mxu0 0.0
    %3480 = vmatpush1.msra.mxu0 %v3443
    %3481 = vmatprep.subr.mxu0 0.0
    %3482 = vmatpush1.msra.mxu0 %v3444
    %3483 = vmatprep.subr.mxu0 0.0
    %3484 = vmatpush1.msra.mxu0 %v3445
    %3485 = vmatprep.subr.mxu0 0.0
    %3486 = vmatpush1.msra.mxu0 0.0
    %3487 = vmatprep.subr.mxu0 0.0
    %3488 = vmatpush1.msra.mxu0 0.0
    %3489 = vmatprep.subr.mxu0 0.0
    %3490 = vmatpush1.msra.mxu0 0.0
    %3491 = vmatprep.subr.mxu0 0.0
    %3492 = vmatpush1.msra.mxu0 0.0
    %3493 = vmatprep.subr.mxu0 0.0
    %3494 = vmatpush1.msra.mxu0 0.0
    %3495 = vmatprep.subr.mxu0 0.0
    %3496 = vmatpush1.msra.mxu0 0.0
    %3497 = vmatprep.subr.mxu0 0.0
    %3498 = vmatpush1.msra.mxu0 0.0
    %3499 = vmatprep.subr.mxu0 0.0
    %3500 = vmatpush1.msra.mxu0 0.0
    %3501 = vmatprep.subr.mxu0 0.0
    %3502 = vmatpush1.msra.mxu0 0.0
    %3503 = vmatprep.subr.mxu0 0.0
    %3504 = vmatpush1.msra.mxu0 0.0
    %3505 = vmatprep.subr.mxu0 0.0
    %3506 = vmatpush1.msra.mxu0 0.0
    %3507 = vmatprep.subr.mxu0 0.0
    %3508 = vmatpush1.msra.mxu0 0.0
    %3509 = vmatprep.subr.mxu0 0.0
    %3510 = vmatpush1.msra.mxu0 0.0
    %3511 = vmatprep.subr.mxu0 0.0
    %3512 = vmatpush1.msra.mxu0 0.0
    %3513 = vmatprep.subr.mxu0 0.0
    %3514 = vmatpush1.msra.mxu0 0.0
    %3515 = vmatprep.subr.mxu0 0.0
    %3516 = vmatpush1.msra.mxu0 0.0
    %3517 = vmatprep.mubr.f32.mxu0 0.0
    %3518 = vmatmul.mubr.f32.gmra.mrb[0].mxu0 %v3429
    %v3519 = vpop.f32.mrb[0].mxu0
    %v3520 = vadd.f32 %v3451, %v3519
    %v3521 = vpop.f32.mrb[0].mxu0
    %3522 = vdwg.mxu0
    %vm3523 = vcmask 1041408
    %v3524 = vsel %vm3523, %v3520, -inf
    %3525 = vmax.xlane.f32.xlu0 %v3524
    %v3526 = vpop.xlane.xlu0 %3525
    %v3527 = vsub.f32 %v3520, %v3526
    %v3528 = vmul.f32 %v3527, 1.442695
    %v3529 = vpow.pop %v3528
    %v3530 = vsel %vm3523, %v3529, 0.0
    %3531 = vadd.xlane.f32.xlu0 %v3530
    %v3532 = vpop.xlane.xlu0 %3531
    %v3533 = vrcp.pop %v3532
    %v3534 = vmul.f32 %v3529, %v3533
    %3535 = vst [vmem:[#allocation12] sm:$0x3] %v3534
    // Predicated region
    $region118: #{actor_forward.1} parent=1 // pred_check
      _
    $region119: #{actor_forward.1} parent=1 // pred_check_branch
      %3537 = sbr.rel (0) target = $region121
    $region120: #{actor_forward.1} parent=1 // pred_region
      %s3539 = ssub.s32 32, 32
      %3540 = vsyncadd [#allocation5], %s3539
      %s3542 = sshll.u32 [#allocation12], 4
      %s3543 = int_to_ptr.vmem [resolvable:$true] %s3542
      %3545 = dma.vmem_to_hbm [thread:$0]  %s3543, 32, %s9, [#allocation5]
    $region121: #{actor_forward.1} parent=1 // pred_fallthru
      _
    // Predicated region
    $region122: #{actor_forward.1} parent=1 // pred_check
      _
    $region123: #{actor_forward.1} parent=1 // pred_check_branch
      %3547 = sbr.rel (0) target = $region125
    $region124: #{actor_forward.1} parent=1 // pred_region
      %3548 = dma.done [#allocation5], 32
    $region125: #{actor_forward.1} parent=1 // pred_fallthru
      _
    %3549 = vsyncpa [#allocation5], 1
    %3550 = vsyncpa [#allocation6], 1
    %3551 = vsyncpa [#allocation8], 1
    %3552 = vsyncpa [#allocation11], 1
  %3553 = vsyncmov [#allocation3]
  %s3554 = vpop.sfrf %3553
  %p3555 = scmp.eq.s32.totalorder %s3554, 0
  %p3556 = pneg %p3555
  %3558 = shalt.err (%p3556)
  %s3559 = scalar_lea.sflag [#allocation3], 1
  %3560 = vsyncmov %s3559
  %s3561 = vpop.sfrf %3560
  %p3562 = scmp.eq.s32.totalorder %s3561, 0
  %p3563 = pneg %p3562
  %3565 = shalt.err (%p3563)

</llo_original>
